<compile_context>
chip_gen: v7x
topology: tpu7x:2x2x1
jax: 0.10.0
libtpu: 0.0.40
codegen_flags: <defaults>
</compile_context>

<pallas_src>
import jax
import jax.numpy as jnp
from jax.experimental import pallas as pl
from jax.experimental.pallas import tpu as pltpu

MLP_HIDDEN = 2048  # hidden width hard-coded inside the PyTorch module


def _round_up(x, m):
    return ((x + m - 1) // m) * m


def _default_mxu_bf16():
    """bf16 MXU operands on v6e/v7x; keep f32 on v5e (bit-parity, per review)."""
    try:
        kind = jax.devices()[0].device_kind.lower()
    except Exception:
        return False
    return ("v6" in kind) or ("v7" in kind)


def _pick_row_tile(m, requested):
    """Row tile over the flattened (B*S) token axis."""
    requested = max(8, min(int(requested), 1024))   # VMEM headroom (incl. v7x 64 MiB)
    tm = min(requested, _round_up(m, 8))            # never bigger than needed
    if m > 8 and pl.cdiv(m, tm) < 2:                # >= 2 grid steps: v7x has 2 TCs
        tm = _round_up(pl.cdiv(m, 2), 8)
    return tm


def _make_mlp_kernel(with_mask, mxu_dtype):
    """o = relu(x @ w1 + b1) @ w2 + b2, fully fused per row tile (VMEM-resident)."""

    def _body(x, w1_ref, b1_ref, w2_ref, b2_ref, o_ref):
        # GEMM 1 (MXU), f32 accumulation; bias + ReLU in f32 on the VPU.
        h = jnp.dot(x.astype(mxu_dtype), w1_ref[...],
                    preferred_element_type=jnp.float32)
        h = jnp.maximum(h + b1_ref[...], 0.0)
        # GEMM 2 (dominant (tm,2048)x(2048,N)); bf16 operands on v6e/v7x.
        o = jnp.dot(h.astype(mxu_dtype), w2_ref[...],
                    preferred_element_type=jnp.float32)
        o_ref[...] = (o + b2_ref[...]).astype(o_ref.dtype)

    if with_mask:
        def kernel(x_ref, m_ref, w1_ref, b1_ref, w2_ref, b2_ref, o_ref):
            x = x_ref[...].astype(jnp.float32) * m_ref[...]   # fused mask multiply
            _body(x, w1_ref, b1_ref, w2_ref, b2_ref, o_ref)
    else:
        def kernel(x_ref, w1_ref, b1_ref, w2_ref, b2_ref, o_ref):
            _body(x_ref[...], w1_ref, b1_ref, w2_ref, b2_ref, o_ref)
    return kernel


def _build_specs(with_mask, tm, H, Hmid, N, single_buffer_consts):
    def const_spec(shape):
        if single_buffer_consts:
            return pl.BlockSpec(shape, lambda i: (0, 0),
                                pipeline_mode=pl.Buffered(1))
        return pl.BlockSpec(shape, lambda i: (0, 0))

    in_specs = [pl.BlockSpec((tm, H), lambda i: (i, 0))]          # activations
    if with_mask:
        in_specs.append(pl.BlockSpec((tm, 1), lambda i: (i, 0)))  # mask tile
    in_specs += [
        const_spec((H, Hmid)),    # w1 (VMEM-resident across grid steps)
        const_spec((1, Hmid)),    # b1
        const_spec((Hmid, N)),    # w2 (VMEM-resident)
        const_spec((1, N)),       # b2
    ]
    out_specs = pl.BlockSpec((tm, N), lambda i: (i, 0))           # lane-dense (N=128k)
    return in_specs, out_specs


def position_attack_mlp_forward(params, x, labels=None, attention_mask=None,
                                *, row_tile=512, mxu_bf16=None):
    """Mirrors PositionAttackMLP.forward(x, labels, attention_mask)."""
    B, S, H = x.shape
    w1, b1, w2, b2 = params["w1"], params["b1"], params["w2"], params["b2"]
    Hmid = w1.shape[1]
    N = w2.shape[1]

    if mxu_bf16 is None:
        mxu_bf16 = _default_mxu_bf16()
    mxu_dtype = jnp.bfloat16 if mxu_bf16 else jnp.float32

    # Weights in the MXU-operand dtype (halves their VMEM/DMA footprint in bf16);
    # biases stay f32 so the adds run on the f32 VPU path.
    w1c = w1.astype(mxu_dtype)
    w2c = w2.astype(mxu_dtype)
    b1c = b1.astype(jnp.float32).reshape(1, Hmid)
    b2c = b2.astype(jnp.float32).reshape(1, N)

    M = B * S
    x2 = x.reshape(M, H)
    with_mask = attention_mask is not None
    if with_mask:
        mask2 = attention_mask.reshape(M, 1).astype(jnp.float32)

    tm = _pick_row_tile(M, row_tile)
    grid = (pl.cdiv(M, tm),)   # no wrapper-side pad: Pallas masks the last partial block

    kernel = _make_mlp_kernel(with_mask, mxu_dtype)

    def make_call(single_buffer_consts):
        in_specs, out_specs = _build_specs(with_mask, tm, H, Hmid, N,
                                           single_buffer_consts)
        return pl.pallas_call(
            kernel,
            out_shape=jax.ShapeDtypeStruct((M, N), x.dtype),
            grid_spec=pltpu.PrefetchScalarGridSpec(
                num_scalar_prefetch=0,
                grid=grid,
                in_specs=in_specs,
                out_specs=out_specs,
            ),
            compiler_params=pltpu.CompilerParams(
                dimension_semantics=("parallel",),   # rows shard across v7x TCs
            ),
        )

    args = ((x2, mask2, w1c, b1c, w2c, b2c) if with_mask
            else (x2, w1c, b1c, w2c, b2c))
    try:
        logits2 = make_call(True)(*args)
    except Exception:
        # Fallback if pl.Buffered(1) single-buffering of the constant blocks is
        # rejected by this JAX version (costs ~1.3 MiB extra VMEM, nothing else).
        logits2 = make_call(False)(*args)

    logits = logits2.reshape(B, S, N)

    loss = None
    if labels is not None:
        # torch.nn.CrossEntropyLoss over tokens with attention_mask == 1
        # (ignore_index masking).  Tiny reduction -> plain JAX, not a kernel.
        flat_logits = logits.reshape(-1, N).astype(jnp.float32)
        flat_labels = jnp.clip(labels.reshape(-1).astype(jnp.int32), 0, N - 1)
        active = attention_mask.reshape(-1) == 1
        logz = jax.nn.logsumexp(flat_logits, axis=-1)
        picked = jnp.take_along_axis(flat_logits, flat_labels[:, None], axis=-1)[:, 0]
        nll = logz - picked
        n_active = jnp.maximum(jnp.sum(active.astype(jnp.float32)), 1.0)
        loss = jnp.sum(jnp.where(active, nll, 0.0)) / n_active

    return logits, loss


if __name__ == "__main__":
    class Config:
        hidden_size = 32               # small toy hidden size
        max_position_embeddings = 128  # output width (lane-dense multiple of 128)

    cfg = Config()
    key = jax.random.PRNGKey(0)
    k1, k2, k3, kx, km, kl = jax.random.split(key, 6)

    H, N = cfg.hidden_size, cfg.max_position_embeddings
    params = {
        "w1": 0.02 * jax.random.normal(k1, (H, MLP_HIDDEN), jnp.float32),
        "b1": jnp.zeros((1, MLP_HIDDEN), jnp.float32),
        "w2": 0.02 * jax.random.normal(k2, (MLP_HIDDEN, N), jnp.float32),
        "b2": 0.01 * jax.random.normal(k3, (1, N), jnp.float32),
    }

    B, S = 2, 8
    x = jax.random.normal(kx, (B, S, H), dtype=jnp.float32)
    mask = (jax.random.uniform(km, (B, S)) > 0.3).astype(jnp.float32)
    labels = jax.random.randint(kl, (B, S), 0, N)

    # bf16 MXU operands on v6e/v7x -> loosen parity vs. the pure-f32 reference.
    bf16 = _default_mxu_bf16()
    tol = dict(atol=1e-2, rtol=2e-2) if bf16 else dict(atol=1e-4, rtol=1e-4)

    # Path 1: default forward (no mask, no labels).
    logits, loss = position_attack_mlp_forward(params, x)
    logits = jax.block_until_ready(logits)

    x2 = x.reshape(B * S, H)
    ref = (jnp.maximum(x2 @ params["w1"] + params["b1"], 0.0)
           @ params["w2"] + params["b2"]).reshape(B, S, N)

    assert logits.shape == (B, S, N)
    assert loss is None
    assert bool(jnp.all(jnp.isfinite(logits)))
    assert bool(jnp.allclose(logits, ref, **tol)), \
        float(jnp.max(jnp.abs(logits - ref)))

    # Path 2: attention_mask fused in-kernel.
    logits_m, _ = position_attack_mlp_forward(params, x, attention_mask=mask)
    logits_m = jax.block_until_ready(logits_m)
    xm2 = (x * mask[..., None]).reshape(B * S, H)
    ref_m = (jnp.maximum(xm2 @ params["w1"] + params["b1"], 0.0)
             @ params["w2"] + params["b2"]).reshape(B, S, N)
    assert bool(jnp.allclose(logits_m, ref_m, **tol)), \
        float(jnp.max(jnp.abs(logits_m - ref_m)))

    # Path 3: labels -> CrossEntropyLoss over active tokens (plain-JAX glue).
    _, loss3 = position_attack_mlp_forward(params, x, labels=labels,
                                           attention_mask=mask)
    loss3 = jax.block_until_ready(loss3)
    assert loss3.shape == ()
    assert bool(jnp.isfinite(loss3))

    print("KERNEL_OK")
</pallas_src>

<mosaic_0001>
module attributes {stable_mosaic.version = 11 : i64} {
  func.func @kernel(%arg0: i32, %arg1: memref<8x32xf32, #tpu.memory_space<vmem>>, %arg2: memref<32x2048xf32, #tpu.memory_space<vmem>>, %arg3: memref<1x2048xf32, #tpu.memory_space<vmem>>, %arg4: memref<2048x128xf32, #tpu.memory_space<vmem>>, %arg5: memref<1x128xf32, #tpu.memory_space<vmem>>, %arg6: memref<8x128xf32, #tpu.memory_space<vmem>>) attributes {dimension_semantics = [#tpu.dimension_semantics<parallel>], iteration_bounds = array<i64: 2>, scalar_prefetch = 0 : i64, scratch_operands = 0 : i64, tpu.core_type = #tpu.core_type<tc>, window_params = [{transform_indices = @transform_0, window_bounds = array<i64: 8, 32>}, {pipeline_mode = #tpu.pipeline_mode<synchronous>, transform_indices = @transform_1, window_bounds = array<i64: 32, 2048>}, {pipeline_mode = #tpu.pipeline_mode<synchronous>, transform_indices = @transform_2, window_bounds = array<i64: 1, 2048>}, {pipeline_mode = #tpu.pipeline_mode<synchronous>, transform_indices = @transform_3, window_bounds = array<i64: 2048, 128>}, {pipeline_mode = #tpu.pipeline_mode<synchronous>, transform_indices = @transform_4, window_bounds = array<i64: 1, 128>}, {transform_indices = @transform_5, window_bounds = array<i64: 8, 128>}]} {
    %c0 = arith.constant 0 : index
    %c0_0 = arith.constant 0 : index
    %0 = vector.load %arg1[%c0, %c0_0] : memref<8x32xf32, #tpu.memory_space<vmem>>, vector<8x32xf32>
    %c0_1 = arith.constant 0 : index
    %c0_2 = arith.constant 0 : index
    %1 = vector.load %arg2[%c0_1, %c0_2] : memref<32x2048xf32, #tpu.memory_space<vmem>>, vector<32x2048xf32>
    %cst = arith.constant dense<0.000000e+00> : vector<8x2048xf32>
    %2 = tpu.matmul %0, %1, %cst {dimension_numbers = #tpu.dot_dimension_numbers<[1], [0], [0], [1], [0, 0, 1, 1], [], []>} : vector<8x32xf32>, vector<32x2048xf32>, vector<8x2048xf32> -> vector<8x2048xf32>
    %c0_3 = arith.constant 0 : index
    %c0_4 = arith.constant 0 : index
    %3 = vector.load %arg3[%c0_3, %c0_4] : memref<1x2048xf32, #tpu.memory_space<vmem>>, vector<1x2048xf32>
    %4 = vector.broadcast %3 : vector<1x2048xf32> to vector<8x2048xf32>
    %5 = arith.addf %2, %4 : vector<8x2048xf32>
    %cst_5 = arith.constant 0.000000e+00 : f32
    %6 = vector.broadcast %cst_5 : f32 to vector<8x2048xf32>
    %7 = arith.maximumf %5, %6 : vector<8x2048xf32>
    %c0_6 = arith.constant 0 : index
    %c0_7 = arith.constant 0 : index
    %8 = vector.load %arg4[%c0_6, %c0_7] : memref<2048x128xf32, #tpu.memory_space<vmem>>, vector<2048x128xf32>
    %cst_8 = arith.constant dense<0.000000e+00> : vector<8x128xf32>
    %9 = tpu.matmul %7, %8, %cst_8 {dimension_numbers = #tpu.dot_dimension_numbers<[1], [0], [0], [1], [0, 0, 1, 1], [], []>} : vector<8x2048xf32>, vector<2048x128xf32>, vector<8x128xf32> -> vector<8x128xf32>
    %c0_9 = arith.constant 0 : index
    %c0_10 = arith.constant 0 : index
    %10 = vector.load %arg5[%c0_9, %c0_10] : memref<1x128xf32, #tpu.memory_space<vmem>>, vector<1x128xf32>
    %11 = vector.broadcast %10 : vector<1x128xf32> to vector<8x128xf32>
    %12 = arith.addf %9, %11 : vector<8x128xf32>
    %c0_11 = arith.constant 0 : index
    %c0_12 = arith.constant 0 : index
    %13 = vector.load %arg6[%c0_11, %c0_12] : memref<8x128xf32, #tpu.memory_space<vmem>>, vector<8x128xf32>
    tpu.vector_store %arg6[%c0_11, %c0_12], %12 {strides = array<i32>} : memref<8x128xf32, #tpu.memory_space<vmem>>, vector<8x128xf32>,
    return
  }
  func.func @transform_0(%arg0: i32) -> (i32, i32) {
    %c0_i32 = arith.constant 0 : i32
    %c0_i32_0 = arith.constant 0 : i32
    return %arg0, %c0_i32 : i32, i32
  }
  func.func @transform_1(%arg0: i32) -> (i32, i32) {
    %c0_i32 = arith.constant 0 : i32
    %c0_i32_0 = arith.constant 0 : i32
    %c0_i32_1 = arith.constant 0 : i32
    return %c0_i32, %c0_i32_0 : i32, i32
  }
  func.func @transform_2(%arg0: i32) -> (i32, i32) {
    %c0_i32 = arith.constant 0 : i32
    %c0_i32_0 = arith.constant 0 : i32
    %c0_i32_1 = arith.constant 0 : i32
    return %c0_i32, %c0_i32_0 : i32, i32
  }
  func.func @transform_3(%arg0: i32) -> (i32, i32) {
    %c0_i32 = arith.constant 0 : i32
    %c0_i32_0 = arith.constant 0 : i32
    %c0_i32_1 = arith.constant 0 : i32
    return %c0_i32, %c0_i32_0 : i32, i32
  }
  func.func @transform_4(%arg0: i32) -> (i32, i32) {
    %c0_i32 = arith.constant 0 : i32
    %c0_i32_0 = arith.constant 0 : i32
    %c0_i32_1 = arith.constant 0 : i32
    return %c0_i32, %c0_i32_0 : i32, i32
  }
  func.func @transform_5(%arg0: i32) -> (i32, i32) {
    %c0_i32 = arith.constant 0 : i32
    %c0_i32_0 = arith.constant 0 : i32
    return %arg0, %c0_i32 : i32, i32
  }
}

module attributes {stable_mosaic.version = 11 : i64} {
  func.func @kernel(%arg0: i32, %arg1: memref<8x32xf32, #tpu.memory_space<vmem>>, %arg2: memref<32x2048xf32, #tpu.memory_space<vmem>>, %arg3: memref<1x2048xf32, #tpu.memory_space<vmem>>, %arg4: memref<2048x128xf32, #tpu.memory_space<vmem>>, %arg5: memref<1x128xf32, #tpu.memory_space<vmem>>, %arg6: memref<8x128xf32, #tpu.memory_space<vmem>>) attributes {dimension_semantics = [#tpu.dimension_semantics<parallel>], iteration_bounds = array<i64: 2>, scalar_prefetch = 0 : i64, scratch_operands = 0 : i64, tpu.core_type = #tpu.core_type<tc>, window_params = [{transform_indices = @transform_0, window_bounds = array<i64: 8, 32>}, {pipeline_mode = #tpu.pipeline_mode<synchronous>, transform_indices = @transform_1, window_bounds = array<i64: 32, 2048>}, {pipeline_mode = #tpu.pipeline_mode<synchronous>, transform_indices = @transform_2, window_bounds = array<i64: 1, 2048>}, {pipeline_mode = #tpu.pipeline_mode<synchronous>, transform_indices = @transform_3, window_bounds = array<i64: 2048, 128>}, {pipeline_mode = #tpu.pipeline_mode<synchronous>, transform_indices = @transform_4, window_bounds = array<i64: 1, 128>}, {transform_indices = @transform_5, window_bounds = array<i64: 8, 128>}]} {
    %c0 = arith.constant 0 : index
    %c0_0 = arith.constant 0 : index
    %0 = vector.load %arg1[%c0, %c0_0] : memref<8x32xf32, #tpu.memory_space<vmem>>, vector<8x32xf32>
    %c0_1 = arith.constant 0 : index
    %c0_2 = arith.constant 0 : index
    %1 = vector.load %arg2[%c0_1, %c0_2] : memref<32x2048xf32, #tpu.memory_space<vmem>>, vector<32x2048xf32>
    %cst = arith.constant dense<0.000000e+00> : vector<8x2048xf32>
    %2 = tpu.matmul %0, %1, %cst {dimension_numbers = #tpu.dot_dimension_numbers<[1], [0], [0], [1], [0, 0, 1, 1], [], []>} : vector<8x32xf32>, vector<32x2048xf32>, vector<8x2048xf32> -> vector<8x2048xf32>
    %c0_3 = arith.constant 0 : index
    %c0_4 = arith.constant 0 : index
    %3 = vector.load %arg3[%c0_3, %c0_4] : memref<1x2048xf32, #tpu.memory_space<vmem>>, vector<1x2048xf32>
    %4 = vector.broadcast %3 : vector<1x2048xf32> to vector<8x2048xf32>
    %5 = arith.addf %2, %4 : vector<8x2048xf32>
    %cst_5 = arith.constant 0.000000e+00 : f32
    %6 = vector.broadcast %cst_5 : f32 to vector<8x2048xf32>
    %7 = arith.maximumf %5, %6 : vector<8x2048xf32>
    %c0_6 = arith.constant 0 : index
    %c0_7 = arith.constant 0 : index
    %8 = vector.load %arg4[%c0_6, %c0_7] : memref<2048x128xf32, #tpu.memory_space<vmem>>, vector<2048x128xf32>
    %cst_8 = arith.constant dense<0.000000e+00> : vector<8x128xf32>
    %9 = tpu.matmul %7, %8, %cst_8 {dimension_numbers = #tpu.dot_dimension_numbers<[1], [0], [0], [1], [0, 0, 1, 1], [], []>} : vector<8x2048xf32>, vector<2048x128xf32>, vector<8x128xf32> -> vector<8x128xf32>
    %c0_9 = arith.constant 0 : index
    %c0_10 = arith.constant 0 : index
    %10 = vector.load %arg5[%c0_9, %c0_10] : memref<1x128xf32, #tpu.memory_space<vmem>>, vector<1x128xf32>
    %11 = vector.broadcast %10 : vector<1x128xf32> to vector<8x128xf32>
    %12 = arith.addf %9, %11 : vector<8x128xf32>
    %c0_11 = arith.constant 0 : index
    %c0_12 = arith.constant 0 : index
    %13 = vector.load %arg6[%c0_11, %c0_12] : memref<8x128xf32, #tpu.memory_space<vmem>>, vector<8x128xf32>
    tpu.vector_store %arg6[%c0_11, %c0_12], %12 {strides = array<i32>} : memref<8x128xf32, #tpu.memory_space<vmem>>, vector<8x128xf32>,
    return
  }
  func.func @transform_0(%arg0: i32) -> (i32, i32) {
    %c0_i32 = arith.constant 0 : i32
    %c0_i32_0 = arith.constant 0 : i32
    return %arg0, %c0_i32 : i32, i32
  }
  func.func @transform_1(%arg0: i32) -> (i32, i32) {
    %c0_i32 = arith.constant 0 : i32
    %c0_i32_0 = arith.constant 0 : i32
    %c0_i32_1 = arith.constant 0 : i32
    return %c0_i32, %c0_i32_0 : i32, i32
  }
  func.func @transform_2(%arg0: i32) -> (i32, i32) {
    %c0_i32 = arith.constant 0 : i32
    %c0_i32_0 = arith.constant 0 : i32
    %c0_i32_1 = arith.constant 0 : i32
    return %c0_i32, %c0_i32_0 : i32, i32
  }
  func.func @transform_3(%arg0: i32) -> (i32, i32) {
    %c0_i32 = arith.constant 0 : i32
    %c0_i32_0 = arith.constant 0 : i32
    %c0_i32_1 = arith.constant 0 : i32
    return %c0_i32, %c0_i32_0 : i32, i32
  }
  func.func @transform_4(%arg0: i32) -> (i32, i32) {
    %c0_i32 = arith.constant 0 : i32
    %c0_i32_0 = arith.constant 0 : i32
    %c0_i32_1 = arith.constant 0 : i32
    return %c0_i32, %c0_i32_0 : i32, i32
  }
  func.func @transform_5(%arg0: i32) -> (i32, i32) {
    %c0_i32 = arith.constant 0 : i32
    %c0_i32_0 = arith.constant 0 : i32
    return %arg0, %c0_i32 : i32, i32
  }
}

</mosaic_0001>

<llo_original>
// kernel: tpu_custom_call.1
$region0: #{tpu_custom_call.1}
  #allocation0 [shape = 'u32[]', space=smem, size = 0x4, offset = 0x4, fixed_abs, tag = 'smem constant byte address 0x4 - core index']
  #allocation1 [shape = 'u32[144,128]{1,0:T(1,128)}', space=vmem, size = 0x12000, scoped, tag = 'internal scratch']
  %s0 = inlined_call_operand.hbm [shape: f32[16,32], index: 0, kind: input, shape index: {}]
  %s1 = inlined_call_operand.hbm [shape: f32[32,2048], index: 1, kind: input, shape index: {}]
  %s2 = inlined_call_operand.hbm [shape: f32[1,2048], index: 2, kind: input, shape index: {}]
  %s3 = inlined_call_operand.hbm [shape: f32[2048,128], index: 3, kind: input, shape index: {}]
  %s4 = inlined_call_operand.vmem [shape: f32[1,128], index: 4, kind: input, shape index: {}]
  %s5 = inlined_call_operand.hbm [shape: f32[16,128], index: 5, kind: output, shape index: {}]
  %s6 = sld [smem:[#allocation0]]
  $region69: #{tpu_custom_call.1} parent=0
    _
  %s8 = ssub.s32 1, %s6
  %s9 = scalar_select 0, %s8, %s6
  $region1: #{tpu_custom_call.1} parent=0
    #allocation2 [shape = 'u8[8192]{0}', space=vmem, size = 0x2000, scoped, tag = 'input window, operand 0']
    #allocation3 [shape = 's32[2]{0}', space=sflag, size = 0x8, scoped, tag = 'scoped memory for tpu_custom_call.1']
    #allocation4 [shape = 's32[2]{0}', space=sflag, size = 0x8, scoped, tag = 'scoped memory for tpu_custom_call.1']
    #allocation5 [shape = 'u8[262144]{0}', space=vmem, size = 0x40000, scoped, tag = 'input window, operand 1, single buffered']
    #allocation6 [shape = 's32[1]{0}', space=sflag, size = 0x4, scoped, tag = 'scoped memory for tpu_custom_call.1']
    #allocation7 [shape = 'u8[8192]{0}', space=vmem, size = 0x2000, scoped, tag = 'input window, operand 2, single buffered']
    #allocation8 [shape = 'u8[1048576]{0}', space=vmem, size = 0x100000, scoped, tag = 'input window, operand 3, single buffered']
    #allocation9 [shape = 's32[1]{0}', space=sflag, size = 0x4, scoped, tag = 'scoped memory for tpu_custom_call.1']
    #allocation10 [shape = 'u8[8192]{0}', space=vmem, size = 0x2000, scoped, tag = 'output window, operand 0']
    %10 = vsyncpa [#allocation3], 0
    %s11 = scalar_lea.sflag [#allocation3], 1
    %12 = vsyncpa %s11, 0
    %13 = vsyncpa [#allocation6], 0
    %14 = vsyncpa [#allocation9], 0
    %15 = vsyncpa [#allocation4], 0
    %s16 = scalar_lea.sflag [#allocation4], 1
    %17 = vsyncpa %s16, 0
    loop: start=0, step=1, limit=4
    $region2: #{tpu_custom_call.1} parent=1 // loop_pre_header
      _
    $region3: #{tpu_custom_call.1} parent=1 // loop_header
      %s19 = sphi 0, %s23
      %p20 = scmp.ge.s32.totalorder %s19, 4
      %s29 = sphi 0, %s31
      %s32 = sphi 0, %s29
      %s33 = sphi 0, %s32
      %s49 = sphi 0, %s33
      %s53 = sphi 0, %s53
      %s55 = sphi 0, %s53
      %s56 = sphi 0, %s55
      %s70 = sphi 0, %s56
      %s74 = sphi 0, %s74
      %s76 = sphi 0, %s74
      %s77 = sphi 0, %s76
      %s91 = sphi 0, %s77
      %s95 = sphi 0, %s95
      %s97 = sphi 0, %s95
      %s98 = sphi 0, %s97
      %s112 = sphi 0, %s98
      %s116 = sphi 0, %s116
      %s118 = sphi 0, %s116
      %s119 = sphi 0, %s118
      %s133 = sphi 0, %s119
      %s139 = sphi 0, %s141
      %s142 = sphi 0, %s139
      %s143 = sphi 0, %s142
      %s159 = sphi 0, %s143
    $region4: #{tpu_custom_call.1} parent=1 // loop_header_branch
      %22 = sbr.rel (%p20) target = $region8
    $region5: #{tpu_custom_call.1} parent=1 // loop_body
      %s24 = ssub.s32 %s19, 1
      %s25 = ssub.s32 %s19, 2
      %s26 = sadd.s32 %s19, 1
      %s27 = ssub.s32 %s19, %s26
      %p28 = scmp.eq.s32.totalorder %s27, 0
      %s30 = sadd.s32 %s29, 1
      %s31 = scalar_select %p28, %s29, %s30
      %p34 = pneg %p28
      %p35 = scmp.eq.s32.totalorder %s19, 1
      %p36 = por %p34, %p35
      %p37 = scmp.ne.s32.totalorder %s29, %s32
      %p38 = scmp.eq.s32.totalorder %s19, 0
      %p39 = por %p37, %p38
      %p40 = scmp.ne.s32.totalorder %s29, %s32
      %p41 = scmp.eq.s32.totalorder %s24, 1
      %p42 = por %p40, %p41
      %p43 = scmp.ne.s32.totalorder %s32, %s33
      %p44 = scmp.eq.s32.totalorder %s24, 0
      %p45 = por %p43, %p44
      %p46 = scmp.ne.s32.totalorder %s32, %s33
      %p47 = scmp.eq.s32.totalorder %s25, 1
      %p48 = por %p46, %p47
      %p50 = scmp.ne.s32.totalorder %s33, %s49
      %p51 = scmp.eq.s32.totalorder %s25, 0
      %p52 = por %p50, %p51
      %s54 = sadd.s32 %s53, 1
      %p57 = scmp.eq.s32.totalorder %s19, 1
      %p58 = scmp.ne.s32.totalorder %s53, %s55
      %p59 = scmp.eq.s32.totalorder %s19, 0
      %p60 = por %p58, %p59
      %p61 = scmp.ne.s32.totalorder %s53, %s55
      %p62 = scmp.eq.s32.totalorder %s24, 1
      %p63 = por %p61, %p62
      %p64 = scmp.ne.s32.totalorder %s55, %s56
      %p65 = scmp.eq.s32.totalorder %s24, 0
      %p66 = por %p64, %p65
      %p67 = scmp.ne.s32.totalorder %s55, %s56
      %p68 = scmp.eq.s32.totalorder %s25, 1
      %p69 = por %p67, %p68
      %p71 = scmp.ne.s32.totalorder %s56, %s70
      %p72 = scmp.eq.s32.totalorder %s25, 0
      %p73 = por %p71, %p72
      %s75 = sadd.s32 %s74, 1
      %p78 = scmp.eq.s32.totalorder %s19, 1
      %p79 = scmp.ne.s32.totalorder %s74, %s76
      %p80 = scmp.eq.s32.totalorder %s19, 0
      %p81 = por %p79, %p80
      %p82 = scmp.ne.s32.totalorder %s74, %s76
      %p83 = scmp.eq.s32.totalorder %s24, 1
      %p84 = por %p82, %p83
      %p85 = scmp.ne.s32.totalorder %s76, %s77
      %p86 = scmp.eq.s32.totalorder %s24, 0
      %p87 = por %p85, %p86
      %p88 = scmp.ne.s32.totalorder %s76, %s77
      %p89 = scmp.eq.s32.totalorder %s25, 1
      %p90 = por %p88, %p89
      %p92 = scmp.ne.s32.totalorder %s77, %s91
      %p93 = scmp.eq.s32.totalorder %s25, 0
      %p94 = por %p92, %p93
      %s96 = sadd.s32 %s95, 1
      %p99 = scmp.eq.s32.totalorder %s19, 1
      %p100 = scmp.ne.s32.totalorder %s95, %s97
      %p101 = scmp.eq.s32.totalorder %s19, 0
      %p102 = por %p100, %p101
      %p103 = scmp.ne.s32.totalorder %s95, %s97
      %p104 = scmp.eq.s32.totalorder %s24, 1
      %p105 = por %p103, %p104
      %p106 = scmp.ne.s32.totalorder %s97, %s98
      %p107 = scmp.eq.s32.totalorder %s24, 0
      %p108 = por %p106, %p107
      %p109 = scmp.ne.s32.totalorder %s97, %s98
      %p110 = scmp.eq.s32.totalorder %s25, 1
      %p111 = por %p109, %p110
      %p113 = scmp.ne.s32.totalorder %s98, %s112
      %p114 = scmp.eq.s32.totalorder %s25, 0
      %p115 = por %p113, %p114
      %s117 = sadd.s32 %s116, 1
      %p120 = scmp.eq.s32.totalorder %s19, 1
      %p121 = scmp.ne.s32.totalorder %s116, %s118
      %p122 = scmp.eq.s32.totalorder %s19, 0
      %p123 = por %p121, %p122
      %p124 = scmp.ne.s32.totalorder %s116, %s118
      %p125 = scmp.eq.s32.totalorder %s24, 1
      %p126 = por %p124, %p125
      %p127 = scmp.ne.s32.totalorder %s118, %s119
      %p128 = scmp.eq.s32.totalorder %s24, 0
      %p129 = por %p127, %p128
      %p130 = scmp.ne.s32.totalorder %s118, %s119
      %p131 = scmp.eq.s32.totalorder %s25, 1
      %p132 = por %p130, %p131
      %p134 = scmp.ne.s32.totalorder %s119, %s133
      %p135 = scmp.eq.s32.totalorder %s25, 0
      %p136 = por %p134, %p135
      %s137 = ssub.s32 %s19, %s26
      %p138 = scmp.eq.s32.totalorder %s137, 0
      %s140 = sadd.s32 %s139, 1
      %s141 = scalar_select %p138, %s139, %s140
      %p144 = pneg %p138
      %p145 = scmp.eq.s32.totalorder %s19, 1
      %p146 = por %p144, %p145
      %p147 = scmp.ne.s32.totalorder %s139, %s142
      %p148 = scmp.eq.s32.totalorder %s19, 0
      %p149 = por %p147, %p148
      %p150 = scmp.ne.s32.totalorder %s139, %s142
      %p151 = scmp.eq.s32.totalorder %s24, 1
      %p152 = por %p150, %p151
      %p153 = scmp.ne.s32.totalorder %s142, %s143
      %p154 = scmp.eq.s32.totalorder %s24, 0
      %p155 = por %p153, %p154
      %p156 = scmp.ne.s32.totalorder %s142, %s143
      %p157 = scmp.eq.s32.totalorder %s25, 1
      %p158 = por %p156, %p157
      %p160 = scmp.ne.s32.totalorder %s143, %s159
      %p161 = scmp.eq.s32.totalorder %s25, 0
      %p162 = por %p160, %p161
      %p163 = scmp.le.s32.totalorder 1, %s19
      %p164 = scmp.lt.s32.totalorder %s19, 3
      %p165 = pnand %p163, %p164
      %p166 = pneg %p165
      // Predicated region
      $region9: #{tpu_custom_call.1} parent=5 // pred_check
        _
      $region10: #{tpu_custom_call.1} parent=5 // pred_check_branch
        %168 = sbr.rel (%p165) target = $region12
      $region11: #{tpu_custom_call.1} parent=5 // pred_region
        %s169 = ssub.s32 %s19, 1
        // Predicated region
        $region13: #{tpu_custom_call.1} parent=11 // pred_check
          %p170 = pneg %p66
        $region14: #{tpu_custom_call.1} parent=11 // pred_check_branch
          %172 = sbr.rel (%p170) target = $region16
        $region15: #{tpu_custom_call.1} parent=11 // pred_region
          %s174 = ssub.s32 8192, 8192
          %175 = vsyncadd [#allocation6], %s174
          %s176 = sshll.u32 [#allocation5], 4
          %s177 = int_to_ptr.vmem [resolvable:$true] %s176
          %182 = dma.hbm_to_vmem [thread:$0]  %s1, 8192, %s177, [#allocation6], 2048, 2048, 128
        $region16: #{tpu_custom_call.1} parent=11 // pred_fallthru
          _
        // Predicated region
        $region17: #{tpu_custom_call.1} parent=11 // pred_check
          %p183 = pneg %p87
        $region18: #{tpu_custom_call.1} parent=11 // pred_check_branch
          %185 = sbr.rel (%p183) target = $region20
        $region19: #{tpu_custom_call.1} parent=11 // pred_region
          %s187 = ssub.s32 256, 256
          %188 = vsyncadd [#allocation6], %s187
          %s190 = sshll.u32 [#allocation7], 4
          %s191 = int_to_ptr.vmem [resolvable:$true] %s190
          %193 = dma.hbm_to_vmem [thread:$0]  %s2, 256, %s191, [#allocation6]
        $region20: #{tpu_custom_call.1} parent=11 // pred_fallthru
          _
        // Predicated region
        $region21: #{tpu_custom_call.1} parent=11 // pred_check
          %p194 = pneg %p108
        $region22: #{tpu_custom_call.1} parent=11 // pred_check_branch
          %196 = sbr.rel (%p194) target = $region24
        $region23: #{tpu_custom_call.1} parent=11 // pred_region
          %s198 = ssub.s32 32768, 32768
          %199 = vsyncadd [#allocation9], %s198
          %s200 = sshll.u32 [#allocation8], 4
          %s201 = int_to_ptr.vmem [resolvable:$true] %s200
          %206 = dma.hbm_to_vmem [thread:$0]  %s3, 32768, %s201, [#allocation9], 128, 128, 8
        $region24: #{tpu_custom_call.1} parent=11 // pred_fallthru
          _
        // Predicated region
        $region25: #{tpu_custom_call.1} parent=11 // pred_check
          %p207 = pneg %p129
        $region26: #{tpu_custom_call.1} parent=11 // pred_check_branch
          %209 = sbr.rel (%p207) target = $region28
        $region27: #{tpu_custom_call.1} parent=11 // pred_region
          _
        $region28: #{tpu_custom_call.1} parent=11 // pred_fallthru
          _
      $region12: #{tpu_custom_call.1} parent=5 // pred_fallthru
        _
      %p210 = scmp.lt.s32.totalorder %s19, 2
      // Predicated region
      $region29: #{tpu_custom_call.1} parent=5 // pred_check
        %p211 = pneg %p210
      $region30: #{tpu_custom_call.1} parent=5 // pred_check_branch
        %213 = sbr.rel (%p211) target = $region32
      $region31: #{tpu_custom_call.1} parent=5 // pred_region
        // Predicated region
        $region33: #{tpu_custom_call.1} parent=31 // pred_check
          %p214 = pneg %p39
        $region34: #{tpu_custom_call.1} parent=31 // pred_check_branch
          %216 = sbr.rel (%p214) target = $region36
        $region35: #{tpu_custom_call.1} parent=31 // pred_region
          %s217 = sand.u32 %s29, 1
          %s218 = scalar_lea.sflag [#allocation3], %s217
          %s219 = sand.u32 %s29, 1
          %s220 = smul.addr %s219, 8
          %s221 = scalar_lea.vmem [#allocation2], %s220
          %s223 = ssub.s32 128, 128
          %224 = vsyncadd %s218, %s223
          %s225 = smul.addr %s19, 128
          %s226 = scalar_lea.hbm %s0, %s225
          %s228 = sshll.u32 %s221, 4
          %s229 = int_to_ptr.vmem [resolvable:$true] %s228
          %231 = dma.hbm_to_vmem [thread:$0]  %s226, 128, %s229, %s218
        $region36: #{tpu_custom_call.1} parent=31 // pred_fallthru
          _
      $region32: #{tpu_custom_call.1} parent=5 // pred_fallthru
        _
      %p232 = scmp.le.s32.totalorder 1, %s19
      %p233 = scmp.lt.s32.totalorder %s19, 3
      %p234 = pnand %p232, %p233
      %p235 = pneg %p234
      // Predicated region
      $region37: #{tpu_custom_call.1} parent=5 // pred_check
        _
      $region38: #{tpu_custom_call.1} parent=5 // pred_check_branch
        %237 = sbr.rel (%p234) target = $region40
      $region39: #{tpu_custom_call.1} parent=5 // pred_region
        %s238 = ssub.s32 %s19, 1
        %s239 = sand.u32 %s32, 1
        %s240 = scalar_lea.sflag [#allocation3], %s239
        %s241 = sand.u32 %s32, 1
        %s242 = smul.addr %s241, 8
        %s243 = scalar_lea.vmem [#allocation2], %s242
        // Predicated region
        $region41: #{tpu_custom_call.1} parent=39 // pred_check
          %p244 = pneg %p45
        $region42: #{tpu_custom_call.1} parent=39 // pred_check_branch
          %246 = sbr.rel (%p244) target = $region44
        $region43: #{tpu_custom_call.1} parent=39 // pred_region
          %247 = dma.done %s240, 128
        $region44: #{tpu_custom_call.1} parent=39 // pred_fallthru
          _
        // Predicated region
        $region45: #{tpu_custom_call.1} parent=39 // pred_check
          %p248 = pneg %p66
        $region46: #{tpu_custom_call.1} parent=39 // pred_check_branch
          %250 = sbr.rel (%p248) target = $region48
        $region47: #{tpu_custom_call.1} parent=39 // pred_region
          %251 = dma.done [#allocation6], 8192
        $region48: #{tpu_custom_call.1} parent=39 // pred_fallthru
          _
        // Predicated region
        $region49: #{tpu_custom_call.1} parent=39 // pred_check
          %p252 = pneg %p87
        $region50: #{tpu_custom_call.1} parent=39 // pred_check_branch
          %254 = sbr.rel (%p252) target = $region52
        $region51: #{tpu_custom_call.1} parent=39 // pred_region
          %255 = dma.done [#allocation6], 256
        $region52: #{tpu_custom_call.1} parent=39 // pred_fallthru
          _
        // Predicated region
        $region53: #{tpu_custom_call.1} parent=39 // pred_check
          %p256 = pneg %p108
        $region54: #{tpu_custom_call.1} parent=39 // pred_check_branch
          %258 = sbr.rel (%p256) target = $region56
        $region55: #{tpu_custom_call.1} parent=39 // pred_region
          %259 = dma.done [#allocation9], 32768
        $region56: #{tpu_custom_call.1} parent=39 // pred_fallthru
          _
        %s260 = sand.u32 %s32, 1
        %s261 = scalar_lea.sflag [#allocation3], %s260
        %s262 = sand.u32 %s32, 1
        %s263 = smul.addr %s262, 8
        %s264 = scalar_lea.vmem [#allocation2], %s263
        %p265 = pneg %p45
        %p266 = pneg %p42
        %p267 = pneg %p66
        %p268 = pneg %p63
        %p269 = pneg %p87
        %p270 = pneg %p84
        %p271 = pneg %p108
        %p272 = pneg %p105
        %p273 = pneg %p129
        %p274 = pneg %p126
        %p275 = pneg %p155
        %p276 = pneg %p152
        %s277 = sand.u32 %s142, 1
        %s278 = scalar_lea.sflag [#allocation4], %s277
        %s279 = sand.u32 %s142, 1
        %s280 = smul.addr %s279, 8
        %s281 = scalar_lea.vmem [#allocation10], %s280
        %v282 = vld [vmem:[%s243] sm:$0xff]
        %v283 = vld [vmem:[#allocation5] sm:$0xff]
        %v284 = vld [vmem:[#allocation5 + $0x8] sm:$0xff]
        %v285 = vld [vmem:[#allocation5 + $0x10] sm:$0xff]
        %v286 = vld [vmem:[#allocation5 + $0x18] sm:$0xff]
        %v287 = vld [vmem:[#allocation5 + $0x20] sm:$0xff]
        %v288 = vld [vmem:[#allocation5 + $0x28] sm:$0xff]
        %v289 = vld [vmem:[#allocation5 + $0x30] sm:$0xff]
        %v290 = vld [vmem:[#allocation5 + $0x38] sm:$0xff]
        %v291 = vld [vmem:[#allocation5 + $0x40] sm:$0xff]
        %v292 = vld [vmem:[#allocation5 + $0x48] sm:$0xff]
        %v293 = vld [vmem:[#allocation5 + $0x50] sm:$0xff]
        %v294 = vld [vmem:[#allocation5 + $0x58] sm:$0xff]
        %v295 = vld [vmem:[#allocation5 + $0x60] sm:$0xff]
        %v296 = vld [vmem:[#allocation5 + $0x68] sm:$0xff]
        %v297 = vld [vmem:[#allocation5 + $0x70] sm:$0xff]
        %v298 = vld [vmem:[#allocation5 + $0x78] sm:$0xff]
        %v299 = vld [vmem:[#allocation5 + $0x80] sm:$0xff]
        %v300 = vld [vmem:[#allocation5 + $0x88] sm:$0xff]
        %v301 = vld [vmem:[#allocation5 + $0x90] sm:$0xff]
        %v302 = vld [vmem:[#allocation5 + $0x98] sm:$0xff]
        %v303 = vld [vmem:[#allocation5 + $0xa0] sm:$0xff]
        %v304 = vld [vmem:[#allocation5 + $0xa8] sm:$0xff]
        %v305 = vld [vmem:[#allocation5 + $0xb0] sm:$0xff]
        %v306 = vld [vmem:[#allocation5 + $0xb8] sm:$0xff]
        %v307 = vld [vmem:[#allocation5 + $0xc0] sm:$0xff]
        %v308 = vld [vmem:[#allocation5 + $0xc8] sm:$0xff]
        %v309 = vld [vmem:[#allocation5 + $0xd0] sm:$0xff]
        %v310 = vld [vmem:[#allocation5 + $0xd8] sm:$0xff]
        %v311 = vld [vmem:[#allocation5 + $0xe0] sm:$0xff]
        %v312 = vld [vmem:[#allocation5 + $0xe8] sm:$0xff]
        %v313 = vld [vmem:[#allocation5 + $0xf0] sm:$0xff]
        %v314 = vld [vmem:[#allocation5 + $0xf8] sm:$0xff]
        %v315 = vld [vmem:[#allocation5 + $0x100] sm:$0xff]
        %v316 = vld [vmem:[#allocation5 + $0x108] sm:$0xff]
        %v317 = vld [vmem:[#allocation5 + $0x110] sm:$0xff]
        %v318 = vld [vmem:[#allocation5 + $0x118] sm:$0xff]
        %v319 = vld [vmem:[#allocation5 + $0x120] sm:$0xff]
        %v320 = vld [vmem:[#allocation5 + $0x128] sm:$0xff]
        %v321 = vld [vmem:[#allocation5 + $0x130] sm:$0xff]
        %v322 = vld [vmem:[#allocation5 + $0x138] sm:$0xff]
        %v323 = vld [vmem:[#allocation5 + $0x140] sm:$0xff]
        %v324 = vld [vmem:[#allocation5 + $0x148] sm:$0xff]
        %v325 = vld [vmem:[#allocation5 + $0x150] sm:$0xff]
        %v326 = vld [vmem:[#allocation5 + $0x158] sm:$0xff]
        %v327 = vld [vmem:[#allocation5 + $0x160] sm:$0xff]
        %v328 = vld [vmem:[#allocation5 + $0x168] sm:$0xff]
        %v329 = vld [vmem:[#allocation5 + $0x170] sm:$0xff]
        %v330 = vld [vmem:[#allocation5 + $0x178] sm:$0xff]
        %v331 = vld [vmem:[#allocation5 + $0x180] sm:$0xff]
        %v332 = vld [vmem:[#allocation5 + $0x188] sm:$0xff]
        %v333 = vld [vmem:[#allocation5 + $0x190] sm:$0xff]
        %v334 = vld [vmem:[#allocation5 + $0x198] sm:$0xff]
        %v335 = vld [vmem:[#allocation5 + $0x1a0] sm:$0xff]
        %v336 = vld [vmem:[#allocation5 + $0x1a8] sm:$0xff]
        %v337 = vld [vmem:[#allocation5 + $0x1b0] sm:$0xff]
        %v338 = vld [vmem:[#allocation5 + $0x1b8] sm:$0xff]
        %v339 = vld [vmem:[#allocation5 + $0x1c0] sm:$0xff]
        %v340 = vld [vmem:[#allocation5 + $0x1c8] sm:$0xff]
        %v341 = vld [vmem:[#allocation5 + $0x1d0] sm:$0xff]
        %v342 = vld [vmem:[#allocation5 + $0x1d8] sm:$0xff]
        %v343 = vld [vmem:[#allocation5 + $0x1e0] sm:$0xff]
        %v344 = vld [vmem:[#allocation5 + $0x1e8] sm:$0xff]
        %v345 = vld [vmem:[#allocation5 + $0x1f0] sm:$0xff]
        %v346 = vld [vmem:[#allocation5 + $0x1f8] sm:$0xff]
        %v347 = vld [vmem:[#allocation7] sm:$0xff]
        %v348 = vld [vmem:[#allocation7 + $0x8] sm:$0xff]
        %v351 = vlaneseq
        %v352 = vshrl.u32 %v351, 7
        %v353 = vsub.s32 0, %v352
        %v354 = vrot.slane %v347, %v353
        %v355 = vlaneseq
        %v356 = vshrl.u32 %v355, 7
        %v357 = vsub.s32 1, %v356
        %v358 = vrot.slane %v347, %v357
        %v359 = vlaneseq
        %v360 = vshrl.u32 %v359, 7
        %v361 = vsub.s32 2, %v360
        %v362 = vrot.slane %v347, %v361
        %v363 = vlaneseq
        %v364 = vshrl.u32 %v363, 7
        %v365 = vsub.s32 3, %v364
        %v366 = vrot.slane %v347, %v365
        %v367 = vlaneseq
        %v368 = vshrl.u32 %v367, 7
        %v369 = vsub.s32 4, %v368
        %v370 = vrot.slane %v347, %v369
        %v371 = vlaneseq
        %v372 = vshrl.u32 %v371, 7
        %v373 = vsub.s32 5, %v372
        %v374 = vrot.slane %v347, %v373
        %v375 = vlaneseq
        %v376 = vshrl.u32 %v375, 7
        %v377 = vsub.s32 6, %v376
        %v378 = vrot.slane %v347, %v377
        %v379 = vlaneseq
        %v380 = vshrl.u32 %v379, 7
        %v381 = vsub.s32 7, %v380
        %v382 = vrot.slane %v347, %v381
        %v383 = vlaneseq
        %v384 = vshrl.u32 %v383, 7
        %v385 = vsub.s32 0, %v384
        %v386 = vrot.slane %v348, %v385
        %v387 = vlaneseq
        %v388 = vshrl.u32 %v387, 7
        %v389 = vsub.s32 1, %v388
        %v390 = vrot.slane %v348, %v389
        %v391 = vlaneseq
        %v392 = vshrl.u32 %v391, 7
        %v393 = vsub.s32 2, %v392
        %v394 = vrot.slane %v348, %v393
        %v395 = vlaneseq
        %v396 = vshrl.u32 %v395, 7
        %v397 = vsub.s32 3, %v396
        %v398 = vrot.slane %v348, %v397
        %v399 = vlaneseq
        %v400 = vshrl.u32 %v399, 7
        %v401 = vsub.s32 4, %v400
        %v402 = vrot.slane %v348, %v401
        %v403 = vlaneseq
        %v404 = vshrl.u32 %v403, 7
        %v405 = vsub.s32 5, %v404
        %v406 = vrot.slane %v348, %v405
        %v407 = vlaneseq
        %v408 = vshrl.u32 %v407, 7
        %v409 = vsub.s32 6, %v408
        %v410 = vrot.slane %v348, %v409
        %v411 = vlaneseq
        %v412 = vshrl.u32 %v411, 7
        %v413 = vsub.s32 7, %v412
        %v414 = vrot.slane %v348, %v413
        %vm431 = vcmask 261120
        %v433 = vsel %vm431, %v282, 0
        %435 = vmatprep.subr.mxu0 %v284
        %436 = vmatpush1.msra.mxu0 %v283
        %437 = vmatprep.subr.mxu0 %v300
        %438 = vmatpush1.msra.mxu0 %v299
        %439 = vmatprep.subr.mxu0 %v316
        %440 = vmatpush1.msra.mxu0 %v315
        %441 = vmatprep.subr.mxu0 %v332
        %442 = vmatpush1.msra.mxu0 %v331
        %443 = vmatprep.subr.mxu0 0.0
        %444 = vmatpush1.msra.mxu0 0.0
        %445 = vmatprep.subr.mxu0 0.0
        %446 = vmatpush1.msra.mxu0 0.0
        %447 = vmatprep.subr.mxu0 0.0
        %448 = vmatpush1.msra.mxu0 0.0
        %449 = vmatprep.subr.mxu0 0.0
        %450 = vmatpush1.msra.mxu0 0.0
        %451 = vmatprep.subr.mxu0 0.0
        %452 = vmatpush1.msra.mxu0 0.0
        %453 = vmatprep.subr.mxu0 0.0
        %454 = vmatpush1.msra.mxu0 0.0
        %455 = vmatprep.subr.mxu0 0.0
        %456 = vmatpush1.msra.mxu0 0.0
        %457 = vmatprep.subr.mxu0 0.0
        %458 = vmatpush1.msra.mxu0 0.0
        %459 = vmatprep.subr.mxu0 0.0
        %460 = vmatpush1.msra.mxu0 0.0
        %461 = vmatprep.subr.mxu0 0.0
        %462 = vmatpush1.msra.mxu0 0.0
        %463 = vmatprep.subr.mxu0 0.0
        %464 = vmatpush1.msra.mxu0 0.0
        %465 = vmatprep.subr.mxu0 0.0
        %466 = vmatpush1.msra.mxu0 0.0
        %467 = vmatprep.subr.mxu0 0.0
        %468 = vmatpush1.msra.mxu0 0.0
        %469 = vmatprep.subr.mxu0 0.0
        %470 = vmatpush1.msra.mxu0 0.0
        %471 = vmatprep.subr.mxu0 0.0
        %472 = vmatpush1.msra.mxu0 0.0
        %473 = vmatprep.subr.mxu0 0.0
        %474 = vmatpush1.msra.mxu0 0.0
        %475 = vmatprep.subr.mxu0 0.0
        %476 = vmatpush1.msra.mxu0 0.0
        %477 = vmatprep.subr.mxu0 0.0
        %478 = vmatpush1.msra.mxu0 0.0
        %479 = vmatprep.subr.mxu0 0.0
        %480 = vmatpush1.msra.mxu0 0.0
        %481 = vmatprep.subr.mxu0 0.0
        %482 = vmatpush1.msra.mxu0 0.0
        %483 = vmatprep.subr.mxu0 0.0
        %484 = vmatpush1.msra.mxu0 0.0
        %485 = vmatprep.subr.mxu0 0.0
        %486 = vmatpush1.msra.mxu0 0.0
        %487 = vmatprep.subr.mxu0 0.0
        %488 = vmatpush1.msra.mxu0 0.0
        %489 = vmatprep.subr.mxu0 0.0
        %490 = vmatpush1.msra.mxu0 0.0
        %491 = vmatprep.subr.mxu0 0.0
        %492 = vmatpush1.msra.mxu0 0.0
        %493 = vmatprep.subr.mxu0 0.0
        %494 = vmatpush1.msra.mxu0 0.0
        %495 = vmatprep.subr.mxu0 0.0
        %496 = vmatpush1.msra.mxu0 0.0
        %497 = vmatprep.subr.mxu0 0.0
        %498 = vmatpush1.msra.mxu0 0.0
        %499 = vmatprep.mubr.f32.mxu0 0.0
        %500 = vmatmul.mubr.f32.gmra.mrb[0].mxu0 %v433
        %v501 = vpop.f32.mrb[0].mxu0
        %v502 = vadd.f32 %v354, %v501
        %v503 = vpop.f32.mrb[0].mxu0
        %v504 = vadd.f32 %v358, %v503
        %505 = vdwg.mxu0
        %506 = vmatprep.subr.mxu0 %v286
        %507 = vmatpush1.msra.mxu0 %v285
        %508 = vmatprep.subr.mxu0 %v302
        %509 = vmatpush1.msra.mxu0 %v301
        %510 = vmatprep.subr.mxu0 %v318
        %511 = vmatpush1.msra.mxu0 %v317
        %512 = vmatprep.subr.mxu0 %v334
        %513 = vmatpush1.msra.mxu0 %v333
        %514 = vmatprep.subr.mxu0 0.0
        %515 = vmatpush1.msra.mxu0 0.0
        %516 = vmatprep.subr.mxu0 0.0
        %517 = vmatpush1.msra.mxu0 0.0
        %518 = vmatprep.subr.mxu0 0.0
        %519 = vmatpush1.msra.mxu0 0.0
        %520 = vmatprep.subr.mxu0 0.0
        %521 = vmatpush1.msra.mxu0 0.0
        %522 = vmatprep.subr.mxu0 0.0
        %523 = vmatpush1.msra.mxu0 0.0
        %524 = vmatprep.subr.mxu0 0.0
        %525 = vmatpush1.msra.mxu0 0.0
        %526 = vmatprep.subr.mxu0 0.0
        %527 = vmatpush1.msra.mxu0 0.0
        %528 = vmatprep.subr.mxu0 0.0
        %529 = vmatpush1.msra.mxu0 0.0
        %530 = vmatprep.subr.mxu0 0.0
        %531 = vmatpush1.msra.mxu0 0.0
        %532 = vmatprep.subr.mxu0 0.0
        %533 = vmatpush1.msra.mxu0 0.0
        %534 = vmatprep.subr.mxu0 0.0
        %535 = vmatpush1.msra.mxu0 0.0
        %536 = vmatprep.subr.mxu0 0.0
        %537 = vmatpush1.msra.mxu0 0.0
        %538 = vmatprep.subr.mxu0 0.0
        %539 = vmatpush1.msra.mxu0 0.0
        %540 = vmatprep.subr.mxu0 0.0
        %541 = vmatpush1.msra.mxu0 0.0
        %542 = vmatprep.subr.mxu0 0.0
        %543 = vmatpush1.msra.mxu0 0.0
        %544 = vmatprep.subr.mxu0 0.0
        %545 = vmatpush1.msra.mxu0 0.0
        %546 = vmatprep.subr.mxu0 0.0
        %547 = vmatpush1.msra.mxu0 0.0
        %548 = vmatprep.subr.mxu0 0.0
        %549 = vmatpush1.msra.mxu0 0.0
        %550 = vmatprep.subr.mxu0 0.0
        %551 = vmatpush1.msra.mxu0 0.0
        %552 = vmatprep.subr.mxu0 0.0
        %553 = vmatpush1.msra.mxu0 0.0
        %554 = vmatprep.subr.mxu0 0.0
        %555 = vmatpush1.msra.mxu0 0.0
        %556 = vmatprep.subr.mxu0 0.0
        %557 = vmatpush1.msra.mxu0 0.0
        %558 = vmatprep.subr.mxu0 0.0
        %559 = vmatpush1.msra.mxu0 0.0
        %560 = vmatprep.subr.mxu0 0.0
        %561 = vmatpush1.msra.mxu0 0.0
        %562 = vmatprep.subr.mxu0 0.0
        %563 = vmatpush1.msra.mxu0 0.0
        %564 = vmatprep.subr.mxu0 0.0
        %565 = vmatpush1.msra.mxu0 0.0
        %566 = vmatprep.subr.mxu0 0.0
        %567 = vmatpush1.msra.mxu0 0.0
        %568 = vmatprep.subr.mxu0 0.0
        %569 = vmatpush1.msra.mxu0 0.0
        %570 = vmatprep.mubr.f32.mxu0 0.0
        %571 = vmatmul.mubr.f32.gmra.mrb[0].mxu0 %v433
        %v572 = vpop.f32.mrb[0].mxu0
        %v573 = vadd.f32 %v362, %v572
        %v574 = vpop.f32.mrb[0].mxu0
        %v575 = vadd.f32 %v366, %v574
        %576 = vdwg.mxu0
        %577 = vmatprep.subr.mxu0 %v288
        %578 = vmatpush1.msra.mxu0 %v287
        %579 = vmatprep.subr.mxu0 %v304
        %580 = vmatpush1.msra.mxu0 %v303
        %581 = vmatprep.subr.mxu0 %v320
        %582 = vmatpush1.msra.mxu0 %v319
        %583 = vmatprep.subr.mxu0 %v336
        %584 = vmatpush1.msra.mxu0 %v335
        %585 = vmatprep.subr.mxu0 0.0
        %586 = vmatpush1.msra.mxu0 0.0
        %587 = vmatprep.subr.mxu0 0.0
        %588 = vmatpush1.msra.mxu0 0.0
        %589 = vmatprep.subr.mxu0 0.0
        %590 = vmatpush1.msra.mxu0 0.0
        %591 = vmatprep.subr.mxu0 0.0
        %592 = vmatpush1.msra.mxu0 0.0
        %593 = vmatprep.subr.mxu0 0.0
        %594 = vmatpush1.msra.mxu0 0.0
        %595 = vmatprep.subr.mxu0 0.0
        %596 = vmatpush1.msra.mxu0 0.0
        %597 = vmatprep.subr.mxu0 0.0
        %598 = vmatpush1.msra.mxu0 0.0
        %599 = vmatprep.subr.mxu0 0.0
        %600 = vmatpush1.msra.mxu0 0.0
        %601 = vmatprep.subr.mxu0 0.0
        %602 = vmatpush1.msra.mxu0 0.0
        %603 = vmatprep.subr.mxu0 0.0
        %604 = vmatpush1.msra.mxu0 0.0
        %605 = vmatprep.subr.mxu0 0.0
        %606 = vmatpush1.msra.mxu0 0.0
        %607 = vmatprep.subr.mxu0 0.0
        %608 = vmatpush1.msra.mxu0 0.0
        %609 = vmatprep.subr.mxu0 0.0
        %610 = vmatpush1.msra.mxu0 0.0
        %611 = vmatprep.subr.mxu0 0.0
        %612 = vmatpush1.msra.mxu0 0.0
        %613 = vmatprep.subr.mxu0 0.0
        %614 = vmatpush1.msra.mxu0 0.0
        %615 = vmatprep.subr.mxu0 0.0
        %616 = vmatpush1.msra.mxu0 0.0
        %617 = vmatprep.subr.mxu0 0.0
        %618 = vmatpush1.msra.mxu0 0.0
        %619 = vmatprep.subr.mxu0 0.0
        %620 = vmatpush1.msra.mxu0 0.0
        %621 = vmatprep.subr.mxu0 0.0
        %622 = vmatpush1.msra.mxu0 0.0
        %623 = vmatprep.subr.mxu0 0.0
        %624 = vmatpush1.msra.mxu0 0.0
        %625 = vmatprep.subr.mxu0 0.0
        %626 = vmatpush1.msra.mxu0 0.0
        %627 = vmatprep.subr.mxu0 0.0
        %628 = vmatpush1.msra.mxu0 0.0
        %629 = vmatprep.subr.mxu0 0.0
        %630 = vmatpush1.msra.mxu0 0.0
        %631 = vmatprep.subr.mxu0 0.0
        %632 = vmatpush1.msra.mxu0 0.0
        %633 = vmatprep.subr.mxu0 0.0
        %634 = vmatpush1.msra.mxu0 0.0
        %635 = vmatprep.subr.mxu0 0.0
        %636 = vmatpush1.msra.mxu0 0.0
        %637 = vmatprep.subr.mxu0 0.0
        %638 = vmatpush1.msra.mxu0 0.0
        %639 = vmatprep.subr.mxu0 0.0
        %640 = vmatpush1.msra.mxu0 0.0
        %641 = vmatprep.mubr.f32.mxu0 0.0
        %642 = vmatmul.mubr.f32.gmra.mrb[0].mxu0 %v433
        %v643 = vpop.f32.mrb[0].mxu0
        %v644 = vadd.f32 %v370, %v643
        %v645 = vpop.f32.mrb[0].mxu0
        %v646 = vadd.f32 %v374, %v645
        %647 = vdwg.mxu0
        %648 = vmatprep.subr.mxu0 %v290
        %649 = vmatpush1.msra.mxu0 %v289
        %650 = vmatprep.subr.mxu0 %v306
        %651 = vmatpush1.msra.mxu0 %v305
        %652 = vmatprep.subr.mxu0 %v322
        %653 = vmatpush1.msra.mxu0 %v321
        %654 = vmatprep.subr.mxu0 %v338
        %655 = vmatpush1.msra.mxu0 %v337
        %656 = vmatprep.subr.mxu0 0.0
        %657 = vmatpush1.msra.mxu0 0.0
        %658 = vmatprep.subr.mxu0 0.0
        %659 = vmatpush1.msra.mxu0 0.0
        %660 = vmatprep.subr.mxu0 0.0
        %661 = vmatpush1.msra.mxu0 0.0
        %662 = vmatprep.subr.mxu0 0.0
        %663 = vmatpush1.msra.mxu0 0.0
        %664 = vmatprep.subr.mxu0 0.0
        %665 = vmatpush1.msra.mxu0 0.0
        %666 = vmatprep.subr.mxu0 0.0
        %667 = vmatpush1.msra.mxu0 0.0
        %668 = vmatprep.subr.mxu0 0.0
        %669 = vmatpush1.msra.mxu0 0.0
        %670 = vmatprep.subr.mxu0 0.0
        %671 = vmatpush1.msra.mxu0 0.0
        %672 = vmatprep.subr.mxu0 0.0
        %673 = vmatpush1.msra.mxu0 0.0
        %674 = vmatprep.subr.mxu0 0.0
        %675 = vmatpush1.msra.mxu0 0.0
        %676 = vmatprep.subr.mxu0 0.0
        %677 = vmatpush1.msra.mxu0 0.0
        %678 = vmatprep.subr.mxu0 0.0
        %679 = vmatpush1.msra.mxu0 0.0
        %680 = vmatprep.subr.mxu0 0.0
        %681 = vmatpush1.msra.mxu0 0.0
        %682 = vmatprep.subr.mxu0 0.0
        %683 = vmatpush1.msra.mxu0 0.0
        %684 = vmatprep.subr.mxu0 0.0
        %685 = vmatpush1.msra.mxu0 0.0
        %686 = vmatprep.subr.mxu0 0.0
        %687 = vmatpush1.msra.mxu0 0.0
        %688 = vmatprep.subr.mxu0 0.0
        %689 = vmatpush1.msra.mxu0 0.0
        %690 = vmatprep.subr.mxu0 0.0
        %691 = vmatpush1.msra.mxu0 0.0
        %692 = vmatprep.subr.mxu0 0.0
        %693 = vmatpush1.msra.mxu0 0.0
        %694 = vmatprep.subr.mxu0 0.0
        %695 = vmatpush1.msra.mxu0 0.0
        %696 = vmatprep.subr.mxu0 0.0
        %697 = vmatpush1.msra.mxu0 0.0
        %698 = vmatprep.subr.mxu0 0.0
        %699 = vmatpush1.msra.mxu0 0.0
        %700 = vmatprep.subr.mxu0 0.0
        %701 = vmatpush1.msra.mxu0 0.0
        %702 = vmatprep.subr.mxu0 0.0
        %703 = vmatpush1.msra.mxu0 0.0
        %704 = vmatprep.subr.mxu0 0.0
        %705 = vmatpush1.msra.mxu0 0.0
        %706 = vmatprep.subr.mxu0 0.0
        %707 = vmatpush1.msra.mxu0 0.0
        %708 = vmatprep.subr.mxu0 0.0
        %709 = vmatpush1.msra.mxu0 0.0
        %710 = vmatprep.subr.mxu0 0.0
        %711 = vmatpush1.msra.mxu0 0.0
        %712 = vmatprep.mubr.f32.mxu0 0.0
        %713 = vmatmul.mubr.f32.gmra.mrb[0].mxu0 %v433
        %v714 = vpop.f32.mrb[0].mxu0
        %v715 = vadd.f32 %v378, %v714
        %v716 = vpop.f32.mrb[0].mxu0
        %v717 = vadd.f32 %v382, %v716
        %718 = vdwg.mxu0
        %719 = vmatprep.subr.mxu0 %v292
        %720 = vmatpush1.msra.mxu0 %v291
        %721 = vmatprep.subr.mxu0 %v308
        %722 = vmatpush1.msra.mxu0 %v307
        %723 = vmatprep.subr.mxu0 %v324
        %724 = vmatpush1.msra.mxu0 %v323
        %725 = vmatprep.subr.mxu0 %v340
        %726 = vmatpush1.msra.mxu0 %v339
        %727 = vmatprep.subr.mxu0 0.0
        %728 = vmatpush1.msra.mxu0 0.0
        %729 = vmatprep.subr.mxu0 0.0
        %730 = vmatpush1.msra.mxu0 0.0
        %731 = vmatprep.subr.mxu0 0.0
        %732 = vmatpush1.msra.mxu0 0.0
        %733 = vmatprep.subr.mxu0 0.0
        %734 = vmatpush1.msra.mxu0 0.0
        %735 = vmatprep.subr.mxu0 0.0
        %736 = vmatpush1.msra.mxu0 0.0
        %737 = vmatprep.subr.mxu0 0.0
        %738 = vmatpush1.msra.mxu0 0.0
        %739 = vmatprep.subr.mxu0 0.0
        %740 = vmatpush1.msra.mxu0 0.0
        %741 = vmatprep.subr.mxu0 0.0
        %742 = vmatpush1.msra.mxu0 0.0
        %743 = vmatprep.subr.mxu0 0.0
        %744 = vmatpush1.msra.mxu0 0.0
        %745 = vmatprep.subr.mxu0 0.0
        %746 = vmatpush1.msra.mxu0 0.0
        %747 = vmatprep.subr.mxu0 0.0
        %748 = vmatpush1.msra.mxu0 0.0
        %749 = vmatprep.subr.mxu0 0.0
        %750 = vmatpush1.msra.mxu0 0.0
        %751 = vmatprep.subr.mxu0 0.0
        %752 = vmatpush1.msra.mxu0 0.0
        %753 = vmatprep.subr.mxu0 0.0
        %754 = vmatpush1.msra.mxu0 0.0
        %755 = vmatprep.subr.mxu0 0.0
        %756 = vmatpush1.msra.mxu0 0.0
        %757 = vmatprep.subr.mxu0 0.0
        %758 = vmatpush1.msra.mxu0 0.0
        %759 = vmatprep.subr.mxu0 0.0
        %760 = vmatpush1.msra.mxu0 0.0
        %761 = vmatprep.subr.mxu0 0.0
        %762 = vmatpush1.msra.mxu0 0.0
        %763 = vmatprep.subr.mxu0 0.0
        %764 = vmatpush1.msra.mxu0 0.0
        %765 = vmatprep.subr.mxu0 0.0
        %766 = vmatpush1.msra.mxu0 0.0
        %767 = vmatprep.subr.mxu0 0.0
        %768 = vmatpush1.msra.mxu0 0.0
        %769 = vmatprep.subr.mxu0 0.0
        %770 = vmatpush1.msra.mxu0 0.0
        %771 = vmatprep.subr.mxu0 0.0
        %772 = vmatpush1.msra.mxu0 0.0
        %773 = vmatprep.subr.mxu0 0.0
        %774 = vmatpush1.msra.mxu0 0.0
        %775 = vmatprep.subr.mxu0 0.0
        %776 = vmatpush1.msra.mxu0 0.0
        %777 = vmatprep.subr.mxu0 0.0
        %778 = vmatpush1.msra.mxu0 0.0
        %779 = vmatprep.subr.mxu0 0.0
        %780 = vmatpush1.msra.mxu0 0.0
        %781 = vmatprep.subr.mxu0 0.0
        %782 = vmatpush1.msra.mxu0 0.0
        %783 = vmatprep.mubr.f32.mxu0 0.0
        %784 = vmatmul.mubr.f32.gmra.mrb[0].mxu0 %v433
        %v785 = vpop.f32.mrb[0].mxu0
        %v786 = vadd.f32 %v386, %v785
        %v787 = vpop.f32.mrb[0].mxu0
        %v788 = vadd.f32 %v390, %v787
        %789 = vdwg.mxu0
        %790 = vmatprep.subr.mxu0 %v294
        %791 = vmatpush1.msra.mxu0 %v293
        %792 = vmatprep.subr.mxu0 %v310
        %793 = vmatpush1.msra.mxu0 %v309
        %794 = vmatprep.subr.mxu0 %v326
        %795 = vmatpush1.msra.mxu0 %v325
        %796 = vmatprep.subr.mxu0 %v342
        %797 = vmatpush1.msra.mxu0 %v341
        %798 = vmatprep.subr.mxu0 0.0
        %799 = vmatpush1.msra.mxu0 0.0
        %800 = vmatprep.subr.mxu0 0.0
        %801 = vmatpush1.msra.mxu0 0.0
        %802 = vmatprep.subr.mxu0 0.0
        %803 = vmatpush1.msra.mxu0 0.0
        %804 = vmatprep.subr.mxu0 0.0
        %805 = vmatpush1.msra.mxu0 0.0
        %806 = vmatprep.subr.mxu0 0.0
        %807 = vmatpush1.msra.mxu0 0.0
        %808 = vmatprep.subr.mxu0 0.0
        %809 = vmatpush1.msra.mxu0 0.0
        %810 = vmatprep.subr.mxu0 0.0
        %811 = vmatpush1.msra.mxu0 0.0
        %812 = vmatprep.subr.mxu0 0.0
        %813 = vmatpush1.msra.mxu0 0.0
        %814 = vmatprep.subr.mxu0 0.0
        %815 = vmatpush1.msra.mxu0 0.0
        %816 = vmatprep.subr.mxu0 0.0
        %817 = vmatpush1.msra.mxu0 0.0
        %818 = vmatprep.subr.mxu0 0.0
        %819 = vmatpush1.msra.mxu0 0.0
        %820 = vmatprep.subr.mxu0 0.0
        %821 = vmatpush1.msra.mxu0 0.0
        %822 = vmatprep.subr.mxu0 0.0
        %823 = vmatpush1.msra.mxu0 0.0
        %824 = vmatprep.subr.mxu0 0.0
        %825 = vmatpush1.msra.mxu0 0.0
        %826 = vmatprep.subr.mxu0 0.0
        %827 = vmatpush1.msra.mxu0 0.0
        %828 = vmatprep.subr.mxu0 0.0
        %829 = vmatpush1.msra.mxu0 0.0
        %830 = vmatprep.subr.mxu0 0.0
        %831 = vmatpush1.msra.mxu0 0.0
        %832 = vmatprep.subr.mxu0 0.0
        %833 = vmatpush1.msra.mxu0 0.0
        %834 = vmatprep.subr.mxu0 0.0
        %835 = vmatpush1.msra.mxu0 0.0
        %836 = vmatprep.subr.mxu0 0.0
        %837 = vmatpush1.msra.mxu0 0.0
        %838 = vmatprep.subr.mxu0 0.0
        %839 = vmatpush1.msra.mxu0 0.0
        %840 = vmatprep.subr.mxu0 0.0
        %841 = vmatpush1.msra.mxu0 0.0
        %842 = vmatprep.subr.mxu0 0.0
        %843 = vmatpush1.msra.mxu0 0.0
        %844 = vmatprep.subr.mxu0 0.0
        %845 = vmatpush1.msra.mxu0 0.0
        %846 = vmatprep.subr.mxu0 0.0
        %847 = vmatpush1.msra.mxu0 0.0
        %848 = vmatprep.subr.mxu0 0.0
        %849 = vmatpush1.msra.mxu0 0.0
        %850 = vmatprep.subr.mxu0 0.0
        %851 = vmatpush1.msra.mxu0 0.0
        %852 = vmatprep.subr.mxu0 0.0
        %853 = vmatpush1.msra.mxu0 0.0
        %854 = vmatprep.mubr.f32.mxu0 0.0
        %855 = vmatmul.mubr.f32.gmra.mrb[0].mxu0 %v433
        %v856 = vpop.f32.mrb[0].mxu0
        %v857 = vadd.f32 %v394, %v856
        %v858 = vpop.f32.mrb[0].mxu0
        %v859 = vadd.f32 %v398, %v858
        %860 = vdwg.mxu0
        %861 = vmatprep.subr.mxu0 %v296
        %862 = vmatpush1.msra.mxu0 %v295
        %863 = vmatprep.subr.mxu0 %v312
        %864 = vmatpush1.msra.mxu0 %v311
        %865 = vmatprep.subr.mxu0 %v328
        %866 = vmatpush1.msra.mxu0 %v327
        %867 = vmatprep.subr.mxu0 %v344
        %868 = vmatpush1.msra.mxu0 %v343
        %869 = vmatprep.subr.mxu0 0.0
        %870 = vmatpush1.msra.mxu0 0.0
        %871 = vmatprep.subr.mxu0 0.0
        %872 = vmatpush1.msra.mxu0 0.0
        %873 = vmatprep.subr.mxu0 0.0
        %874 = vmatpush1.msra.mxu0 0.0
        %875 = vmatprep.subr.mxu0 0.0
        %876 = vmatpush1.msra.mxu0 0.0
        %877 = vmatprep.subr.mxu0 0.0
        %878 = vmatpush1.msra.mxu0 0.0
        %879 = vmatprep.subr.mxu0 0.0
        %880 = vmatpush1.msra.mxu0 0.0
        %881 = vmatprep.subr.mxu0 0.0
        %882 = vmatpush1.msra.mxu0 0.0
        %883 = vmatprep.subr.mxu0 0.0
        %884 = vmatpush1.msra.mxu0 0.0
        %885 = vmatprep.subr.mxu0 0.0
        %886 = vmatpush1.msra.mxu0 0.0
        %887 = vmatprep.subr.mxu0 0.0
        %888 = vmatpush1.msra.mxu0 0.0
        %889 = vmatprep.subr.mxu0 0.0
        %890 = vmatpush1.msra.mxu0 0.0
        %891 = vmatprep.subr.mxu0 0.0
        %892 = vmatpush1.msra.mxu0 0.0
        %893 = vmatprep.subr.mxu0 0.0
        %894 = vmatpush1.msra.mxu0 0.0
        %895 = vmatprep.subr.mxu0 0.0
        %896 = vmatpush1.msra.mxu0 0.0
        %897 = vmatprep.subr.mxu0 0.0
        %898 = vmatpush1.msra.mxu0 0.0
        %899 = vmatprep.subr.mxu0 0.0
        %900 = vmatpush1.msra.mxu0 0.0
        %901 = vmatprep.subr.mxu0 0.0
        %902 = vmatpush1.msra.mxu0 0.0
        %903 = vmatprep.subr.mxu0 0.0
        %904 = vmatpush1.msra.mxu0 0.0
        %905 = vmatprep.subr.mxu0 0.0
        %906 = vmatpush1.msra.mxu0 0.0
        %907 = vmatprep.subr.mxu0 0.0
        %908 = vmatpush1.msra.mxu0 0.0
        %909 = vmatprep.subr.mxu0 0.0
        %910 = vmatpush1.msra.mxu0 0.0
        %911 = vmatprep.subr.mxu0 0.0
        %912 = vmatpush1.msra.mxu0 0.0
        %913 = vmatprep.subr.mxu0 0.0
        %914 = vmatpush1.msra.mxu0 0.0
        %915 = vmatprep.subr.mxu0 0.0
        %916 = vmatpush1.msra.mxu0 0.0
        %917 = vmatprep.subr.mxu0 0.0
        %918 = vmatpush1.msra.mxu0 0.0
        %919 = vmatprep.subr.mxu0 0.0
        %920 = vmatpush1.msra.mxu0 0.0
        %921 = vmatprep.subr.mxu0 0.0
        %922 = vmatpush1.msra.mxu0 0.0
        %923 = vmatprep.subr.mxu0 0.0
        %924 = vmatpush1.msra.mxu0 0.0
        %925 = vmatprep.mubr.f32.mxu0 0.0
        %926 = vmatmul.mubr.f32.gmra.mrb[0].mxu0 %v433
        %v927 = vpop.f32.mrb[0].mxu0
        %v928 = vadd.f32 %v402, %v927
        %v929 = vpop.f32.mrb[0].mxu0
        %v930 = vadd.f32 %v406, %v929
        %931 = vdwg.mxu0
        %932 = vmatprep.subr.mxu0 %v298
        %933 = vmatpush1.msra.mxu0 %v297
        %934 = vmatprep.subr.mxu0 %v314
        %935 = vmatpush1.msra.mxu0 %v313
        %936 = vmatprep.subr.mxu0 %v330
        %937 = vmatpush1.msra.mxu0 %v329
        %938 = vmatprep.subr.mxu0 %v346
        %939 = vmatpush1.msra.mxu0 %v345
        %940 = vmatprep.subr.mxu0 0.0
        %941 = vmatpush1.msra.mxu0 0.0
        %942 = vmatprep.subr.mxu0 0.0
        %943 = vmatpush1.msra.mxu0 0.0
        %944 = vmatprep.subr.mxu0 0.0
        %945 = vmatpush1.msra.mxu0 0.0
        %946 = vmatprep.subr.mxu0 0.0
        %947 = vmatpush1.msra.mxu0 0.0
        %948 = vmatprep.subr.mxu0 0.0
        %949 = vmatpush1.msra.mxu0 0.0
        %950 = vmatprep.subr.mxu0 0.0
        %951 = vmatpush1.msra.mxu0 0.0
        %952 = vmatprep.subr.mxu0 0.0
        %953 = vmatpush1.msra.mxu0 0.0
        %954 = vmatprep.subr.mxu0 0.0
        %955 = vmatpush1.msra.mxu0 0.0
        %956 = vmatprep.subr.mxu0 0.0
        %957 = vmatpush1.msra.mxu0 0.0
        %958 = vmatprep.subr.mxu0 0.0
        %959 = vmatpush1.msra.mxu0 0.0
        %960 = vmatprep.subr.mxu0 0.0
        %961 = vmatpush1.msra.mxu0 0.0
        %962 = vmatprep.subr.mxu0 0.0
        %963 = vmatpush1.msra.mxu0 0.0
        %964 = vmatprep.subr.mxu0 0.0
        %965 = vmatpush1.msra.mxu0 0.0
        %966 = vmatprep.subr.mxu0 0.0
        %967 = vmatpush1.msra.mxu0 0.0
        %968 = vmatprep.subr.mxu0 0.0
        %969 = vmatpush1.msra.mxu0 0.0
        %970 = vmatprep.subr.mxu0 0.0
        %971 = vmatpush1.msra.mxu0 0.0
        %972 = vmatprep.subr.mxu0 0.0
        %973 = vmatpush1.msra.mxu0 0.0
        %974 = vmatprep.subr.mxu0 0.0
        %975 = vmatpush1.msra.mxu0 0.0
        %976 = vmatprep.subr.mxu0 0.0
        %977 = vmatpush1.msra.mxu0 0.0
        %978 = vmatprep.subr.mxu0 0.0
        %979 = vmatpush1.msra.mxu0 0.0
        %980 = vmatprep.subr.mxu0 0.0
        %981 = vmatpush1.msra.mxu0 0.0
        %982 = vmatprep.subr.mxu0 0.0
        %983 = vmatpush1.msra.mxu0 0.0
        %984 = vmatprep.subr.mxu0 0.0
        %985 = vmatpush1.msra.mxu0 0.0
        %986 = vmatprep.subr.mxu0 0.0
        %987 = vmatpush1.msra.mxu0 0.0
        %988 = vmatprep.subr.mxu0 0.0
        %989 = vmatpush1.msra.mxu0 0.0
        %990 = vmatprep.subr.mxu0 0.0
        %991 = vmatpush1.msra.mxu0 0.0
        %992 = vmatprep.subr.mxu0 0.0
        %993 = vmatpush1.msra.mxu0 0.0
        %994 = vmatprep.subr.mxu0 0.0
        %995 = vmatpush1.msra.mxu0 0.0
        %996 = vmatprep.mubr.f32.mxu0 0.0
        %997 = vmatmul.mubr.f32.gmra.mrb[0].mxu0 %v433
        %v998 = vpop.f32.mrb[0].mxu0
        %v999 = vadd.f32 %v410, %v998
        %v1000 = vpop.f32.mrb[0].mxu0
        %v1001 = vadd.f32 %v414, %v1000
        %1002 = vdwg.mxu0
        %v1003 = vmax.f32 %v502, 0.0
        %v1004 = vmax.f32 %v504, 0.0
        %v1005 = vmax.f32 %v573, 0.0
        %v1006 = vmax.f32 %v575, 0.0
        %v1007 = vmax.f32 %v644, 0.0
        %v1008 = vmax.f32 %v646, 0.0
        %v1009 = vmax.f32 %v715, 0.0
        %v1010 = vmax.f32 %v717, 0.0
        %v1011 = vmax.f32 %v786, 0.0
        %v1012 = vmax.f32 %v788, 0.0
        %v1013 = vmax.f32 %v857, 0.0
        %v1014 = vmax.f32 %v859, 0.0
        %v1015 = vmax.f32 %v928, 0.0
        %v1016 = vmax.f32 %v930, 0.0
        %v1017 = vmax.f32 %v999, 0.0
        %v1018 = vmax.f32 %v1001, 0.0
        %v1019 = vld [vmem:[#allocation8] sm:$0xff]
        %v1020 = vld [vmem:[#allocation8 + $0x8] sm:$0xff]
        %v1021 = vld [vmem:[#allocation8 + $0x10] sm:$0xff]
        %v1022 = vld [vmem:[#allocation8 + $0x18] sm:$0xff]
        %v1023 = vld [vmem:[#allocation8 + $0x20] sm:$0xff]
        %v1024 = vld [vmem:[#allocation8 + $0x28] sm:$0xff]
        %v1025 = vld [vmem:[#allocation8 + $0x30] sm:$0xff]
        %v1026 = vld [vmem:[#allocation8 + $0x38] sm:$0xff]
        %v1027 = vld [vmem:[#allocation8 + $0x40] sm:$0xff]
        %v1028 = vld [vmem:[#allocation8 + $0x48] sm:$0xff]
        %v1029 = vld [vmem:[#allocation8 + $0x50] sm:$0xff]
        %v1030 = vld [vmem:[#allocation8 + $0x58] sm:$0xff]
        %v1031 = vld [vmem:[#allocation8 + $0x60] sm:$0xff]
        %v1032 = vld [vmem:[#allocation8 + $0x68] sm:$0xff]
        %v1033 = vld [vmem:[#allocation8 + $0x70] sm:$0xff]
        %v1034 = vld [vmem:[#allocation8 + $0x78] sm:$0xff]
        %v1035 = vld [vmem:[#allocation8 + $0x80] sm:$0xff]
        %v1036 = vld [vmem:[#allocation8 + $0x88] sm:$0xff]
        %v1037 = vld [vmem:[#allocation8 + $0x90] sm:$0xff]
        %v1038 = vld [vmem:[#allocation8 + $0x98] sm:$0xff]
        %v1039 = vld [vmem:[#allocation8 + $0xa0] sm:$0xff]
        %v1040 = vld [vmem:[#allocation8 + $0xa8] sm:$0xff]
        %v1041 = vld [vmem:[#allocation8 + $0xb0] sm:$0xff]
        %v1042 = vld [vmem:[#allocation8 + $0xb8] sm:$0xff]
        %v1043 = vld [vmem:[#allocation8 + $0xc0] sm:$0xff]
        %v1044 = vld [vmem:[#allocation8 + $0xc8] sm:$0xff]
        %v1045 = vld [vmem:[#allocation8 + $0xd0] sm:$0xff]
        %v1046 = vld [vmem:[#allocation8 + $0xd8] sm:$0xff]
        %v1047 = vld [vmem:[#allocation8 + $0xe0] sm:$0xff]
        %v1048 = vld [vmem:[#allocation8 + $0xe8] sm:$0xff]
        %v1049 = vld [vmem:[#allocation8 + $0xf0] sm:$0xff]
        %v1050 = vld [vmem:[#allocation8 + $0xf8] sm:$0xff]
        %v1051 = vld [vmem:[#allocation8 + $0x100] sm:$0xff]
        %v1052 = vld [vmem:[#allocation8 + $0x108] sm:$0xff]
        %v1053 = vld [vmem:[#allocation8 + $0x110] sm:$0xff]
        %v1054 = vld [vmem:[#allocation8 + $0x118] sm:$0xff]
        %v1055 = vld [vmem:[#allocation8 + $0x120] sm:$0xff]
        %v1056 = vld [vmem:[#allocation8 + $0x128] sm:$0xff]
        %v1057 = vld [vmem:[#allocation8 + $0x130] sm:$0xff]
        %v1058 = vld [vmem:[#allocation8 + $0x138] sm:$0xff]
        %v1059 = vld [vmem:[#allocation8 + $0x140] sm:$0xff]
        %v1060 = vld [vmem:[#allocation8 + $0x148] sm:$0xff]
        %v1061 = vld [vmem:[#allocation8 + $0x150] sm:$0xff]
        %v1062 = vld [vmem:[#allocation8 + $0x158] sm:$0xff]
        %v1063 = vld [vmem:[#allocation8 + $0x160] sm:$0xff]
        %v1064 = vld [vmem:[#allocation8 + $0x168] sm:$0xff]
        %v1065 = vld [vmem:[#allocation8 + $0x170] sm:$0xff]
        %v1066 = vld [vmem:[#allocation8 + $0x178] sm:$0xff]
        %v1067 = vld [vmem:[#allocation8 + $0x180] sm:$0xff]
        %v1068 = vld [vmem:[#allocation8 + $0x188] sm:$0xff]
        %v1069 = vld [vmem:[#allocation8 + $0x190] sm:$0xff]
        %v1070 = vld [vmem:[#allocation8 + $0x198] sm:$0xff]
        %v1071 = vld [vmem:[#allocation8 + $0x1a0] sm:$0xff]
        %v1072 = vld [vmem:[#allocation8 + $0x1a8] sm:$0xff]
        %v1073 = vld [vmem:[#allocation8 + $0x1b0] sm:$0xff]
        %v1074 = vld [vmem:[#allocation8 + $0x1b8] sm:$0xff]
        %v1075 = vld [vmem:[#allocation8 + $0x1c0] sm:$0xff]
        %v1076 = vld [vmem:[#allocation8 + $0x1c8] sm:$0xff]
        %v1077 = vld [vmem:[#allocation8 + $0x1d0] sm:$0xff]
        %v1078 = vld [vmem:[#allocation8 + $0x1d8] sm:$0xff]
        %v1079 = vld [vmem:[#allocation8 + $0x1e0] sm:$0xff]
        %v1080 = vld [vmem:[#allocation8 + $0x1e8] sm:$0xff]
        %v1081 = vld [vmem:[#allocation8 + $0x1f0] sm:$0xff]
        %v1082 = vld [vmem:[#allocation8 + $0x1f8] sm:$0xff]
        %v1083 = vld [vmem:[#allocation8 + $0x200] sm:$0xff]
        %v1084 = vld [vmem:[#allocation8 + $0x208] sm:$0xff]
        %v1085 = vld [vmem:[#allocation8 + $0x210] sm:$0xff]
        %v1086 = vld [vmem:[#allocation8 + $0x218] sm:$0xff]
        %v1087 = vld [vmem:[#allocation8 + $0x220] sm:$0xff]
        %v1088 = vld [vmem:[#allocation8 + $0x228] sm:$0xff]
        %v1089 = vld [vmem:[#allocation8 + $0x230] sm:$0xff]
        %v1090 = vld [vmem:[#allocation8 + $0x238] sm:$0xff]
        %v1091 = vld [vmem:[#allocation8 + $0x240] sm:$0xff]
        %v1092 = vld [vmem:[#allocation8 + $0x248] sm:$0xff]
        %v1093 = vld [vmem:[#allocation8 + $0x250] sm:$0xff]
        %v1094 = vld [vmem:[#allocation8 + $0x258] sm:$0xff]
        %v1095 = vld [vmem:[#allocation8 + $0x260] sm:$0xff]
        %v1096 = vld [vmem:[#allocation8 + $0x268] sm:$0xff]
        %v1097 = vld [vmem:[#allocation8 + $0x270] sm:$0xff]
        %v1098 = vld [vmem:[#allocation8 + $0x278] sm:$0xff]
        %v1099 = vld [vmem:[#allocation8 + $0x280] sm:$0xff]
        %v1100 = vld [vmem:[#allocation8 + $0x288] sm:$0xff]
        %v1101 = vld [vmem:[#allocation8 + $0x290] sm:$0xff]
        %v1102 = vld [vmem:[#allocation8 + $0x298] sm:$0xff]
        %v1103 = vld [vmem:[#allocation8 + $0x2a0] sm:$0xff]
        %v1104 = vld [vmem:[#allocation8 + $0x2a8] sm:$0xff]
        %v1105 = vld [vmem:[#allocation8 + $0x2b0] sm:$0xff]
        %v1106 = vld [vmem:[#allocation8 + $0x2b8] sm:$0xff]
        %v1107 = vld [vmem:[#allocation8 + $0x2c0] sm:$0xff]
        %v1108 = vld [vmem:[#allocation8 + $0x2c8] sm:$0xff]
        %v1109 = vld [vmem:[#allocation8 + $0x2d0] sm:$0xff]
        %v1110 = vld [vmem:[#allocation8 + $0x2d8] sm:$0xff]
        %v1111 = vld [vmem:[#allocation8 + $0x2e0] sm:$0xff]
        %v1112 = vld [vmem:[#allocation8 + $0x2e8] sm:$0xff]
        %v1113 = vld [vmem:[#allocation8 + $0x2f0] sm:$0xff]
        %v1114 = vld [vmem:[#allocation8 + $0x2f8] sm:$0xff]
        %v1115 = vld [vmem:[#allocation8 + $0x300] sm:$0xff]
        %v1116 = vld [vmem:[#allocation8 + $0x308] sm:$0xff]
        %v1117 = vld [vmem:[#allocation8 + $0x310] sm:$0xff]
        %v1118 = vld [vmem:[#allocation8 + $0x318] sm:$0xff]
        %v1119 = vld [vmem:[#allocation8 + $0x320] sm:$0xff]
        %v1120 = vld [vmem:[#allocation8 + $0x328] sm:$0xff]
        %v1121 = vld [vmem:[#allocation8 + $0x330] sm:$0xff]
        %v1122 = vld [vmem:[#allocation8 + $0x338] sm:$0xff]
        %v1123 = vld [vmem:[#allocation8 + $0x340] sm:$0xff]
        %v1124 = vld [vmem:[#allocation8 + $0x348] sm:$0xff]
        %v1125 = vld [vmem:[#allocation8 + $0x350] sm:$0xff]
        %v1126 = vld [vmem:[#allocation8 + $0x358] sm:$0xff]
        %v1127 = vld [vmem:[#allocation8 + $0x360] sm:$0xff]
        %v1128 = vld [vmem:[#allocation8 + $0x368] sm:$0xff]
        %v1129 = vld [vmem:[#allocation8 + $0x370] sm:$0xff]
        %v1130 = vld [vmem:[#allocation8 + $0x378] sm:$0xff]
        %v1131 = vld [vmem:[#allocation8 + $0x380] sm:$0xff]
        %v1132 = vld [vmem:[#allocation8 + $0x388] sm:$0xff]
        %v1133 = vld [vmem:[#allocation8 + $0x390] sm:$0xff]
        %v1134 = vld [vmem:[#allocation8 + $0x398] sm:$0xff]
        %v1135 = vld [vmem:[#allocation8 + $0x3a0] sm:$0xff]
        %v1136 = vld [vmem:[#allocation8 + $0x3a8] sm:$0xff]
        %v1137 = vld [vmem:[#allocation8 + $0x3b0] sm:$0xff]
        %v1138 = vld [vmem:[#allocation8 + $0x3b8] sm:$0xff]
        %v1139 = vld [vmem:[#allocation8 + $0x3c0] sm:$0xff]
        %v1140 = vld [vmem:[#allocation8 + $0x3c8] sm:$0xff]
        %v1141 = vld [vmem:[#allocation8 + $0x3d0] sm:$0xff]
        %v1142 = vld [vmem:[#allocation8 + $0x3d8] sm:$0xff]
        %v1143 = vld [vmem:[#allocation8 + $0x3e0] sm:$0xff]
        %v1144 = vld [vmem:[#allocation8 + $0x3e8] sm:$0xff]
        %v1145 = vld [vmem:[#allocation8 + $0x3f0] sm:$0xff]
        %v1146 = vld [vmem:[#allocation8 + $0x3f8] sm:$0xff]
        %v1147 = vld [vmem:[#allocation8 + $0x400] sm:$0xff]
        %v1148 = vld [vmem:[#allocation8 + $0x408] sm:$0xff]
        %v1149 = vld [vmem:[#allocation8 + $0x410] sm:$0xff]
        %v1150 = vld [vmem:[#allocation8 + $0x418] sm:$0xff]
        %v1151 = vld [vmem:[#allocation8 + $0x420] sm:$0xff]
        %v1152 = vld [vmem:[#allocation8 + $0x428] sm:$0xff]
        %v1153 = vld [vmem:[#allocation8 + $0x430] sm:$0xff]
        %v1154 = vld [vmem:[#allocation8 + $0x438] sm:$0xff]
        %v1155 = vld [vmem:[#allocation8 + $0x440] sm:$0xff]
        %v1156 = vld [vmem:[#allocation8 + $0x448] sm:$0xff]
        %v1157 = vld [vmem:[#allocation8 + $0x450] sm:$0xff]
        %v1158 = vld [vmem:[#allocation8 + $0x458] sm:$0xff]
        %v1159 = vld [vmem:[#allocation8 + $0x460] sm:$0xff]
        %v1160 = vld [vmem:[#allocation8 + $0x468] sm:$0xff]
        %v1161 = vld [vmem:[#allocation8 + $0x470] sm:$0xff]
        %v1162 = vld [vmem:[#allocation8 + $0x478] sm:$0xff]
        %v1163 = vld [vmem:[#allocation8 + $0x480] sm:$0xff]
        %v1164 = vld [vmem:[#allocation8 + $0x488] sm:$0xff]
        %v1165 = vld [vmem:[#allocation8 + $0x490] sm:$0xff]
        %v1166 = vld [vmem:[#allocation8 + $0x498] sm:$0xff]
        %v1167 = vld [vmem:[#allocation8 + $0x4a0] sm:$0xff]
        %v1168 = vld [vmem:[#allocation8 + $0x4a8] sm:$0xff]
        %v1169 = vld [vmem:[#allocation8 + $0x4b0] sm:$0xff]
        %v1170 = vld [vmem:[#allocation8 + $0x4b8] sm:$0xff]
        %v1171 = vld [vmem:[#allocation8 + $0x4c0] sm:$0xff]
        %v1172 = vld [vmem:[#allocation8 + $0x4c8] sm:$0xff]
        %v1173 = vld [vmem:[#allocation8 + $0x4d0] sm:$0xff]
        %v1174 = vld [vmem:[#allocation8 + $0x4d8] sm:$0xff]
        %v1175 = vld [vmem:[#allocation8 + $0x4e0] sm:$0xff]
        %v1176 = vld [vmem:[#allocation8 + $0x4e8] sm:$0xff]
        %v1177 = vld [vmem:[#allocation8 + $0x4f0] sm:$0xff]
        %v1178 = vld [vmem:[#allocation8 + $0x4f8] sm:$0xff]
        %v1179 = vld [vmem:[#allocation8 + $0x500] sm:$0xff]
        %v1180 = vld [vmem:[#allocation8 + $0x508] sm:$0xff]
        %v1181 = vld [vmem:[#allocation8 + $0x510] sm:$0xff]
        %v1182 = vld [vmem:[#allocation8 + $0x518] sm:$0xff]
        %v1183 = vld [vmem:[#allocation8 + $0x520] sm:$0xff]
        %v1184 = vld [vmem:[#allocation8 + $0x528] sm:$0xff]
        %v1185 = vld [vmem:[#allocation8 + $0x530] sm:$0xff]
        %v1186 = vld [vmem:[#allocation8 + $0x538] sm:$0xff]
        %v1187 = vld [vmem:[#allocation8 + $0x540] sm:$0xff]
        %v1188 = vld [vmem:[#allocation8 + $0x548] sm:$0xff]
        %v1189 = vld [vmem:[#allocation8 + $0x550] sm:$0xff]
        %v1190 = vld [vmem:[#allocation8 + $0x558] sm:$0xff]
        %v1191 = vld [vmem:[#allocation8 + $0x560] sm:$0xff]
        %v1192 = vld [vmem:[#allocation8 + $0x568] sm:$0xff]
        %v1193 = vld [vmem:[#allocation8 + $0x570] sm:$0xff]
        %v1194 = vld [vmem:[#allocation8 + $0x578] sm:$0xff]
        %v1195 = vld [vmem:[#allocation8 + $0x580] sm:$0xff]
        %v1196 = vld [vmem:[#allocation8 + $0x588] sm:$0xff]
        %v1197 = vld [vmem:[#allocation8 + $0x590] sm:$0xff]
        %v1198 = vld [vmem:[#allocation8 + $0x598] sm:$0xff]
        %v1199 = vld [vmem:[#allocation8 + $0x5a0] sm:$0xff]
        %v1200 = vld [vmem:[#allocation8 + $0x5a8] sm:$0xff]
        %v1201 = vld [vmem:[#allocation8 + $0x5b0] sm:$0xff]
        %v1202 = vld [vmem:[#allocation8 + $0x5b8] sm:$0xff]
        %v1203 = vld [vmem:[#allocation8 + $0x5c0] sm:$0xff]
        %v1204 = vld [vmem:[#allocation8 + $0x5c8] sm:$0xff]
        %v1205 = vld [vmem:[#allocation8 + $0x5d0] sm:$0xff]
        %v1206 = vld [vmem:[#allocation8 + $0x5d8] sm:$0xff]
        %v1207 = vld [vmem:[#allocation8 + $0x5e0] sm:$0xff]
        %v1208 = vld [vmem:[#allocation8 + $0x5e8] sm:$0xff]
        %v1209 = vld [vmem:[#allocation8 + $0x5f0] sm:$0xff]
        %v1210 = vld [vmem:[#allocation8 + $0x5f8] sm:$0xff]
        %v1211 = vld [vmem:[#allocation8 + $0x600] sm:$0xff]
        %v1212 = vld [vmem:[#allocation8 + $0x608] sm:$0xff]
        %v1213 = vld [vmem:[#allocation8 + $0x610] sm:$0xff]
        %v1214 = vld [vmem:[#allocation8 + $0x618] sm:$0xff]
        %v1215 = vld [vmem:[#allocation8 + $0x620] sm:$0xff]
        %v1216 = vld [vmem:[#allocation8 + $0x628] sm:$0xff]
        %v1217 = vld [vmem:[#allocation8 + $0x630] sm:$0xff]
        %v1218 = vld [vmem:[#allocation8 + $0x638] sm:$0xff]
        %v1219 = vld [vmem:[#allocation8 + $0x640] sm:$0xff]
        %v1220 = vld [vmem:[#allocation8 + $0x648] sm:$0xff]
        %v1221 = vld [vmem:[#allocation8 + $0x650] sm:$0xff]
        %v1222 = vld [vmem:[#allocation8 + $0x658] sm:$0xff]
        %v1223 = vld [vmem:[#allocation8 + $0x660] sm:$0xff]
        %v1224 = vld [vmem:[#allocation8 + $0x668] sm:$0xff]
        %v1225 = vld [vmem:[#allocation8 + $0x670] sm:$0xff]
        %v1226 = vld [vmem:[#allocation8 + $0x678] sm:$0xff]
        %v1227 = vld [vmem:[#allocation8 + $0x680] sm:$0xff]
        %v1228 = vld [vmem:[#allocation8 + $0x688] sm:$0xff]
        %v1229 = vld [vmem:[#allocation8 + $0x690] sm:$0xff]
        %v1230 = vld [vmem:[#allocation8 + $0x698] sm:$0xff]
        %v1231 = vld [vmem:[#allocation8 + $0x6a0] sm:$0xff]
        %v1232 = vld [vmem:[#allocation8 + $0x6a8] sm:$0xff]
        %v1233 = vld [vmem:[#allocation8 + $0x6b0] sm:$0xff]
        %v1234 = vld [vmem:[#allocation8 + $0x6b8] sm:$0xff]
        %v1235 = vld [vmem:[#allocation8 + $0x6c0] sm:$0xff]
        %v1236 = vld [vmem:[#allocation8 + $0x6c8] sm:$0xff]
        %v1237 = vld [vmem:[#allocation8 + $0x6d0] sm:$0xff]
        %v1238 = vld [vmem:[#allocation8 + $0x6d8] sm:$0xff]
        %v1239 = vld [vmem:[#allocation8 + $0x6e0] sm:$0xff]
        %v1240 = vld [vmem:[#allocation8 + $0x6e8] sm:$0xff]
        %v1241 = vld [vmem:[#allocation8 + $0x6f0] sm:$0xff]
        %v1242 = vld [vmem:[#allocation8 + $0x6f8] sm:$0xff]
        %v1243 = vld [vmem:[#allocation8 + $0x700] sm:$0xff]
        %v1244 = vld [vmem:[#allocation8 + $0x708] sm:$0xff]
        %v1245 = vld [vmem:[#allocation8 + $0x710] sm:$0xff]
        %v1246 = vld [vmem:[#allocation8 + $0x718] sm:$0xff]
        %v1247 = vld [vmem:[#allocation8 + $0x720] sm:$0xff]
        %v1248 = vld [vmem:[#allocation8 + $0x728] sm:$0xff]
        %v1249 = vld [vmem:[#allocation8 + $0x730] sm:$0xff]
        %v1250 = vld [vmem:[#allocation8 + $0x738] sm:$0xff]
        %v1251 = vld [vmem:[#allocation8 + $0x740] sm:$0xff]
        %v1252 = vld [vmem:[#allocation8 + $0x748] sm:$0xff]
        %v1253 = vld [vmem:[#allocation8 + $0x750] sm:$0xff]
        %v1254 = vld [vmem:[#allocation8 + $0x758] sm:$0xff]
        %v1255 = vld [vmem:[#allocation8 + $0x760] sm:$0xff]
        %v1256 = vld [vmem:[#allocation8 + $0x768] sm:$0xff]
        %v1257 = vld [vmem:[#allocation8 + $0x770] sm:$0xff]
        %v1258 = vld [vmem:[#allocation8 + $0x778] sm:$0xff]
        %v1259 = vld [vmem:[#allocation8 + $0x780] sm:$0xff]
        %v1260 = vld [vmem:[#allocation8 + $0x788] sm:$0xff]
        %v1261 = vld [vmem:[#allocation8 + $0x790] sm:$0xff]
        %v1262 = vld [vmem:[#allocation8 + $0x798] sm:$0xff]
        %v1263 = vld [vmem:[#allocation8 + $0x7a0] sm:$0xff]
        %v1264 = vld [vmem:[#allocation8 + $0x7a8] sm:$0xff]
        %v1265 = vld [vmem:[#allocation8 + $0x7b0] sm:$0xff]
        %v1266 = vld [vmem:[#allocation8 + $0x7b8] sm:$0xff]
        %v1267 = vld [vmem:[#allocation8 + $0x7c0] sm:$0xff]
        %v1268 = vld [vmem:[#allocation8 + $0x7c8] sm:$0xff]
        %v1269 = vld [vmem:[#allocation8 + $0x7d0] sm:$0xff]
        %v1270 = vld [vmem:[#allocation8 + $0x7d8] sm:$0xff]
        %v1271 = vld [vmem:[#allocation8 + $0x7e0] sm:$0xff]
        %v1272 = vld [vmem:[#allocation8 + $0x7e8] sm:$0xff]
        %v1273 = vld [vmem:[#allocation8 + $0x7f0] sm:$0xff]
        %v1274 = vld [vmem:[#allocation8 + $0x7f8] sm:$0xff]
        %v1275 = vld [vmem:[%s4] sm:$0x1]
        %v1277 = vlaneseq
        %v1278 = vshrl.u32 %v1277, 7
        %v1279 = vsub.s32 0, %v1278
        %v1280 = vrot.slane %v1275, %v1279
        %1282 = vmatprep.subr.mxu0 0.0
        %1283 = vmatpush1.msra.mxu0 %v1019
        %1284 = vmatprep.subr.mxu0 0.0
        %1285 = vmatpush1.msra.mxu0 %v1020
        %1286 = vmatprep.subr.mxu0 0.0
        %1287 = vmatpush1.msra.mxu0 %v1021
        %1288 = vmatprep.subr.mxu0 0.0
        %1289 = vmatpush1.msra.mxu0 %v1022
        %1290 = vmatprep.subr.mxu0 0.0
        %1291 = vmatpush1.msra.mxu0 %v1023
        %1292 = vmatprep.subr.mxu0 0.0
        %1293 = vmatpush1.msra.mxu0 %v1024
        %1294 = vmatprep.subr.mxu0 0.0
        %1295 = vmatpush1.msra.mxu0 %v1025
        %1296 = vmatprep.subr.mxu0 0.0
        %1297 = vmatpush1.msra.mxu0 %v1026
        %1298 = vmatprep.subr.mxu0 0.0
        %1299 = vmatpush1.msra.mxu0 %v1027
        %1300 = vmatprep.subr.mxu0 0.0
        %1301 = vmatpush1.msra.mxu0 %v1028
        %1302 = vmatprep.subr.mxu0 0.0
        %1303 = vmatpush1.msra.mxu0 %v1029
        %1304 = vmatprep.subr.mxu0 0.0
        %1305 = vmatpush1.msra.mxu0 %v1030
        %1306 = vmatprep.subr.mxu0 0.0
        %1307 = vmatpush1.msra.mxu0 %v1031
        %1308 = vmatprep.subr.mxu0 0.0
        %1309 = vmatpush1.msra.mxu0 %v1032
        %1310 = vmatprep.subr.mxu0 0.0
        %1311 = vmatpush1.msra.mxu0 %v1033
        %1312 = vmatprep.subr.mxu0 0.0
        %1313 = vmatpush1.msra.mxu0 %v1034
        %1314 = vmatprep.subr.mxu0 0.0
        %1315 = vmatpush1.msra.mxu0 %v1035
        %1316 = vmatprep.subr.mxu0 0.0
        %1317 = vmatpush1.msra.mxu0 %v1036
        %1318 = vmatprep.subr.mxu0 0.0
        %1319 = vmatpush1.msra.mxu0 %v1037
        %1320 = vmatprep.subr.mxu0 0.0
        %1321 = vmatpush1.msra.mxu0 %v1038
        %1322 = vmatprep.subr.mxu0 0.0
        %1323 = vmatpush1.msra.mxu0 %v1039
        %1324 = vmatprep.subr.mxu0 0.0
        %1325 = vmatpush1.msra.mxu0 %v1040
        %1326 = vmatprep.subr.mxu0 0.0
        %1327 = vmatpush1.msra.mxu0 %v1041
        %1328 = vmatprep.subr.mxu0 0.0
        %1329 = vmatpush1.msra.mxu0 %v1042
        %1330 = vmatprep.subr.mxu0 0.0
        %1331 = vmatpush1.msra.mxu0 %v1043
        %1332 = vmatprep.subr.mxu0 0.0
        %1333 = vmatpush1.msra.mxu0 %v1044
        %1334 = vmatprep.subr.mxu0 0.0
        %1335 = vmatpush1.msra.mxu0 %v1045
        %1336 = vmatprep.subr.mxu0 0.0
        %1337 = vmatpush1.msra.mxu0 %v1046
        %1338 = vmatprep.subr.mxu0 0.0
        %1339 = vmatpush1.msra.mxu0 %v1047
        %1340 = vmatprep.subr.mxu0 0.0
        %1341 = vmatpush1.msra.mxu0 %v1048
        %1342 = vmatprep.subr.mxu0 0.0
        %1343 = vmatpush1.msra.mxu0 %v1049
        %1344 = vmatprep.subr.mxu0 0.0
        %1345 = vmatpush1.msra.mxu0 %v1050
        %1346 = vmatprep.mubr.f32.mxu0 %v1004
        %1347 = vmatmul.mubr.f32.gmra.mrb[0].mxu0 %v1003
        %v1348 = vpop.f32.mrb[0].mxu0
        %v1349 = vadd.f32 %v1280, %v1348
        %v1350 = vpop.f32.mrb[0].mxu0
        %1351 = vdwg.mxu0
        %1352 = vmatprep.subr.mxu0 0.0
        %1353 = vmatpush1.msra.mxu0 %v1051
        %1354 = vmatprep.subr.mxu0 0.0
        %1355 = vmatpush1.msra.mxu0 %v1052
        %1356 = vmatprep.subr.mxu0 0.0
        %1357 = vmatpush1.msra.mxu0 %v1053
        %1358 = vmatprep.subr.mxu0 0.0
        %1359 = vmatpush1.msra.mxu0 %v1054
        %1360 = vmatprep.subr.mxu0 0.0
        %1361 = vmatpush1.msra.mxu0 %v1055
        %1362 = vmatprep.subr.mxu0 0.0
        %1363 = vmatpush1.msra.mxu0 %v1056
        %1364 = vmatprep.subr.mxu0 0.0
        %1365 = vmatpush1.msra.mxu0 %v1057
        %1366 = vmatprep.subr.mxu0 0.0
        %1367 = vmatpush1.msra.mxu0 %v1058
        %1368 = vmatprep.subr.mxu0 0.0
        %1369 = vmatpush1.msra.mxu0 %v1059
        %1370 = vmatprep.subr.mxu0 0.0
        %1371 = vmatpush1.msra.mxu0 %v1060
        %1372 = vmatprep.subr.mxu0 0.0
        %1373 = vmatpush1.msra.mxu0 %v1061
        %1374 = vmatprep.subr.mxu0 0.0
        %1375 = vmatpush1.msra.mxu0 %v1062
        %1376 = vmatprep.subr.mxu0 0.0
        %1377 = vmatpush1.msra.mxu0 %v1063
        %1378 = vmatprep.subr.mxu0 0.0
        %1379 = vmatpush1.msra.mxu0 %v1064
        %1380 = vmatprep.subr.mxu0 0.0
        %1381 = vmatpush1.msra.mxu0 %v1065
        %1382 = vmatprep.subr.mxu0 0.0
        %1383 = vmatpush1.msra.mxu0 %v1066
        %1384 = vmatprep.subr.mxu0 0.0
        %1385 = vmatpush1.msra.mxu0 %v1067
        %1386 = vmatprep.subr.mxu0 0.0
        %1387 = vmatpush1.msra.mxu0 %v1068
        %1388 = vmatprep.subr.mxu0 0.0
        %1389 = vmatpush1.msra.mxu0 %v1069
        %1390 = vmatprep.subr.mxu0 0.0
        %1391 = vmatpush1.msra.mxu0 %v1070
        %1392 = vmatprep.subr.mxu0 0.0
        %1393 = vmatpush1.msra.mxu0 %v1071
        %1394 = vmatprep.subr.mxu0 0.0
        %1395 = vmatpush1.msra.mxu0 %v1072
        %1396 = vmatprep.subr.mxu0 0.0
        %1397 = vmatpush1.msra.mxu0 %v1073
        %1398 = vmatprep.subr.mxu0 0.0
        %1399 = vmatpush1.msra.mxu0 %v1074
        %1400 = vmatprep.subr.mxu0 0.0
        %1401 = vmatpush1.msra.mxu0 %v1075
        %1402 = vmatprep.subr.mxu0 0.0
        %1403 = vmatpush1.msra.mxu0 %v1076
        %1404 = vmatprep.subr.mxu0 0.0
        %1405 = vmatpush1.msra.mxu0 %v1077
        %1406 = vmatprep.subr.mxu0 0.0
        %1407 = vmatpush1.msra.mxu0 %v1078
        %1408 = vmatprep.subr.mxu0 0.0
        %1409 = vmatpush1.msra.mxu0 %v1079
        %1410 = vmatprep.subr.mxu0 0.0
        %1411 = vmatpush1.msra.mxu0 %v1080
        %1412 = vmatprep.subr.mxu0 0.0
        %1413 = vmatpush1.msra.mxu0 %v1081
        %1414 = vmatprep.subr.mxu0 0.0
        %1415 = vmatpush1.msra.mxu0 %v1082
        %1416 = vmatprep.mubr.f32.mxu0 %v1006
        %1417 = vmatmul.mubr.f32.gmra.mrb[0].mxu0 %v1005
        %v1418 = vpop.f32.mrb[0].mxu0
        %v1419 = vadd.f32 %v1349, %v1418
        %v1420 = vpop.f32.mrb[0].mxu0
        %1421 = vdwg.mxu0
        %1422 = vmatprep.subr.mxu0 0.0
        %1423 = vmatpush1.msra.mxu0 %v1083
        %1424 = vmatprep.subr.mxu0 0.0
        %1425 = vmatpush1.msra.mxu0 %v1084
        %1426 = vmatprep.subr.mxu0 0.0
        %1427 = vmatpush1.msra.mxu0 %v1085
        %1428 = vmatprep.subr.mxu0 0.0
        %1429 = vmatpush1.msra.mxu0 %v1086
        %1430 = vmatprep.subr.mxu0 0.0
        %1431 = vmatpush1.msra.mxu0 %v1087
        %1432 = vmatprep.subr.mxu0 0.0
        %1433 = vmatpush1.msra.mxu0 %v1088
        %1434 = vmatprep.subr.mxu0 0.0
        %1435 = vmatpush1.msra.mxu0 %v1089
        %1436 = vmatprep.subr.mxu0 0.0
        %1437 = vmatpush1.msra.mxu0 %v1090
        %1438 = vmatprep.subr.mxu0 0.0
        %1439 = vmatpush1.msra.mxu0 %v1091
        %1440 = vmatprep.subr.mxu0 0.0
        %1441 = vmatpush1.msra.mxu0 %v1092
        %1442 = vmatprep.subr.mxu0 0.0
        %1443 = vmatpush1.msra.mxu0 %v1093
        %1444 = vmatprep.subr.mxu0 0.0
        %1445 = vmatpush1.msra.mxu0 %v1094
        %1446 = vmatprep.subr.mxu0 0.0
        %1447 = vmatpush1.msra.mxu0 %v1095
        %1448 = vmatprep.subr.mxu0 0.0
        %1449 = vmatpush1.msra.mxu0 %v1096
        %1450 = vmatprep.subr.mxu0 0.0
        %1451 = vmatpush1.msra.mxu0 %v1097
        %1452 = vmatprep.subr.mxu0 0.0
        %1453 = vmatpush1.msra.mxu0 %v1098
        %1454 = vmatprep.subr.mxu0 0.0
        %1455 = vmatpush1.msra.mxu0 %v1099
        %1456 = vmatprep.subr.mxu0 0.0
        %1457 = vmatpush1.msra.mxu0 %v1100
        %1458 = vmatprep.subr.mxu0 0.0
        %1459 = vmatpush1.msra.mxu0 %v1101
        %1460 = vmatprep.subr.mxu0 0.0
        %1461 = vmatpush1.msra.mxu0 %v1102
        %1462 = vmatprep.subr.mxu0 0.0
        %1463 = vmatpush1.msra.mxu0 %v1103
        %1464 = vmatprep.subr.mxu0 0.0
        %1465 = vmatpush1.msra.mxu0 %v1104
        %1466 = vmatprep.subr.mxu0 0.0
        %1467 = vmatpush1.msra.mxu0 %v1105
        %1468 = vmatprep.subr.mxu0 0.0
        %1469 = vmatpush1.msra.mxu0 %v1106
        %1470 = vmatprep.subr.mxu0 0.0
        %1471 = vmatpush1.msra.mxu0 %v1107
        %1472 = vmatprep.subr.mxu0 0.0
        %1473 = vmatpush1.msra.mxu0 %v1108
        %1474 = vmatprep.subr.mxu0 0.0
        %1475 = vmatpush1.msra.mxu0 %v1109
        %1476 = vmatprep.subr.mxu0 0.0
        %1477 = vmatpush1.msra.mxu0 %v1110
        %1478 = vmatprep.subr.mxu0 0.0
        %1479 = vmatpush1.msra.mxu0 %v1111
        %1480 = vmatprep.subr.mxu0 0.0
        %1481 = vmatpush1.msra.mxu0 %v1112
        %1482 = vmatprep.subr.mxu0 0.0
        %1483 = vmatpush1.msra.mxu0 %v1113
        %1484 = vmatprep.subr.mxu0 0.0
        %1485 = vmatpush1.msra.mxu0 %v1114
        %1486 = vmatprep.mubr.f32.mxu0 %v1008
        %1487 = vmatmul.mubr.f32.gmra.mrb[0].mxu0 %v1007
        %v1488 = vpop.f32.mrb[0].mxu0
        %v1489 = vadd.f32 %v1419, %v1488
        %v1490 = vpop.f32.mrb[0].mxu0
        %1491 = vdwg.mxu0
        %1492 = vmatprep.subr.mxu0 0.0
        %1493 = vmatpush1.msra.mxu0 %v1115
        %1494 = vmatprep.subr.mxu0 0.0
        %1495 = vmatpush1.msra.mxu0 %v1116
        %1496 = vmatprep.subr.mxu0 0.0
        %1497 = vmatpush1.msra.mxu0 %v1117
        %1498 = vmatprep.subr.mxu0 0.0
        %1499 = vmatpush1.msra.mxu0 %v1118
        %1500 = vmatprep.subr.mxu0 0.0
        %1501 = vmatpush1.msra.mxu0 %v1119
        %1502 = vmatprep.subr.mxu0 0.0
        %1503 = vmatpush1.msra.mxu0 %v1120
        %1504 = vmatprep.subr.mxu0 0.0
        %1505 = vmatpush1.msra.mxu0 %v1121
        %1506 = vmatprep.subr.mxu0 0.0
        %1507 = vmatpush1.msra.mxu0 %v1122
        %1508 = vmatprep.subr.mxu0 0.0
        %1509 = vmatpush1.msra.mxu0 %v1123
        %1510 = vmatprep.subr.mxu0 0.0
        %1511 = vmatpush1.msra.mxu0 %v1124
        %1512 = vmatprep.subr.mxu0 0.0
        %1513 = vmatpush1.msra.mxu0 %v1125
        %1514 = vmatprep.subr.mxu0 0.0
        %1515 = vmatpush1.msra.mxu0 %v1126
        %1516 = vmatprep.subr.mxu0 0.0
        %1517 = vmatpush1.msra.mxu0 %v1127
        %1518 = vmatprep.subr.mxu0 0.0
        %1519 = vmatpush1.msra.mxu0 %v1128
        %1520 = vmatprep.subr.mxu0 0.0
        %1521 = vmatpush1.msra.mxu0 %v1129
        %1522 = vmatprep.subr.mxu0 0.0
        %1523 = vmatpush1.msra.mxu0 %v1130
        %1524 = vmatprep.subr.mxu0 0.0
        %1525 = vmatpush1.msra.mxu0 %v1131
        %1526 = vmatprep.subr.mxu0 0.0
        %1527 = vmatpush1.msra.mxu0 %v1132
        %1528 = vmatprep.subr.mxu0 0.0
        %1529 = vmatpush1.msra.mxu0 %v1133
        %1530 = vmatprep.subr.mxu0 0.0
        %1531 = vmatpush1.msra.mxu0 %v1134
        %1532 = vmatprep.subr.mxu0 0.0
        %1533 = vmatpush1.msra.mxu0 %v1135
        %1534 = vmatprep.subr.mxu0 0.0
        %1535 = vmatpush1.msra.mxu0 %v1136
        %1536 = vmatprep.subr.mxu0 0.0
        %1537 = vmatpush1.msra.mxu0 %v1137
        %1538 = vmatprep.subr.mxu0 0.0
        %1539 = vmatpush1.msra.mxu0 %v1138
        %1540 = vmatprep.subr.mxu0 0.0
        %1541 = vmatpush1.msra.mxu0 %v1139
        %1542 = vmatprep.subr.mxu0 0.0
        %1543 = vmatpush1.msra.mxu0 %v1140
        %1544 = vmatprep.subr.mxu0 0.0
        %1545 = vmatpush1.msra.mxu0 %v1141
        %1546 = vmatprep.subr.mxu0 0.0
        %1547 = vmatpush1.msra.mxu0 %v1142
        %1548 = vmatprep.subr.mxu0 0.0
        %1549 = vmatpush1.msra.mxu0 %v1143
        %1550 = vmatprep.subr.mxu0 0.0
        %1551 = vmatpush1.msra.mxu0 %v1144
        %1552 = vmatprep.subr.mxu0 0.0
        %1553 = vmatpush1.msra.mxu0 %v1145
        %1554 = vmatprep.subr.mxu0 0.0
        %1555 = vmatpush1.msra.mxu0 %v1146
        %1556 = vmatprep.mubr.f32.mxu0 %v1010
        %1557 = vmatmul.mubr.f32.gmra.mrb[0].mxu0 %v1009
        %v1558 = vpop.f32.mrb[0].mxu0
        %v1559 = vadd.f32 %v1489, %v1558
        %v1560 = vpop.f32.mrb[0].mxu0
        %1561 = vdwg.mxu0
        %1562 = vmatprep.subr.mxu0 0.0
        %1563 = vmatpush1.msra.mxu0 %v1147
        %1564 = vmatprep.subr.mxu0 0.0
        %1565 = vmatpush1.msra.mxu0 %v1148
        %1566 = vmatprep.subr.mxu0 0.0
        %1567 = vmatpush1.msra.mxu0 %v1149
        %1568 = vmatprep.subr.mxu0 0.0
        %1569 = vmatpush1.msra.mxu0 %v1150
        %1570 = vmatprep.subr.mxu0 0.0
        %1571 = vmatpush1.msra.mxu0 %v1151
        %1572 = vmatprep.subr.mxu0 0.0
        %1573 = vmatpush1.msra.mxu0 %v1152
        %1574 = vmatprep.subr.mxu0 0.0
        %1575 = vmatpush1.msra.mxu0 %v1153
        %1576 = vmatprep.subr.mxu0 0.0
        %1577 = vmatpush1.msra.mxu0 %v1154
        %1578 = vmatprep.subr.mxu0 0.0
        %1579 = vmatpush1.msra.mxu0 %v1155
        %1580 = vmatprep.subr.mxu0 0.0
        %1581 = vmatpush1.msra.mxu0 %v1156
        %1582 = vmatprep.subr.mxu0 0.0
        %1583 = vmatpush1.msra.mxu0 %v1157
        %1584 = vmatprep.subr.mxu0 0.0
        %1585 = vmatpush1.msra.mxu0 %v1158
        %1586 = vmatprep.subr.mxu0 0.0
        %1587 = vmatpush1.msra.mxu0 %v1159
        %1588 = vmatprep.subr.mxu0 0.0
        %1589 = vmatpush1.msra.mxu0 %v1160
        %1590 = vmatprep.subr.mxu0 0.0
        %1591 = vmatpush1.msra.mxu0 %v1161
        %1592 = vmatprep.subr.mxu0 0.0
        %1593 = vmatpush1.msra.mxu0 %v1162
        %1594 = vmatprep.subr.mxu0 0.0
        %1595 = vmatpush1.msra.mxu0 %v1163
        %1596 = vmatprep.subr.mxu0 0.0
        %1597 = vmatpush1.msra.mxu0 %v1164
        %1598 = vmatprep.subr.mxu0 0.0
        %1599 = vmatpush1.msra.mxu0 %v1165
        %1600 = vmatprep.subr.mxu0 0.0
        %1601 = vmatpush1.msra.mxu0 %v1166
        %1602 = vmatprep.subr.mxu0 0.0
        %1603 = vmatpush1.msra.mxu0 %v1167
        %1604 = vmatprep.subr.mxu0 0.0
        %1605 = vmatpush1.msra.mxu0 %v1168
        %1606 = vmatprep.subr.mxu0 0.0
        %1607 = vmatpush1.msra.mxu0 %v1169
        %1608 = vmatprep.subr.mxu0 0.0
        %1609 = vmatpush1.msra.mxu0 %v1170
        %1610 = vmatprep.subr.mxu0 0.0
        %1611 = vmatpush1.msra.mxu0 %v1171
        %1612 = vmatprep.subr.mxu0 0.0
        %1613 = vmatpush1.msra.mxu0 %v1172
        %1614 = vmatprep.subr.mxu0 0.0
        %1615 = vmatpush1.msra.mxu0 %v1173
        %1616 = vmatprep.subr.mxu0 0.0
        %1617 = vmatpush1.msra.mxu0 %v1174
        %1618 = vmatprep.subr.mxu0 0.0
        %1619 = vmatpush1.msra.mxu0 %v1175
        %1620 = vmatprep.subr.mxu0 0.0
        %1621 = vmatpush1.msra.mxu0 %v1176
        %1622 = vmatprep.subr.mxu0 0.0
        %1623 = vmatpush1.msra.mxu0 %v1177
        %1624 = vmatprep.subr.mxu0 0.0
        %1625 = vmatpush1.msra.mxu0 %v1178
        %1626 = vmatprep.mubr.f32.mxu0 %v1012
        %1627 = vmatmul.mubr.f32.gmra.mrb[0].mxu0 %v1011
        %v1628 = vpop.f32.mrb[0].mxu0
        %v1629 = vadd.f32 %v1559, %v1628
        %v1630 = vpop.f32.mrb[0].mxu0
        %1631 = vdwg.mxu0
        %1632 = vmatprep.subr.mxu0 0.0
        %1633 = vmatpush1.msra.mxu0 %v1179
        %1634 = vmatprep.subr.mxu0 0.0
        %1635 = vmatpush1.msra.mxu0 %v1180
        %1636 = vmatprep.subr.mxu0 0.0
        %1637 = vmatpush1.msra.mxu0 %v1181
        %1638 = vmatprep.subr.mxu0 0.0
        %1639 = vmatpush1.msra.mxu0 %v1182
        %1640 = vmatprep.subr.mxu0 0.0
        %1641 = vmatpush1.msra.mxu0 %v1183
        %1642 = vmatprep.subr.mxu0 0.0
        %1643 = vmatpush1.msra.mxu0 %v1184
        %1644 = vmatprep.subr.mxu0 0.0
        %1645 = vmatpush1.msra.mxu0 %v1185
        %1646 = vmatprep.subr.mxu0 0.0
        %1647 = vmatpush1.msra.mxu0 %v1186
        %1648 = vmatprep.subr.mxu0 0.0
        %1649 = vmatpush1.msra.mxu0 %v1187
        %1650 = vmatprep.subr.mxu0 0.0
        %1651 = vmatpush1.msra.mxu0 %v1188
        %1652 = vmatprep.subr.mxu0 0.0
        %1653 = vmatpush1.msra.mxu0 %v1189
        %1654 = vmatprep.subr.mxu0 0.0
        %1655 = vmatpush1.msra.mxu0 %v1190
        %1656 = vmatprep.subr.mxu0 0.0
        %1657 = vmatpush1.msra.mxu0 %v1191
        %1658 = vmatprep.subr.mxu0 0.0
        %1659 = vmatpush1.msra.mxu0 %v1192
        %1660 = vmatprep.subr.mxu0 0.0
        %1661 = vmatpush1.msra.mxu0 %v1193
        %1662 = vmatprep.subr.mxu0 0.0
        %1663 = vmatpush1.msra.mxu0 %v1194
        %1664 = vmatprep.subr.mxu0 0.0
        %1665 = vmatpush1.msra.mxu0 %v1195
        %1666 = vmatprep.subr.mxu0 0.0
        %1667 = vmatpush1.msra.mxu0 %v1196
        %1668 = vmatprep.subr.mxu0 0.0
        %1669 = vmatpush1.msra.mxu0 %v1197
        %1670 = vmatprep.subr.mxu0 0.0
        %1671 = vmatpush1.msra.mxu0 %v1198
        %1672 = vmatprep.subr.mxu0 0.0
        %1673 = vmatpush1.msra.mxu0 %v1199
        %1674 = vmatprep.subr.mxu0 0.0
        %1675 = vmatpush1.msra.mxu0 %v1200
        %1676 = vmatprep.subr.mxu0 0.0
        %1677 = vmatpush1.msra.mxu0 %v1201
        %1678 = vmatprep.subr.mxu0 0.0
        %1679 = vmatpush1.msra.mxu0 %v1202
        %1680 = vmatprep.subr.mxu0 0.0
        %1681 = vmatpush1.msra.mxu0 %v1203
        %1682 = vmatprep.subr.mxu0 0.0
        %1683 = vmatpush1.msra.mxu0 %v1204
        %1684 = vmatprep.subr.mxu0 0.0
        %1685 = vmatpush1.msra.mxu0 %v1205
        %1686 = vmatprep.subr.mxu0 0.0
        %1687 = vmatpush1.msra.mxu0 %v1206
        %1688 = vmatprep.subr.mxu0 0.0
        %1689 = vmatpush1.msra.mxu0 %v1207
        %1690 = vmatprep.subr.mxu0 0.0
        %1691 = vmatpush1.msra.mxu0 %v1208
        %1692 = vmatprep.subr.mxu0 0.0
        %1693 = vmatpush1.msra.mxu0 %v1209
        %1694 = vmatprep.subr.mxu0 0.0
        %1695 = vmatpush1.msra.mxu0 %v1210
        %1696 = vmatprep.mubr.f32.mxu0 %v1014
        %1697 = vmatmul.mubr.f32.gmra.mrb[0].mxu0 %v1013
        %v1698 = vpop.f32.mrb[0].mxu0
        %v1699 = vadd.f32 %v1629, %v1698
        %v1700 = vpop.f32.mrb[0].mxu0
        %1701 = vdwg.mxu0
        %1702 = vmatprep.subr.mxu0 0.0
        %1703 = vmatpush1.msra.mxu0 %v1211
        %1704 = vmatprep.subr.mxu0 0.0
        %1705 = vmatpush1.msra.mxu0 %v1212
        %1706 = vmatprep.subr.mxu0 0.0
        %1707 = vmatpush1.msra.mxu0 %v1213
        %1708 = vmatprep.subr.mxu0 0.0
        %1709 = vmatpush1.msra.mxu0 %v1214
        %1710 = vmatprep.subr.mxu0 0.0
        %1711 = vmatpush1.msra.mxu0 %v1215
        %1712 = vmatprep.subr.mxu0 0.0
        %1713 = vmatpush1.msra.mxu0 %v1216
        %1714 = vmatprep.subr.mxu0 0.0
        %1715 = vmatpush1.msra.mxu0 %v1217
        %1716 = vmatprep.subr.mxu0 0.0
        %1717 = vmatpush1.msra.mxu0 %v1218
        %1718 = vmatprep.subr.mxu0 0.0
        %1719 = vmatpush1.msra.mxu0 %v1219
        %1720 = vmatprep.subr.mxu0 0.0
        %1721 = vmatpush1.msra.mxu0 %v1220
        %1722 = vmatprep.subr.mxu0 0.0
        %1723 = vmatpush1.msra.mxu0 %v1221
        %1724 = vmatprep.subr.mxu0 0.0
        %1725 = vmatpush1.msra.mxu0 %v1222
        %1726 = vmatprep.subr.mxu0 0.0
        %1727 = vmatpush1.msra.mxu0 %v1223
        %1728 = vmatprep.subr.mxu0 0.0
        %1729 = vmatpush1.msra.mxu0 %v1224
        %1730 = vmatprep.subr.mxu0 0.0
        %1731 = vmatpush1.msra.mxu0 %v1225
        %1732 = vmatprep.subr.mxu0 0.0
        %1733 = vmatpush1.msra.mxu0 %v1226
        %1734 = vmatprep.subr.mxu0 0.0
        %1735 = vmatpush1.msra.mxu0 %v1227
        %1736 = vmatprep.subr.mxu0 0.0
        %1737 = vmatpush1.msra.mxu0 %v1228
        %1738 = vmatprep.subr.mxu0 0.0
        %1739 = vmatpush1.msra.mxu0 %v1229
        %1740 = vmatprep.subr.mxu0 0.0
        %1741 = vmatpush1.msra.mxu0 %v1230
        %1742 = vmatprep.subr.mxu0 0.0
        %1743 = vmatpush1.msra.mxu0 %v1231
        %1744 = vmatprep.subr.mxu0 0.0
        %1745 = vmatpush1.msra.mxu0 %v1232
        %1746 = vmatprep.subr.mxu0 0.0
        %1747 = vmatpush1.msra.mxu0 %v1233
        %1748 = vmatprep.subr.mxu0 0.0
        %1749 = vmatpush1.msra.mxu0 %v1234
        %1750 = vmatprep.subr.mxu0 0.0
        %1751 = vmatpush1.msra.mxu0 %v1235
        %1752 = vmatprep.subr.mxu0 0.0
        %1753 = vmatpush1.msra.mxu0 %v1236
        %1754 = vmatprep.subr.mxu0 0.0
        %1755 = vmatpush1.msra.mxu0 %v1237
        %1756 = vmatprep.subr.mxu0 0.0
        %1757 = vmatpush1.msra.mxu0 %v1238
        %1758 = vmatprep.subr.mxu0 0.0
        %1759 = vmatpush1.msra.mxu0 %v1239
        %1760 = vmatprep.subr.mxu0 0.0
        %1761 = vmatpush1.msra.mxu0 %v1240
        %1762 = vmatprep.subr.mxu0 0.0
        %1763 = vmatpush1.msra.mxu0 %v1241
        %1764 = vmatprep.subr.mxu0 0.0
        %1765 = vmatpush1.msra.mxu0 %v1242
        %1766 = vmatprep.mubr.f32.mxu0 %v1016
        %1767 = vmatmul.mubr.f32.gmra.mrb[0].mxu0 %v1015
        %v1768 = vpop.f32.mrb[0].mxu0
        %v1769 = vadd.f32 %v1699, %v1768
        %v1770 = vpop.f32.mrb[0].mxu0
        %1771 = vdwg.mxu0
        %1772 = vmatprep.subr.mxu0 0.0
        %1773 = vmatpush1.msra.mxu0 %v1243
        %1774 = vmatprep.subr.mxu0 0.0
        %1775 = vmatpush1.msra.mxu0 %v1244
        %1776 = vmatprep.subr.mxu0 0.0
        %1777 = vmatpush1.msra.mxu0 %v1245
        %1778 = vmatprep.subr.mxu0 0.0
        %1779 = vmatpush1.msra.mxu0 %v1246
        %1780 = vmatprep.subr.mxu0 0.0
        %1781 = vmatpush1.msra.mxu0 %v1247
        %1782 = vmatprep.subr.mxu0 0.0
        %1783 = vmatpush1.msra.mxu0 %v1248
        %1784 = vmatprep.subr.mxu0 0.0
        %1785 = vmatpush1.msra.mxu0 %v1249
        %1786 = vmatprep.subr.mxu0 0.0
        %1787 = vmatpush1.msra.mxu0 %v1250
        %1788 = vmatprep.subr.mxu0 0.0
        %1789 = vmatpush1.msra.mxu0 %v1251
        %1790 = vmatprep.subr.mxu0 0.0
        %1791 = vmatpush1.msra.mxu0 %v1252
        %1792 = vmatprep.subr.mxu0 0.0
        %1793 = vmatpush1.msra.mxu0 %v1253
        %1794 = vmatprep.subr.mxu0 0.0
        %1795 = vmatpush1.msra.mxu0 %v1254
        %1796 = vmatprep.subr.mxu0 0.0
        %1797 = vmatpush1.msra.mxu0 %v1255
        %1798 = vmatprep.subr.mxu0 0.0
        %1799 = vmatpush1.msra.mxu0 %v1256
        %1800 = vmatprep.subr.mxu0 0.0
        %1801 = vmatpush1.msra.mxu0 %v1257
        %1802 = vmatprep.subr.mxu0 0.0
        %1803 = vmatpush1.msra.mxu0 %v1258
        %1804 = vmatprep.subr.mxu0 0.0
        %1805 = vmatpush1.msra.mxu0 %v1259
        %1806 = vmatprep.subr.mxu0 0.0
        %1807 = vmatpush1.msra.mxu0 %v1260
        %1808 = vmatprep.subr.mxu0 0.0
        %1809 = vmatpush1.msra.mxu0 %v1261
        %1810 = vmatprep.subr.mxu0 0.0
        %1811 = vmatpush1.msra.mxu0 %v1262
        %1812 = vmatprep.subr.mxu0 0.0
        %1813 = vmatpush1.msra.mxu0 %v1263
        %1814 = vmatprep.subr.mxu0 0.0
        %1815 = vmatpush1.msra.mxu0 %v1264
        %1816 = vmatprep.subr.mxu0 0.0
        %1817 = vmatpush1.msra.mxu0 %v1265
        %1818 = vmatprep.subr.mxu0 0.0
        %1819 = vmatpush1.msra.mxu0 %v1266
        %1820 = vmatprep.subr.mxu0 0.0
        %1821 = vmatpush1.msra.mxu0 %v1267
        %1822 = vmatprep.subr.mxu0 0.0
        %1823 = vmatpush1.msra.mxu0 %v1268
        %1824 = vmatprep.subr.mxu0 0.0
        %1825 = vmatpush1.msra.mxu0 %v1269
        %1826 = vmatprep.subr.mxu0 0.0
        %1827 = vmatpush1.msra.mxu0 %v1270
        %1828 = vmatprep.subr.mxu0 0.0
        %1829 = vmatpush1.msra.mxu0 %v1271
        %1830 = vmatprep.subr.mxu0 0.0
        %1831 = vmatpush1.msra.mxu0 %v1272
        %1832 = vmatprep.subr.mxu0 0.0
        %1833 = vmatpush1.msra.mxu0 %v1273
        %1834 = vmatprep.subr.mxu0 0.0
        %1835 = vmatpush1.msra.mxu0 %v1274
        %1836 = vmatprep.mubr.f32.mxu0 %v1018
        %1837 = vmatmul.mubr.f32.gmra.mrb[0].mxu0 %v1017
        %v1838 = vpop.f32.mrb[0].mxu0
        %v1839 = vadd.f32 %v1769, %v1838
        %v1840 = vpop.f32.mrb[0].mxu0
        %1841 = vdwg.mxu0
        %1842 = vst [vmem:[%s281] sm:$0xff] %v1839
        %s1843 = sand.u32 %s142, 1
        %s1844 = scalar_lea.sflag [#allocation4], %s1843
        %s1845 = sand.u32 %s142, 1
        %s1846 = smul.addr %s1845, 8
        %s1847 = scalar_lea.vmem [#allocation10], %s1846
        // Predicated region
        $region57: #{tpu_custom_call.1} parent=39 // pred_check
          %p1848 = pneg %p152
        $region58: #{tpu_custom_call.1} parent=39 // pred_check_branch
          %1850 = sbr.rel (%p1848) target = $region60
        $region59: #{tpu_custom_call.1} parent=39 // pred_region
          %s1852 = ssub.s32 128, 128
          %1853 = vsyncadd %s1844, %s1852
          %s1854 = smul.addr %s24, 128
          %s1855 = scalar_lea.hbm %s5, %s1854
          %s1857 = sshll.u32 %s1847, 4
          %s1858 = int_to_ptr.vmem [resolvable:$true] %s1857
          %1860 = dma.vmem_to_hbm [thread:$0]  %s1858, 128, %s1855, %s1844
        $region60: #{tpu_custom_call.1} parent=39 // pred_fallthru
          _
      $region40: #{tpu_custom_call.1} parent=5 // pred_fallthru
        _
      %p1861 = scmp.le.s32.totalorder 2, %s19
      // Predicated region
      $region61: #{tpu_custom_call.1} parent=5 // pred_check
        %p1862 = pneg %p1861
      $region62: #{tpu_custom_call.1} parent=5 // pred_check_branch
        %1864 = sbr.rel (%p1862) target = $region64
      $region63: #{tpu_custom_call.1} parent=5 // pred_region
        %s1865 = ssub.s32 %s19, 2
        // Predicated region
        $region65: #{tpu_custom_call.1} parent=63 // pred_check
          %p1866 = pneg %p158
        $region66: #{tpu_custom_call.1} parent=63 // pred_check_branch
          %1868 = sbr.rel (%p1866) target = $region68
        $region67: #{tpu_custom_call.1} parent=63 // pred_region
          %s1869 = sand.u32 %s143, 1
          %s1870 = scalar_lea.sflag [#allocation4], %s1869
          %s1871 = sand.u32 %s143, 1
          %s1872 = smul.addr %s1871, 8
          %s1873 = scalar_lea.vmem [#allocation10], %s1872
          %1874 = dma.done %s1870, 128
        $region68: #{tpu_custom_call.1} parent=63 // pred_fallthru
          _
      $region64: #{tpu_custom_call.1} parent=5 // pred_fallthru
        _
    $region6: #{tpu_custom_call.1} parent=1 // loop_footer
      %s23 = sadd.s32 1, %s19
    $region7: #{tpu_custom_call.1} parent=1 // loop_footer_branch
      %18 = sbr.rel target = $region3
    $region8: #{tpu_custom_call.1} parent=1 // loop_exit
      _
    %1875 = vsyncpa [#allocation3], 1
    %s1876 = scalar_lea.sflag [#allocation3], 1
    %1877 = vsyncpa %s1876, 1
    %1878 = vsyncpa [#allocation6], 1
    %1879 = vsyncpa [#allocation9], 1
    %1880 = vsyncpa [#allocation4], 1
    %s1881 = scalar_lea.sflag [#allocation4], 1
    %1882 = vsyncpa %s1881, 1

// kernel: tpu_custom_call.1
$region0: #{tpu_custom_call.1}
  #allocation0 [shape = 'u32[]', space=smem, size = 0x4, offset = 0x4, fixed_abs, tag = 'smem constant byte address 0x4 - core index']
  #allocation1 [shape = 'u32[144,128]{1,0:T(1,128)}', space=vmem, size = 0x12000, scoped, tag = 'internal scratch']
  %s0 = inlined_call_operand.hbm [shape: f32[16,32], index: 0, kind: input, shape index: {}]
  %s1 = inlined_call_operand.hbm [shape: f32[32,2048], index: 1, kind: input, shape index: {}]
  %s2 = inlined_call_operand.hbm [shape: f32[1,2048], index: 2, kind: input, shape index: {}]
  %s3 = inlined_call_operand.hbm [shape: f32[2048,128], index: 3, kind: input, shape index: {}]
  %s4 = inlined_call_operand.vmem [shape: f32[1,128], index: 4, kind: input, shape index: {}]
  %s5 = inlined_call_operand.hbm [shape: f32[16,128], index: 5, kind: output, shape index: {}]
  %s6 = sld [smem:[#allocation0]]
  $region69: #{tpu_custom_call.1} parent=0
    _
  %s8 = ssub.s32 1, %s6
  %s9 = scalar_select 0, %s8, %s6
  $region1: #{tpu_custom_call.1} parent=0
    #allocation2 [shape = 'u8[8192]{0}', space=vmem, size = 0x2000, scoped, tag = 'input window, operand 0']
    #allocation3 [shape = 's32[2]{0}', space=sflag, size = 0x8, scoped, tag = 'scoped memory for tpu_custom_call.1']
    #allocation4 [shape = 's32[2]{0}', space=sflag, size = 0x8, scoped, tag = 'scoped memory for tpu_custom_call.1']
    #allocation5 [shape = 'u8[262144]{0}', space=vmem, size = 0x40000, scoped, tag = 'input window, operand 1, single buffered']
    #allocation6 [shape = 's32[1]{0}', space=sflag, size = 0x4, scoped, tag = 'scoped memory for tpu_custom_call.1']
    #allocation7 [shape = 'u8[8192]{0}', space=vmem, size = 0x2000, scoped, tag = 'input window, operand 2, single buffered']
    #allocation8 [shape = 'u8[1048576]{0}', space=vmem, size = 0x100000, scoped, tag = 'input window, operand 3, single buffered']
    #allocation9 [shape = 's32[1]{0}', space=sflag, size = 0x4, scoped, tag = 'scoped memory for tpu_custom_call.1']
    #allocation10 [shape = 'u8[8192]{0}', space=vmem, size = 0x2000, scoped, tag = 'output window, operand 0']
    %10 = vsyncpa [#allocation3], 0
    %s11 = scalar_lea.sflag [#allocation3], 1
    %12 = vsyncpa %s11, 0
    %13 = vsyncpa [#allocation6], 0
    %14 = vsyncpa [#allocation9], 0
    %15 = vsyncpa [#allocation4], 0
    %s16 = scalar_lea.sflag [#allocation4], 1
    %17 = vsyncpa %s16, 0
    loop: start=0, step=1, limit=4
    $region2: #{tpu_custom_call.1} parent=1 // loop_pre_header
      _
    $region3: #{tpu_custom_call.1} parent=1 // loop_header
      %s19 = sphi 0, %s23
      %p20 = scmp.ge.s32.totalorder %s19, 4
      %s29 = sphi 0, %s31
      %s32 = sphi 0, %s29
      %s33 = sphi 0, %s32
      %s49 = sphi 0, %s33
      %s53 = sphi 0, %s53
      %s55 = sphi 0, %s53
      %s56 = sphi 0, %s55
      %s70 = sphi 0, %s56
      %s74 = sphi 0, %s74
      %s76 = sphi 0, %s74
      %s77 = sphi 0, %s76
      %s91 = sphi 0, %s77
      %s95 = sphi 0, %s95
      %s97 = sphi 0, %s95
      %s98 = sphi 0, %s97
      %s112 = sphi 0, %s98
      %s116 = sphi 0, %s116
      %s118 = sphi 0, %s116
      %s119 = sphi 0, %s118
      %s133 = sphi 0, %s119
      %s139 = sphi 0, %s141
      %s142 = sphi 0, %s139
      %s143 = sphi 0, %s142
      %s159 = sphi 0, %s143
    $region4: #{tpu_custom_call.1} parent=1 // loop_header_branch
      %22 = sbr.rel (%p20) target = $region8
    $region5: #{tpu_custom_call.1} parent=1 // loop_body
      %s24 = ssub.s32 %s19, 1
      %s25 = ssub.s32 %s19, 2
      %s26 = sadd.s32 %s19, 1
      %s27 = ssub.s32 %s19, %s26
      %p28 = scmp.eq.s32.totalorder %s27, 0
      %s30 = sadd.s32 %s29, 1
      %s31 = scalar_select %p28, %s29, %s30
      %p34 = pneg %p28
      %p35 = scmp.eq.s32.totalorder %s19, 1
      %p36 = por %p34, %p35
      %p37 = scmp.ne.s32.totalorder %s29, %s32
      %p38 = scmp.eq.s32.totalorder %s19, 0
      %p39 = por %p37, %p38
      %p40 = scmp.ne.s32.totalorder %s29, %s32
      %p41 = scmp.eq.s32.totalorder %s24, 1
      %p42 = por %p40, %p41
      %p43 = scmp.ne.s32.totalorder %s32, %s33
      %p44 = scmp.eq.s32.totalorder %s24, 0
      %p45 = por %p43, %p44
      %p46 = scmp.ne.s32.totalorder %s32, %s33
      %p47 = scmp.eq.s32.totalorder %s25, 1
      %p48 = por %p46, %p47
      %p50 = scmp.ne.s32.totalorder %s33, %s49
      %p51 = scmp.eq.s32.totalorder %s25, 0
      %p52 = por %p50, %p51
      %s54 = sadd.s32 %s53, 1
      %p57 = scmp.eq.s32.totalorder %s19, 1
      %p58 = scmp.ne.s32.totalorder %s53, %s55
      %p59 = scmp.eq.s32.totalorder %s19, 0
      %p60 = por %p58, %p59
      %p61 = scmp.ne.s32.totalorder %s53, %s55
      %p62 = scmp.eq.s32.totalorder %s24, 1
      %p63 = por %p61, %p62
      %p64 = scmp.ne.s32.totalorder %s55, %s56
      %p65 = scmp.eq.s32.totalorder %s24, 0
      %p66 = por %p64, %p65
      %p67 = scmp.ne.s32.totalorder %s55, %s56
      %p68 = scmp.eq.s32.totalorder %s25, 1
      %p69 = por %p67, %p68
      %p71 = scmp.ne.s32.totalorder %s56, %s70
      %p72 = scmp.eq.s32.totalorder %s25, 0
      %p73 = por %p71, %p72
      %s75 = sadd.s32 %s74, 1
      %p78 = scmp.eq.s32.totalorder %s19, 1
      %p79 = scmp.ne.s32.totalorder %s74, %s76
      %p80 = scmp.eq.s32.totalorder %s19, 0
      %p81 = por %p79, %p80
      %p82 = scmp.ne.s32.totalorder %s74, %s76
      %p83 = scmp.eq.s32.totalorder %s24, 1
      %p84 = por %p82, %p83
      %p85 = scmp.ne.s32.totalorder %s76, %s77
      %p86 = scmp.eq.s32.totalorder %s24, 0
      %p87 = por %p85, %p86
      %p88 = scmp.ne.s32.totalorder %s76, %s77
      %p89 = scmp.eq.s32.totalorder %s25, 1
      %p90 = por %p88, %p89
      %p92 = scmp.ne.s32.totalorder %s77, %s91
      %p93 = scmp.eq.s32.totalorder %s25, 0
      %p94 = por %p92, %p93
      %s96 = sadd.s32 %s95, 1
      %p99 = scmp.eq.s32.totalorder %s19, 1
      %p100 = scmp.ne.s32.totalorder %s95, %s97
      %p101 = scmp.eq.s32.totalorder %s19, 0
      %p102 = por %p100, %p101
      %p103 = scmp.ne.s32.totalorder %s95, %s97
      %p104 = scmp.eq.s32.totalorder %s24, 1
      %p105 = por %p103, %p104
      %p106 = scmp.ne.s32.totalorder %s97, %s98
      %p107 = scmp.eq.s32.totalorder %s24, 0
      %p108 = por %p106, %p107
      %p109 = scmp.ne.s32.totalorder %s97, %s98
      %p110 = scmp.eq.s32.totalorder %s25, 1
      %p111 = por %p109, %p110
      %p113 = scmp.ne.s32.totalorder %s98, %s112
      %p114 = scmp.eq.s32.totalorder %s25, 0
      %p115 = por %p113, %p114
      %s117 = sadd.s32 %s116, 1
      %p120 = scmp.eq.s32.totalorder %s19, 1
      %p121 = scmp.ne.s32.totalorder %s116, %s118
      %p122 = scmp.eq.s32.totalorder %s19, 0
      %p123 = por %p121, %p122
      %p124 = scmp.ne.s32.totalorder %s116, %s118
      %p125 = scmp.eq.s32.totalorder %s24, 1
      %p126 = por %p124, %p125
      %p127 = scmp.ne.s32.totalorder %s118, %s119
      %p128 = scmp.eq.s32.totalorder %s24, 0
      %p129 = por %p127, %p128
      %p130 = scmp.ne.s32.totalorder %s118, %s119
      %p131 = scmp.eq.s32.totalorder %s25, 1
      %p132 = por %p130, %p131
      %p134 = scmp.ne.s32.totalorder %s119, %s133
      %p135 = scmp.eq.s32.totalorder %s25, 0
      %p136 = por %p134, %p135
      %s137 = ssub.s32 %s19, %s26
      %p138 = scmp.eq.s32.totalorder %s137, 0
      %s140 = sadd.s32 %s139, 1
      %s141 = scalar_select %p138, %s139, %s140
      %p144 = pneg %p138
      %p145 = scmp.eq.s32.totalorder %s19, 1
      %p146 = por %p144, %p145
      %p147 = scmp.ne.s32.totalorder %s139, %s142
      %p148 = scmp.eq.s32.totalorder %s19, 0
      %p149 = por %p147, %p148
      %p150 = scmp.ne.s32.totalorder %s139, %s142
      %p151 = scmp.eq.s32.totalorder %s24, 1
      %p152 = por %p150, %p151
      %p153 = scmp.ne.s32.totalorder %s142, %s143
      %p154 = scmp.eq.s32.totalorder %s24, 0
      %p155 = por %p153, %p154
      %p156 = scmp.ne.s32.totalorder %s142, %s143
      %p157 = scmp.eq.s32.totalorder %s25, 1
      %p158 = por %p156, %p157
      %p160 = scmp.ne.s32.totalorder %s143, %s159
      %p161 = scmp.eq.s32.totalorder %s25, 0
      %p162 = por %p160, %p161
      %p163 = scmp.le.s32.totalorder 1, %s19
      %p164 = scmp.lt.s32.totalorder %s19, 3
      %p165 = pnand %p163, %p164
      %p166 = pneg %p165
      // Predicated region
      $region9: #{tpu_custom_call.1} parent=5 // pred_check
        _
      $region10: #{tpu_custom_call.1} parent=5 // pred_check_branch
        %168 = sbr.rel (%p165) target = $region12
      $region11: #{tpu_custom_call.1} parent=5 // pred_region
        %s169 = ssub.s32 %s19, 1
        // Predicated region
        $region13: #{tpu_custom_call.1} parent=11 // pred_check
          %p170 = pneg %p66
        $region14: #{tpu_custom_call.1} parent=11 // pred_check_branch
          %172 = sbr.rel (%p170) target = $region16
        $region15: #{tpu_custom_call.1} parent=11 // pred_region
          %s174 = ssub.s32 8192, 8192
          %175 = vsyncadd [#allocation6], %s174
          %s176 = sshll.u32 [#allocation5], 4
          %s177 = int_to_ptr.vmem [resolvable:$true] %s176
          %182 = dma.hbm_to_vmem [thread:$0]  %s1, 8192, %s177, [#allocation6], 2048, 2048, 128
        $region16: #{tpu_custom_call.1} parent=11 // pred_fallthru
          _
        // Predicated region
        $region17: #{tpu_custom_call.1} parent=11 // pred_check
          %p183 = pneg %p87
        $region18: #{tpu_custom_call.1} parent=11 // pred_check_branch
          %185 = sbr.rel (%p183) target = $region20
        $region19: #{tpu_custom_call.1} parent=11 // pred_region
          %s187 = ssub.s32 256, 256
          %188 = vsyncadd [#allocation6], %s187
          %s190 = sshll.u32 [#allocation7], 4
          %s191 = int_to_ptr.vmem [resolvable:$true] %s190
          %193 = dma.hbm_to_vmem [thread:$0]  %s2, 256, %s191, [#allocation6]
        $region20: #{tpu_custom_call.1} parent=11 // pred_fallthru
          _
        // Predicated region
        $region21: #{tpu_custom_call.1} parent=11 // pred_check
          %p194 = pneg %p108
        $region22: #{tpu_custom_call.1} parent=11 // pred_check_branch
          %196 = sbr.rel (%p194) target = $region24
        $region23: #{tpu_custom_call.1} parent=11 // pred_region
          %s198 = ssub.s32 32768, 32768
          %199 = vsyncadd [#allocation9], %s198
          %s200 = sshll.u32 [#allocation8], 4
          %s201 = int_to_ptr.vmem [resolvable:$true] %s200
          %206 = dma.hbm_to_vmem [thread:$0]  %s3, 32768, %s201, [#allocation9], 128, 128, 8
        $region24: #{tpu_custom_call.1} parent=11 // pred_fallthru
          _
        // Predicated region
        $region25: #{tpu_custom_call.1} parent=11 // pred_check
          %p207 = pneg %p129
        $region26: #{tpu_custom_call.1} parent=11 // pred_check_branch
          %209 = sbr.rel (%p207) target = $region28
        $region27: #{tpu_custom_call.1} parent=11 // pred_region
          _
        $region28: #{tpu_custom_call.1} parent=11 // pred_fallthru
          _
      $region12: #{tpu_custom_call.1} parent=5 // pred_fallthru
        _
      %p210 = scmp.lt.s32.totalorder %s19, 2
      // Predicated region
      $region29: #{tpu_custom_call.1} parent=5 // pred_check
        %p211 = pneg %p210
      $region30: #{tpu_custom_call.1} parent=5 // pred_check_branch
        %213 = sbr.rel (%p211) target = $region32
      $region31: #{tpu_custom_call.1} parent=5 // pred_region
        // Predicated region
        $region33: #{tpu_custom_call.1} parent=31 // pred_check
          %p214 = pneg %p39
        $region34: #{tpu_custom_call.1} parent=31 // pred_check_branch
          %216 = sbr.rel (%p214) target = $region36
        $region35: #{tpu_custom_call.1} parent=31 // pred_region
          %s217 = sand.u32 %s29, 1
          %s218 = scalar_lea.sflag [#allocation3], %s217
          %s219 = sand.u32 %s29, 1
          %s220 = smul.addr %s219, 8
          %s221 = scalar_lea.vmem [#allocation2], %s220
          %s223 = ssub.s32 128, 128
          %224 = vsyncadd %s218, %s223
          %s225 = smul.addr %s19, 128
          %s226 = scalar_lea.hbm %s0, %s225
          %s228 = sshll.u32 %s221, 4
          %s229 = int_to_ptr.vmem [resolvable:$true] %s228
          %231 = dma.hbm_to_vmem [thread:$0]  %s226, 128, %s229, %s218
        $region36: #{tpu_custom_call.1} parent=31 // pred_fallthru
          _
      $region32: #{tpu_custom_call.1} parent=5 // pred_fallthru
        _
      %p232 = scmp.le.s32.totalorder 1, %s19
      %p233 = scmp.lt.s32.totalorder %s19, 3
      %p234 = pnand %p232, %p233
      %p235 = pneg %p234
      // Predicated region
      $region37: #{tpu_custom_call.1} parent=5 // pred_check
        _
      $region38: #{tpu_custom_call.1} parent=5 // pred_check_branch
        %237 = sbr.rel (%p234) target = $region40
      $region39: #{tpu_custom_call.1} parent=5 // pred_region
        %s238 = ssub.s32 %s19, 1
        %s239 = sand.u32 %s32, 1
        %s240 = scalar_lea.sflag [#allocation3], %s239
        %s241 = sand.u32 %s32, 1
        %s242 = smul.addr %s241, 8
        %s243 = scalar_lea.vmem [#allocation2], %s242
        // Predicated region
        $region41: #{tpu_custom_call.1} parent=39 // pred_check
          %p244 = pneg %p45
        $region42: #{tpu_custom_call.1} parent=39 // pred_check_branch
          %246 = sbr.rel (%p244) target = $region44
        $region43: #{tpu_custom_call.1} parent=39 // pred_region
          %247 = dma.done %s240, 128
        $region44: #{tpu_custom_call.1} parent=39 // pred_fallthru
          _
        // Predicated region
        $region45: #{tpu_custom_call.1} parent=39 // pred_check
          %p248 = pneg %p66
        $region46: #{tpu_custom_call.1} parent=39 // pred_check_branch
          %250 = sbr.rel (%p248) target = $region48
        $region47: #{tpu_custom_call.1} parent=39 // pred_region
          %251 = dma.done [#allocation6], 8192
        $region48: #{tpu_custom_call.1} parent=39 // pred_fallthru
          _
        // Predicated region
        $region49: #{tpu_custom_call.1} parent=39 // pred_check
          %p252 = pneg %p87
        $region50: #{tpu_custom_call.1} parent=39 // pred_check_branch
          %254 = sbr.rel (%p252) target = $region52
        $region51: #{tpu_custom_call.1} parent=39 // pred_region
          %255 = dma.done [#allocation6], 256
        $region52: #{tpu_custom_call.1} parent=39 // pred_fallthru
          _
        // Predicated region
        $region53: #{tpu_custom_call.1} parent=39 // pred_check
          %p256 = pneg %p108
        $region54: #{tpu_custom_call.1} parent=39 // pred_check_branch
          %258 = sbr.rel (%p256) target = $region56
        $region55: #{tpu_custom_call.1} parent=39 // pred_region
          %259 = dma.done [#allocation9], 32768
        $region56: #{tpu_custom_call.1} parent=39 // pred_fallthru
          _
        %s260 = sand.u32 %s32, 1
        %s261 = scalar_lea.sflag [#allocation3], %s260
        %s262 = sand.u32 %s32, 1
        %s263 = smul.addr %s262, 8
        %s264 = scalar_lea.vmem [#allocation2], %s263
        %p265 = pneg %p45
        %p266 = pneg %p42
        %p267 = pneg %p66
        %p268 = pneg %p63
        %p269 = pneg %p87
        %p270 = pneg %p84
        %p271 = pneg %p108
        %p272 = pneg %p105
        %p273 = pneg %p129
        %p274 = pneg %p126
        %p275 = pneg %p155
        %p276 = pneg %p152
        %s277 = sand.u32 %s142, 1
        %s278 = scalar_lea.sflag [#allocation4], %s277
        %s279 = sand.u32 %s142, 1
        %s280 = smul.addr %s279, 8
        %s281 = scalar_lea.vmem [#allocation10], %s280
        %v282 = vld [vmem:[%s243] sm:$0xff]
        %v283 = vld [vmem:[#allocation5] sm:$0xff]
        %v284 = vld [vmem:[#allocation5 + $0x8] sm:$0xff]
        %v285 = vld [vmem:[#allocation5 + $0x10] sm:$0xff]
        %v286 = vld [vmem:[#allocation5 + $0x18] sm:$0xff]
        %v287 = vld [vmem:[#allocation5 + $0x20] sm:$0xff]
        %v288 = vld [vmem:[#allocation5 + $0x28] sm:$0xff]
        %v289 = vld [vmem:[#allocation5 + $0x30] sm:$0xff]
        %v290 = vld [vmem:[#allocation5 + $0x38] sm:$0xff]
        %v291 = vld [vmem:[#allocation5 + $0x40] sm:$0xff]
        %v292 = vld [vmem:[#allocation5 + $0x48] sm:$0xff]
        %v293 = vld [vmem:[#allocation5 + $0x50] sm:$0xff]
        %v294 = vld [vmem:[#allocation5 + $0x58] sm:$0xff]
        %v295 = vld [vmem:[#allocation5 + $0x60] sm:$0xff]
        %v296 = vld [vmem:[#allocation5 + $0x68] sm:$0xff]
        %v297 = vld [vmem:[#allocation5 + $0x70] sm:$0xff]
        %v298 = vld [vmem:[#allocation5 + $0x78] sm:$0xff]
        %v299 = vld [vmem:[#allocation5 + $0x80] sm:$0xff]
        %v300 = vld [vmem:[#allocation5 + $0x88] sm:$0xff]
        %v301 = vld [vmem:[#allocation5 + $0x90] sm:$0xff]
        %v302 = vld [vmem:[#allocation5 + $0x98] sm:$0xff]
        %v303 = vld [vmem:[#allocation5 + $0xa0] sm:$0xff]
        %v304 = vld [vmem:[#allocation5 + $0xa8] sm:$0xff]
        %v305 = vld [vmem:[#allocation5 + $0xb0] sm:$0xff]
        %v306 = vld [vmem:[#allocation5 + $0xb8] sm:$0xff]
        %v307 = vld [vmem:[#allocation5 + $0xc0] sm:$0xff]
        %v308 = vld [vmem:[#allocation5 + $0xc8] sm:$0xff]
        %v309 = vld [vmem:[#allocation5 + $0xd0] sm:$0xff]
        %v310 = vld [vmem:[#allocation5 + $0xd8] sm:$0xff]
        %v311 = vld [vmem:[#allocation5 + $0xe0] sm:$0xff]
        %v312 = vld [vmem:[#allocation5 + $0xe8] sm:$0xff]
        %v313 = vld [vmem:[#allocation5 + $0xf0] sm:$0xff]
        %v314 = vld [vmem:[#allocation5 + $0xf8] sm:$0xff]
        %v315 = vld [vmem:[#allocation5 + $0x100] sm:$0xff]
        %v316 = vld [vmem:[#allocation5 + $0x108] sm:$0xff]
        %v317 = vld [vmem:[#allocation5 + $0x110] sm:$0xff]
        %v318 = vld [vmem:[#allocation5 + $0x118] sm:$0xff]
        %v319 = vld [vmem:[#allocation5 + $0x120] sm:$0xff]
        %v320 = vld [vmem:[#allocation5 + $0x128] sm:$0xff]
        %v321 = vld [vmem:[#allocation5 + $0x130] sm:$0xff]
        %v322 = vld [vmem:[#allocation5 + $0x138] sm:$0xff]
        %v323 = vld [vmem:[#allocation5 + $0x140] sm:$0xff]
        %v324 = vld [vmem:[#allocation5 + $0x148] sm:$0xff]
        %v325 = vld [vmem:[#allocation5 + $0x150] sm:$0xff]
        %v326 = vld [vmem:[#allocation5 + $0x158] sm:$0xff]
        %v327 = vld [vmem:[#allocation5 + $0x160] sm:$0xff]
        %v328 = vld [vmem:[#allocation5 + $0x168] sm:$0xff]
        %v329 = vld [vmem:[#allocation5 + $0x170] sm:$0xff]
        %v330 = vld [vmem:[#allocation5 + $0x178] sm:$0xff]
        %v331 = vld [vmem:[#allocation5 + $0x180] sm:$0xff]
        %v332 = vld [vmem:[#allocation5 + $0x188] sm:$0xff]
        %v333 = vld [vmem:[#allocation5 + $0x190] sm:$0xff]
        %v334 = vld [vmem:[#allocation5 + $0x198] sm:$0xff]
        %v335 = vld [vmem:[#allocation5 + $0x1a0] sm:$0xff]
        %v336 = vld [vmem:[#allocation5 + $0x1a8] sm:$0xff]
        %v337 = vld [vmem:[#allocation5 + $0x1b0] sm:$0xff]
        %v338 = vld [vmem:[#allocation5 + $0x1b8] sm:$0xff]
        %v339 = vld [vmem:[#allocation5 + $0x1c0] sm:$0xff]
        %v340 = vld [vmem:[#allocation5 + $0x1c8] sm:$0xff]
        %v341 = vld [vmem:[#allocation5 + $0x1d0] sm:$0xff]
        %v342 = vld [vmem:[#allocation5 + $0x1d8] sm:$0xff]
        %v343 = vld [vmem:[#allocation5 + $0x1e0] sm:$0xff]
        %v344 = vld [vmem:[#allocation5 + $0x1e8] sm:$0xff]
        %v345 = vld [vmem:[#allocation5 + $0x1f0] sm:$0xff]
        %v346 = vld [vmem:[#allocation5 + $0x1f8] sm:$0xff]
        %v347 = vld [vmem:[#allocation7] sm:$0xff]
        %v348 = vld [vmem:[#allocation7 + $0x8] sm:$0xff]
        %v351 = vlaneseq
        %v352 = vshrl.u32 %v351, 7
        %v353 = vsub.s32 0, %v352
        %v354 = vrot.slane %v347, %v353
        %v355 = vlaneseq
        %v356 = vshrl.u32 %v355, 7
        %v357 = vsub.s32 1, %v356
        %v358 = vrot.slane %v347, %v357
        %v359 = vlaneseq
        %v360 = vshrl.u32 %v359, 7
        %v361 = vsub.s32 2, %v360
        %v362 = vrot.slane %v347, %v361
        %v363 = vlaneseq
        %v364 = vshrl.u32 %v363, 7
        %v365 = vsub.s32 3, %v364
        %v366 = vrot.slane %v347, %v365
        %v367 = vlaneseq
        %v368 = vshrl.u32 %v367, 7
        %v369 = vsub.s32 4, %v368
        %v370 = vrot.slane %v347, %v369
        %v371 = vlaneseq
        %v372 = vshrl.u32 %v371, 7
        %v373 = vsub.s32 5, %v372
        %v374 = vrot.slane %v347, %v373
        %v375 = vlaneseq
        %v376 = vshrl.u32 %v375, 7
        %v377 = vsub.s32 6, %v376
        %v378 = vrot.slane %v347, %v377
        %v379 = vlaneseq
        %v380 = vshrl.u32 %v379, 7
        %v381 = vsub.s32 7, %v380
        %v382 = vrot.slane %v347, %v381
        %v383 = vlaneseq
        %v384 = vshrl.u32 %v383, 7
        %v385 = vsub.s32 0, %v384
        %v386 = vrot.slane %v348, %v385
        %v387 = vlaneseq
        %v388 = vshrl.u32 %v387, 7
        %v389 = vsub.s32 1, %v388
        %v390 = vrot.slane %v348, %v389
        %v391 = vlaneseq
        %v392 = vshrl.u32 %v391, 7
        %v393 = vsub.s32 2, %v392
        %v394 = vrot.slane %v348, %v393
        %v395 = vlaneseq
        %v396 = vshrl.u32 %v395, 7
        %v397 = vsub.s32 3, %v396
        %v398 = vrot.slane %v348, %v397
        %v399 = vlaneseq
        %v400 = vshrl.u32 %v399, 7
        %v401 = vsub.s32 4, %v400
        %v402 = vrot.slane %v348, %v401
        %v403 = vlaneseq
        %v404 = vshrl.u32 %v403, 7
        %v405 = vsub.s32 5, %v404
        %v406 = vrot.slane %v348, %v405
        %v407 = vlaneseq
        %v408 = vshrl.u32 %v407, 7
        %v409 = vsub.s32 6, %v408
        %v410 = vrot.slane %v348, %v409
        %v411 = vlaneseq
        %v412 = vshrl.u32 %v411, 7
        %v413 = vsub.s32 7, %v412
        %v414 = vrot.slane %v348, %v413
        %vm431 = vcmask 261120
        %v433 = vsel %vm431, %v282, 0
        %435 = vmatprep.subr.mxu0 %v284
        %436 = vmatpush1.msra.mxu0 %v283
        %437 = vmatprep.subr.mxu0 %v300
        %438 = vmatpush1.msra.mxu0 %v299
        %439 = vmatprep.subr.mxu0 %v316
        %440 = vmatpush1.msra.mxu0 %v315
        %441 = vmatprep.subr.mxu0 %v332
        %442 = vmatpush1.msra.mxu0 %v331
        %443 = vmatprep.subr.mxu0 0.0
        %444 = vmatpush1.msra.mxu0 0.0
        %445 = vmatprep.subr.mxu0 0.0
        %446 = vmatpush1.msra.mxu0 0.0
        %447 = vmatprep.subr.mxu0 0.0
        %448 = vmatpush1.msra.mxu0 0.0
        %449 = vmatprep.subr.mxu0 0.0
        %450 = vmatpush1.msra.mxu0 0.0
        %451 = vmatprep.subr.mxu0 0.0
        %452 = vmatpush1.msra.mxu0 0.0
        %453 = vmatprep.subr.mxu0 0.0
        %454 = vmatpush1.msra.mxu0 0.0
        %455 = vmatprep.subr.mxu0 0.0
        %456 = vmatpush1.msra.mxu0 0.0
        %457 = vmatprep.subr.mxu0 0.0
        %458 = vmatpush1.msra.mxu0 0.0
        %459 = vmatprep.subr.mxu0 0.0
        %460 = vmatpush1.msra.mxu0 0.0
        %461 = vmatprep.subr.mxu0 0.0
        %462 = vmatpush1.msra.mxu0 0.0
        %463 = vmatprep.subr.mxu0 0.0
        %464 = vmatpush1.msra.mxu0 0.0
        %465 = vmatprep.subr.mxu0 0.0
        %466 = vmatpush1.msra.mxu0 0.0
        %467 = vmatprep.subr.mxu0 0.0
        %468 = vmatpush1.msra.mxu0 0.0
        %469 = vmatprep.subr.mxu0 0.0
        %470 = vmatpush1.msra.mxu0 0.0
        %471 = vmatprep.subr.mxu0 0.0
        %472 = vmatpush1.msra.mxu0 0.0
        %473 = vmatprep.subr.mxu0 0.0
        %474 = vmatpush1.msra.mxu0 0.0
        %475 = vmatprep.subr.mxu0 0.0
        %476 = vmatpush1.msra.mxu0 0.0
        %477 = vmatprep.subr.mxu0 0.0
        %478 = vmatpush1.msra.mxu0 0.0
        %479 = vmatprep.subr.mxu0 0.0
        %480 = vmatpush1.msra.mxu0 0.0
        %481 = vmatprep.subr.mxu0 0.0
        %482 = vmatpush1.msra.mxu0 0.0
        %483 = vmatprep.subr.mxu0 0.0
        %484 = vmatpush1.msra.mxu0 0.0
        %485 = vmatprep.subr.mxu0 0.0
        %486 = vmatpush1.msra.mxu0 0.0
        %487 = vmatprep.subr.mxu0 0.0
        %488 = vmatpush1.msra.mxu0 0.0
        %489 = vmatprep.subr.mxu0 0.0
        %490 = vmatpush1.msra.mxu0 0.0
        %491 = vmatprep.subr.mxu0 0.0
        %492 = vmatpush1.msra.mxu0 0.0
        %493 = vmatprep.subr.mxu0 0.0
        %494 = vmatpush1.msra.mxu0 0.0
        %495 = vmatprep.subr.mxu0 0.0
        %496 = vmatpush1.msra.mxu0 0.0
        %497 = vmatprep.subr.mxu0 0.0
        %498 = vmatpush1.msra.mxu0 0.0
        %499 = vmatprep.mubr.f32.mxu0 0.0
        %500 = vmatmul.mubr.f32.gmra.mrb[0].mxu0 %v433
        %v501 = vpop.f32.mrb[0].mxu0
        %v502 = vadd.f32 %v354, %v501
        %v503 = vpop.f32.mrb[0].mxu0
        %v504 = vadd.f32 %v358, %v503
        %505 = vdwg.mxu0
        %506 = vmatprep.subr.mxu0 %v286
        %507 = vmatpush1.msra.mxu0 %v285
        %508 = vmatprep.subr.mxu0 %v302
        %509 = vmatpush1.msra.mxu0 %v301
        %510 = vmatprep.subr.mxu0 %v318
        %511 = vmatpush1.msra.mxu0 %v317
        %512 = vmatprep.subr.mxu0 %v334
        %513 = vmatpush1.msra.mxu0 %v333
        %514 = vmatprep.subr.mxu0 0.0
        %515 = vmatpush1.msra.mxu0 0.0
        %516 = vmatprep.subr.mxu0 0.0
        %517 = vmatpush1.msra.mxu0 0.0
        %518 = vmatprep.subr.mxu0 0.0
        %519 = vmatpush1.msra.mxu0 0.0
        %520 = vmatprep.subr.mxu0 0.0
        %521 = vmatpush1.msra.mxu0 0.0
        %522 = vmatprep.subr.mxu0 0.0
        %523 = vmatpush1.msra.mxu0 0.0
        %524 = vmatprep.subr.mxu0 0.0
        %525 = vmatpush1.msra.mxu0 0.0
        %526 = vmatprep.subr.mxu0 0.0
        %527 = vmatpush1.msra.mxu0 0.0
        %528 = vmatprep.subr.mxu0 0.0
        %529 = vmatpush1.msra.mxu0 0.0
        %530 = vmatprep.subr.mxu0 0.0
        %531 = vmatpush1.msra.mxu0 0.0
        %532 = vmatprep.subr.mxu0 0.0
        %533 = vmatpush1.msra.mxu0 0.0
        %534 = vmatprep.subr.mxu0 0.0
        %535 = vmatpush1.msra.mxu0 0.0
        %536 = vmatprep.subr.mxu0 0.0
        %537 = vmatpush1.msra.mxu0 0.0
        %538 = vmatprep.subr.mxu0 0.0
        %539 = vmatpush1.msra.mxu0 0.0
        %540 = vmatprep.subr.mxu0 0.0
        %541 = vmatpush1.msra.mxu0 0.0
        %542 = vmatprep.subr.mxu0 0.0
        %543 = vmatpush1.msra.mxu0 0.0
        %544 = vmatprep.subr.mxu0 0.0
        %545 = vmatpush1.msra.mxu0 0.0
        %546 = vmatprep.subr.mxu0 0.0
        %547 = vmatpush1.msra.mxu0 0.0
        %548 = vmatprep.subr.mxu0 0.0
        %549 = vmatpush1.msra.mxu0 0.0
        %550 = vmatprep.subr.mxu0 0.0
        %551 = vmatpush1.msra.mxu0 0.0
        %552 = vmatprep.subr.mxu0 0.0
        %553 = vmatpush1.msra.mxu0 0.0
        %554 = vmatprep.subr.mxu0 0.0
        %555 = vmatpush1.msra.mxu0 0.0
        %556 = vmatprep.subr.mxu0 0.0
        %557 = vmatpush1.msra.mxu0 0.0
        %558 = vmatprep.subr.mxu0 0.0
        %559 = vmatpush1.msra.mxu0 0.0
        %560 = vmatprep.subr.mxu0 0.0
        %561 = vmatpush1.msra.mxu0 0.0
        %562 = vmatprep.subr.mxu0 0.0
        %563 = vmatpush1.msra.mxu0 0.0
        %564 = vmatprep.subr.mxu0 0.0
        %565 = vmatpush1.msra.mxu0 0.0
        %566 = vmatprep.subr.mxu0 0.0
        %567 = vmatpush1.msra.mxu0 0.0
        %568 = vmatprep.subr.mxu0 0.0
        %569 = vmatpush1.msra.mxu0 0.0
        %570 = vmatprep.mubr.f32.mxu0 0.0
        %571 = vmatmul.mubr.f32.gmra.mrb[0].mxu0 %v433
        %v572 = vpop.f32.mrb[0].mxu0
        %v573 = vadd.f32 %v362, %v572
        %v574 = vpop.f32.mrb[0].mxu0
        %v575 = vadd.f32 %v366, %v574
        %576 = vdwg.mxu0
        %577 = vmatprep.subr.mxu0 %v288
        %578 = vmatpush1.msra.mxu0 %v287
        %579 = vmatprep.subr.mxu0 %v304
        %580 = vmatpush1.msra.mxu0 %v303
        %581 = vmatprep.subr.mxu0 %v320
        %582 = vmatpush1.msra.mxu0 %v319
        %583 = vmatprep.subr.mxu0 %v336
        %584 = vmatpush1.msra.mxu0 %v335
        %585 = vmatprep.subr.mxu0 0.0
        %586 = vmatpush1.msra.mxu0 0.0
        %587 = vmatprep.subr.mxu0 0.0
        %588 = vmatpush1.msra.mxu0 0.0
        %589 = vmatprep.subr.mxu0 0.0
        %590 = vmatpush1.msra.mxu0 0.0
        %591 = vmatprep.subr.mxu0 0.0
        %592 = vmatpush1.msra.mxu0 0.0
        %593 = vmatprep.subr.mxu0 0.0
        %594 = vmatpush1.msra.mxu0 0.0
        %595 = vmatprep.subr.mxu0 0.0
        %596 = vmatpush1.msra.mxu0 0.0
        %597 = vmatprep.subr.mxu0 0.0
        %598 = vmatpush1.msra.mxu0 0.0
        %599 = vmatprep.subr.mxu0 0.0
        %600 = vmatpush1.msra.mxu0 0.0
        %601 = vmatprep.subr.mxu0 0.0
        %602 = vmatpush1.msra.mxu0 0.0
        %603 = vmatprep.subr.mxu0 0.0
        %604 = vmatpush1.msra.mxu0 0.0
        %605 = vmatprep.subr.mxu0 0.0
        %606 = vmatpush1.msra.mxu0 0.0
        %607 = vmatprep.subr.mxu0 0.0
        %608 = vmatpush1.msra.mxu0 0.0
        %609 = vmatprep.subr.mxu0 0.0
        %610 = vmatpush1.msra.mxu0 0.0
        %611 = vmatprep.subr.mxu0 0.0
        %612 = vmatpush1.msra.mxu0 0.0
        %613 = vmatprep.subr.mxu0 0.0
        %614 = vmatpush1.msra.mxu0 0.0
        %615 = vmatprep.subr.mxu0 0.0
        %616 = vmatpush1.msra.mxu0 0.0
        %617 = vmatprep.subr.mxu0 0.0
        %618 = vmatpush1.msra.mxu0 0.0
        %619 = vmatprep.subr.mxu0 0.0
        %620 = vmatpush1.msra.mxu0 0.0
        %621 = vmatprep.subr.mxu0 0.0
        %622 = vmatpush1.msra.mxu0 0.0
        %623 = vmatprep.subr.mxu0 0.0
        %624 = vmatpush1.msra.mxu0 0.0
        %625 = vmatprep.subr.mxu0 0.0
        %626 = vmatpush1.msra.mxu0 0.0
        %627 = vmatprep.subr.mxu0 0.0
        %628 = vmatpush1.msra.mxu0 0.0
        %629 = vmatprep.subr.mxu0 0.0
        %630 = vmatpush1.msra.mxu0 0.0
        %631 = vmatprep.subr.mxu0 0.0
        %632 = vmatpush1.msra.mxu0 0.0
        %633 = vmatprep.subr.mxu0 0.0
        %634 = vmatpush1.msra.mxu0 0.0
        %635 = vmatprep.subr.mxu0 0.0
        %636 = vmatpush1.msra.mxu0 0.0
        %637 = vmatprep.subr.mxu0 0.0
        %638 = vmatpush1.msra.mxu0 0.0
        %639 = vmatprep.subr.mxu0 0.0
        %640 = vmatpush1.msra.mxu0 0.0
        %641 = vmatprep.mubr.f32.mxu0 0.0
        %642 = vmatmul.mubr.f32.gmra.mrb[0].mxu0 %v433
        %v643 = vpop.f32.mrb[0].mxu0
        %v644 = vadd.f32 %v370, %v643
        %v645 = vpop.f32.mrb[0].mxu0
        %v646 = vadd.f32 %v374, %v645
        %647 = vdwg.mxu0
        %648 = vmatprep.subr.mxu0 %v290
        %649 = vmatpush1.msra.mxu0 %v289
        %650 = vmatprep.subr.mxu0 %v306
        %651 = vmatpush1.msra.mxu0 %v305
        %652 = vmatprep.subr.mxu0 %v322
        %653 = vmatpush1.msra.mxu0 %v321
        %654 = vmatprep.subr.mxu0 %v338
        %655 = vmatpush1.msra.mxu0 %v337
        %656 = vmatprep.subr.mxu0 0.0
        %657 = vmatpush1.msra.mxu0 0.0
        %658 = vmatprep.subr.mxu0 0.0
        %659 = vmatpush1.msra.mxu0 0.0
        %660 = vmatprep.subr.mxu0 0.0
        %661 = vmatpush1.msra.mxu0 0.0
        %662 = vmatprep.subr.mxu0 0.0
        %663 = vmatpush1.msra.mxu0 0.0
        %664 = vmatprep.subr.mxu0 0.0
        %665 = vmatpush1.msra.mxu0 0.0
        %666 = vmatprep.subr.mxu0 0.0
        %667 = vmatpush1.msra.mxu0 0.0
        %668 = vmatprep.subr.mxu0 0.0
        %669 = vmatpush1.msra.mxu0 0.0
        %670 = vmatprep.subr.mxu0 0.0
        %671 = vmatpush1.msra.mxu0 0.0
        %672 = vmatprep.subr.mxu0 0.0
        %673 = vmatpush1.msra.mxu0 0.0
        %674 = vmatprep.subr.mxu0 0.0
        %675 = vmatpush1.msra.mxu0 0.0
        %676 = vmatprep.subr.mxu0 0.0
        %677 = vmatpush1.msra.mxu0 0.0
        %678 = vmatprep.subr.mxu0 0.0
        %679 = vmatpush1.msra.mxu0 0.0
        %680 = vmatprep.subr.mxu0 0.0
        %681 = vmatpush1.msra.mxu0 0.0
        %682 = vmatprep.subr.mxu0 0.0
        %683 = vmatpush1.msra.mxu0 0.0
        %684 = vmatprep.subr.mxu0 0.0
        %685 = vmatpush1.msra.mxu0 0.0
        %686 = vmatprep.subr.mxu0 0.0
        %687 = vmatpush1.msra.mxu0 0.0
        %688 = vmatprep.subr.mxu0 0.0
        %689 = vmatpush1.msra.mxu0 0.0
        %690 = vmatprep.subr.mxu0 0.0
        %691 = vmatpush1.msra.mxu0 0.0
        %692 = vmatprep.subr.mxu0 0.0
        %693 = vmatpush1.msra.mxu0 0.0
        %694 = vmatprep.subr.mxu0 0.0
        %695 = vmatpush1.msra.mxu0 0.0
        %696 = vmatprep.subr.mxu0 0.0
        %697 = vmatpush1.msra.mxu0 0.0
        %698 = vmatprep.subr.mxu0 0.0
        %699 = vmatpush1.msra.mxu0 0.0
        %700 = vmatprep.subr.mxu0 0.0
        %701 = vmatpush1.msra.mxu0 0.0
        %702 = vmatprep.subr.mxu0 0.0
        %703 = vmatpush1.msra.mxu0 0.0
        %704 = vmatprep.subr.mxu0 0.0
        %705 = vmatpush1.msra.mxu0 0.0
        %706 = vmatprep.subr.mxu0 0.0
        %707 = vmatpush1.msra.mxu0 0.0
        %708 = vmatprep.subr.mxu0 0.0
        %709 = vmatpush1.msra.mxu0 0.0
        %710 = vmatprep.subr.mxu0 0.0
        %711 = vmatpush1.msra.mxu0 0.0
        %712 = vmatprep.mubr.f32.mxu0 0.0
        %713 = vmatmul.mubr.f32.gmra.mrb[0].mxu0 %v433
        %v714 = vpop.f32.mrb[0].mxu0
        %v715 = vadd.f32 %v378, %v714
        %v716 = vpop.f32.mrb[0].mxu0
        %v717 = vadd.f32 %v382, %v716
        %718 = vdwg.mxu0
        %719 = vmatprep.subr.mxu0 %v292
        %720 = vmatpush1.msra.mxu0 %v291
        %721 = vmatprep.subr.mxu0 %v308
        %722 = vmatpush1.msra.mxu0 %v307
        %723 = vmatprep.subr.mxu0 %v324
        %724 = vmatpush1.msra.mxu0 %v323
        %725 = vmatprep.subr.mxu0 %v340
        %726 = vmatpush1.msra.mxu0 %v339
        %727 = vmatprep.subr.mxu0 0.0
        %728 = vmatpush1.msra.mxu0 0.0
        %729 = vmatprep.subr.mxu0 0.0
        %730 = vmatpush1.msra.mxu0 0.0
        %731 = vmatprep.subr.mxu0 0.0
        %732 = vmatpush1.msra.mxu0 0.0
        %733 = vmatprep.subr.mxu0 0.0
        %734 = vmatpush1.msra.mxu0 0.0
        %735 = vmatprep.subr.mxu0 0.0
        %736 = vmatpush1.msra.mxu0 0.0
        %737 = vmatprep.subr.mxu0 0.0
        %738 = vmatpush1.msra.mxu0 0.0
        %739 = vmatprep.subr.mxu0 0.0
        %740 = vmatpush1.msra.mxu0 0.0
        %741 = vmatprep.subr.mxu0 0.0
        %742 = vmatpush1.msra.mxu0 0.0
        %743 = vmatprep.subr.mxu0 0.0
        %744 = vmatpush1.msra.mxu0 0.0
        %745 = vmatprep.subr.mxu0 0.0
        %746 = vmatpush1.msra.mxu0 0.0
        %747 = vmatprep.subr.mxu0 0.0
        %748 = vmatpush1.msra.mxu0 0.0
        %749 = vmatprep.subr.mxu0 0.0
        %750 = vmatpush1.msra.mxu0 0.0
        %751 = vmatprep.subr.mxu0 0.0
        %752 = vmatpush1.msra.mxu0 0.0
        %753 = vmatprep.subr.mxu0 0.0
        %754 = vmatpush1.msra.mxu0 0.0
        %755 = vmatprep.subr.mxu0 0.0
        %756 = vmatpush1.msra.mxu0 0.0
        %757 = vmatprep.subr.mxu0 0.0
        %758 = vmatpush1.msra.mxu0 0.0
        %759 = vmatprep.subr.mxu0 0.0
        %760 = vmatpush1.msra.mxu0 0.0
        %761 = vmatprep.subr.mxu0 0.0
        %762 = vmatpush1.msra.mxu0 0.0
        %763 = vmatprep.subr.mxu0 0.0
        %764 = vmatpush1.msra.mxu0 0.0
        %765 = vmatprep.subr.mxu0 0.0
        %766 = vmatpush1.msra.mxu0 0.0
        %767 = vmatprep.subr.mxu0 0.0
        %768 = vmatpush1.msra.mxu0 0.0
        %769 = vmatprep.subr.mxu0 0.0
        %770 = vmatpush1.msra.mxu0 0.0
        %771 = vmatprep.subr.mxu0 0.0
        %772 = vmatpush1.msra.mxu0 0.0
        %773 = vmatprep.subr.mxu0 0.0
        %774 = vmatpush1.msra.mxu0 0.0
        %775 = vmatprep.subr.mxu0 0.0
        %776 = vmatpush1.msra.mxu0 0.0
        %777 = vmatprep.subr.mxu0 0.0
        %778 = vmatpush1.msra.mxu0 0.0
        %779 = vmatprep.subr.mxu0 0.0
        %780 = vmatpush1.msra.mxu0 0.0
        %781 = vmatprep.subr.mxu0 0.0
        %782 = vmatpush1.msra.mxu0 0.0
        %783 = vmatprep.mubr.f32.mxu0 0.0
        %784 = vmatmul.mubr.f32.gmra.mrb[0].mxu0 %v433
        %v785 = vpop.f32.mrb[0].mxu0
        %v786 = vadd.f32 %v386, %v785
        %v787 = vpop.f32.mrb[0].mxu0
        %v788 = vadd.f32 %v390, %v787
        %789 = vdwg.mxu0
        %790 = vmatprep.subr.mxu0 %v294
        %791 = vmatpush1.msra.mxu0 %v293
        %792 = vmatprep.subr.mxu0 %v310
        %793 = vmatpush1.msra.mxu0 %v309
        %794 = vmatprep.subr.mxu0 %v326
        %795 = vmatpush1.msra.mxu0 %v325
        %796 = vmatprep.subr.mxu0 %v342
        %797 = vmatpush1.msra.mxu0 %v341
        %798 = vmatprep.subr.mxu0 0.0
        %799 = vmatpush1.msra.mxu0 0.0
        %800 = vmatprep.subr.mxu0 0.0
        %801 = vmatpush1.msra.mxu0 0.0
        %802 = vmatprep.subr.mxu0 0.0
        %803 = vmatpush1.msra.mxu0 0.0
        %804 = vmatprep.subr.mxu0 0.0
        %805 = vmatpush1.msra.mxu0 0.0
        %806 = vmatprep.subr.mxu0 0.0
        %807 = vmatpush1.msra.mxu0 0.0
        %808 = vmatprep.subr.mxu0 0.0
        %809 = vmatpush1.msra.mxu0 0.0
        %810 = vmatprep.subr.mxu0 0.0
        %811 = vmatpush1.msra.mxu0 0.0
        %812 = vmatprep.subr.mxu0 0.0
        %813 = vmatpush1.msra.mxu0 0.0
        %814 = vmatprep.subr.mxu0 0.0
        %815 = vmatpush1.msra.mxu0 0.0
        %816 = vmatprep.subr.mxu0 0.0
        %817 = vmatpush1.msra.mxu0 0.0
        %818 = vmatprep.subr.mxu0 0.0
        %819 = vmatpush1.msra.mxu0 0.0
        %820 = vmatprep.subr.mxu0 0.0
        %821 = vmatpush1.msra.mxu0 0.0
        %822 = vmatprep.subr.mxu0 0.0
        %823 = vmatpush1.msra.mxu0 0.0
        %824 = vmatprep.subr.mxu0 0.0
        %825 = vmatpush1.msra.mxu0 0.0
        %826 = vmatprep.subr.mxu0 0.0
        %827 = vmatpush1.msra.mxu0 0.0
        %828 = vmatprep.subr.mxu0 0.0
        %829 = vmatpush1.msra.mxu0 0.0
        %830 = vmatprep.subr.mxu0 0.0
        %831 = vmatpush1.msra.mxu0 0.0
        %832 = vmatprep.subr.mxu0 0.0
        %833 = vmatpush1.msra.mxu0 0.0
        %834 = vmatprep.subr.mxu0 0.0
        %835 = vmatpush1.msra.mxu0 0.0
        %836 = vmatprep.subr.mxu0 0.0
        %837 = vmatpush1.msra.mxu0 0.0
        %838 = vmatprep.subr.mxu0 0.0
        %839 = vmatpush1.msra.mxu0 0.0
        %840 = vmatprep.subr.mxu0 0.0
        %841 = vmatpush1.msra.mxu0 0.0
        %842 = vmatprep.subr.mxu0 0.0
        %843 = vmatpush1.msra.mxu0 0.0
        %844 = vmatprep.subr.mxu0 0.0
        %845 = vmatpush1.msra.mxu0 0.0
        %846 = vmatprep.subr.mxu0 0.0
        %847 = vmatpush1.msra.mxu0 0.0
        %848 = vmatprep.subr.mxu0 0.0
        %849 = vmatpush1.msra.mxu0 0.0
        %850 = vmatprep.subr.mxu0 0.0
        %851 = vmatpush1.msra.mxu0 0.0
        %852 = vmatprep.subr.mxu0 0.0
        %853 = vmatpush1.msra.mxu0 0.0
        %854 = vmatprep.mubr.f32.mxu0 0.0
        %855 = vmatmul.mubr.f32.gmra.mrb[0].mxu0 %v433
        %v856 = vpop.f32.mrb[0].mxu0
        %v857 = vadd.f32 %v394, %v856
        %v858 = vpop.f32.mrb[0].mxu0
        %v859 = vadd.f32 %v398, %v858
        %860 = vdwg.mxu0
        %861 = vmatprep.subr.mxu0 %v296
        %862 = vmatpush1.msra.mxu0 %v295
        %863 = vmatprep.subr.mxu0 %v312
        %864 = vmatpush1.msra.mxu0 %v311
        %865 = vmatprep.subr.mxu0 %v328
        %866 = vmatpush1.msra.mxu0 %v327
        %867 = vmatprep.subr.mxu0 %v344
        %868 = vmatpush1.msra.mxu0 %v343
        %869 = vmatprep.subr.mxu0 0.0
        %870 = vmatpush1.msra.mxu0 0.0
        %871 = vmatprep.subr.mxu0 0.0
        %872 = vmatpush1.msra.mxu0 0.0
        %873 = vmatprep.subr.mxu0 0.0
        %874 = vmatpush1.msra.mxu0 0.0
        %875 = vmatprep.subr.mxu0 0.0
        %876 = vmatpush1.msra.mxu0 0.0
        %877 = vmatprep.subr.mxu0 0.0
        %878 = vmatpush1.msra.mxu0 0.0
        %879 = vmatprep.subr.mxu0 0.0
        %880 = vmatpush1.msra.mxu0 0.0
        %881 = vmatprep.subr.mxu0 0.0
        %882 = vmatpush1.msra.mxu0 0.0
        %883 = vmatprep.subr.mxu0 0.0
        %884 = vmatpush1.msra.mxu0 0.0
        %885 = vmatprep.subr.mxu0 0.0
        %886 = vmatpush1.msra.mxu0 0.0
        %887 = vmatprep.subr.mxu0 0.0
        %888 = vmatpush1.msra.mxu0 0.0
        %889 = vmatprep.subr.mxu0 0.0
        %890 = vmatpush1.msra.mxu0 0.0
        %891 = vmatprep.subr.mxu0 0.0
        %892 = vmatpush1.msra.mxu0 0.0
        %893 = vmatprep.subr.mxu0 0.0
        %894 = vmatpush1.msra.mxu0 0.0
        %895 = vmatprep.subr.mxu0 0.0
        %896 = vmatpush1.msra.mxu0 0.0
        %897 = vmatprep.subr.mxu0 0.0
        %898 = vmatpush1.msra.mxu0 0.0
        %899 = vmatprep.subr.mxu0 0.0
        %900 = vmatpush1.msra.mxu0 0.0
        %901 = vmatprep.subr.mxu0 0.0
        %902 = vmatpush1.msra.mxu0 0.0
        %903 = vmatprep.subr.mxu0 0.0
        %904 = vmatpush1.msra.mxu0 0.0
        %905 = vmatprep.subr.mxu0 0.0
        %906 = vmatpush1.msra.mxu0 0.0
        %907 = vmatprep.subr.mxu0 0.0
        %908 = vmatpush1.msra.mxu0 0.0
        %909 = vmatprep.subr.mxu0 0.0
        %910 = vmatpush1.msra.mxu0 0.0
        %911 = vmatprep.subr.mxu0 0.0
        %912 = vmatpush1.msra.mxu0 0.0
        %913 = vmatprep.subr.mxu0 0.0
        %914 = vmatpush1.msra.mxu0 0.0
        %915 = vmatprep.subr.mxu0 0.0
        %916 = vmatpush1.msra.mxu0 0.0
        %917 = vmatprep.subr.mxu0 0.0
        %918 = vmatpush1.msra.mxu0 0.0
        %919 = vmatprep.subr.mxu0 0.0
        %920 = vmatpush1.msra.mxu0 0.0
        %921 = vmatprep.subr.mxu0 0.0
        %922 = vmatpush1.msra.mxu0 0.0
        %923 = vmatprep.subr.mxu0 0.0
        %924 = vmatpush1.msra.mxu0 0.0
        %925 = vmatprep.mubr.f32.mxu0 0.0
        %926 = vmatmul.mubr.f32.gmra.mrb[0].mxu0 %v433
        %v927 = vpop.f32.mrb[0].mxu0
        %v928 = vadd.f32 %v402, %v927
        %v929 = vpop.f32.mrb[0].mxu0
        %v930 = vadd.f32 %v406, %v929
        %931 = vdwg.mxu0
        %932 = vmatprep.subr.mxu0 %v298
        %933 = vmatpush1.msra.mxu0 %v297
        %934 = vmatprep.subr.mxu0 %v314
        %935 = vmatpush1.msra.mxu0 %v313
        %936 = vmatprep.subr.mxu0 %v330
        %937 = vmatpush1.msra.mxu0 %v329
        %938 = vmatprep.subr.mxu0 %v346
        %939 = vmatpush1.msra.mxu0 %v345
        %940 = vmatprep.subr.mxu0 0.0
        %941 = vmatpush1.msra.mxu0 0.0
        %942 = vmatprep.subr.mxu0 0.0
        %943 = vmatpush1.msra.mxu0 0.0
        %944 = vmatprep.subr.mxu0 0.0
        %945 = vmatpush1.msra.mxu0 0.0
        %946 = vmatprep.subr.mxu0 0.0
        %947 = vmatpush1.msra.mxu0 0.0
        %948 = vmatprep.subr.mxu0 0.0
        %949 = vmatpush1.msra.mxu0 0.0
        %950 = vmatprep.subr.mxu0 0.0
        %951 = vmatpush1.msra.mxu0 0.0
        %952 = vmatprep.subr.mxu0 0.0
        %953 = vmatpush1.msra.mxu0 0.0
        %954 = vmatprep.subr.mxu0 0.0
        %955 = vmatpush1.msra.mxu0 0.0
        %956 = vmatprep.subr.mxu0 0.0
        %957 = vmatpush1.msra.mxu0 0.0
        %958 = vmatprep.subr.mxu0 0.0
        %959 = vmatpush1.msra.mxu0 0.0
        %960 = vmatprep.subr.mxu0 0.0
        %961 = vmatpush1.msra.mxu0 0.0
        %962 = vmatprep.subr.mxu0 0.0
        %963 = vmatpush1.msra.mxu0 0.0
        %964 = vmatprep.subr.mxu0 0.0
        %965 = vmatpush1.msra.mxu0 0.0
        %966 = vmatprep.subr.mxu0 0.0
        %967 = vmatpush1.msra.mxu0 0.0
        %968 = vmatprep.subr.mxu0 0.0
        %969 = vmatpush1.msra.mxu0 0.0
        %970 = vmatprep.subr.mxu0 0.0
        %971 = vmatpush1.msra.mxu0 0.0
        %972 = vmatprep.subr.mxu0 0.0
        %973 = vmatpush1.msra.mxu0 0.0
        %974 = vmatprep.subr.mxu0 0.0
        %975 = vmatpush1.msra.mxu0 0.0
        %976 = vmatprep.subr.mxu0 0.0
        %977 = vmatpush1.msra.mxu0 0.0
        %978 = vmatprep.subr.mxu0 0.0
        %979 = vmatpush1.msra.mxu0 0.0
        %980 = vmatprep.subr.mxu0 0.0
        %981 = vmatpush1.msra.mxu0 0.0
        %982 = vmatprep.subr.mxu0 0.0
        %983 = vmatpush1.msra.mxu0 0.0
        %984 = vmatprep.subr.mxu0 0.0
        %985 = vmatpush1.msra.mxu0 0.0
        %986 = vmatprep.subr.mxu0 0.0
        %987 = vmatpush1.msra.mxu0 0.0
        %988 = vmatprep.subr.mxu0 0.0
        %989 = vmatpush1.msra.mxu0 0.0
        %990 = vmatprep.subr.mxu0 0.0
        %991 = vmatpush1.msra.mxu0 0.0
        %992 = vmatprep.subr.mxu0 0.0
        %993 = vmatpush1.msra.mxu0 0.0
        %994 = vmatprep.subr.mxu0 0.0
        %995 = vmatpush1.msra.mxu0 0.0
        %996 = vmatprep.mubr.f32.mxu0 0.0
        %997 = vmatmul.mubr.f32.gmra.mrb[0].mxu0 %v433
        %v998 = vpop.f32.mrb[0].mxu0
        %v999 = vadd.f32 %v410, %v998
        %v1000 = vpop.f32.mrb[0].mxu0
        %v1001 = vadd.f32 %v414, %v1000
        %1002 = vdwg.mxu0
        %v1003 = vmax.f32 %v502, 0.0
        %v1004 = vmax.f32 %v504, 0.0
        %v1005 = vmax.f32 %v573, 0.0
        %v1006 = vmax.f32 %v575, 0.0
        %v1007 = vmax.f32 %v644, 0.0
        %v1008 = vmax.f32 %v646, 0.0
        %v1009 = vmax.f32 %v715, 0.0
        %v1010 = vmax.f32 %v717, 0.0
        %v1011 = vmax.f32 %v786, 0.0
        %v1012 = vmax.f32 %v788, 0.0
        %v1013 = vmax.f32 %v857, 0.0
        %v1014 = vmax.f32 %v859, 0.0
        %v1015 = vmax.f32 %v928, 0.0
        %v1016 = vmax.f32 %v930, 0.0
        %v1017 = vmax.f32 %v999, 0.0
        %v1018 = vmax.f32 %v1001, 0.0
        %v1019 = vld [vmem:[#allocation8] sm:$0xff]
        %v1020 = vld [vmem:[#allocation8 + $0x8] sm:$0xff]
        %v1021 = vld [vmem:[#allocation8 + $0x10] sm:$0xff]
        %v1022 = vld [vmem:[#allocation8 + $0x18] sm:$0xff]
        %v1023 = vld [vmem:[#allocation8 + $0x20] sm:$0xff]
        %v1024 = vld [vmem:[#allocation8 + $0x28] sm:$0xff]
        %v1025 = vld [vmem:[#allocation8 + $0x30] sm:$0xff]
        %v1026 = vld [vmem:[#allocation8 + $0x38] sm:$0xff]
        %v1027 = vld [vmem:[#allocation8 + $0x40] sm:$0xff]
        %v1028 = vld [vmem:[#allocation8 + $0x48] sm:$0xff]
        %v1029 = vld [vmem:[#allocation8 + $0x50] sm:$0xff]
        %v1030 = vld [vmem:[#allocation8 + $0x58] sm:$0xff]
        %v1031 = vld [vmem:[#allocation8 + $0x60] sm:$0xff]
        %v1032 = vld [vmem:[#allocation8 + $0x68] sm:$0xff]
        %v1033 = vld [vmem:[#allocation8 + $0x70] sm:$0xff]
        %v1034 = vld [vmem:[#allocation8 + $0x78] sm:$0xff]
        %v1035 = vld [vmem:[#allocation8 + $0x80] sm:$0xff]
        %v1036 = vld [vmem:[#allocation8 + $0x88] sm:$0xff]
        %v1037 = vld [vmem:[#allocation8 + $0x90] sm:$0xff]
        %v1038 = vld [vmem:[#allocation8 + $0x98] sm:$0xff]
        %v1039 = vld [vmem:[#allocation8 + $0xa0] sm:$0xff]
        %v1040 = vld [vmem:[#allocation8 + $0xa8] sm:$0xff]
        %v1041 = vld [vmem:[#allocation8 + $0xb0] sm:$0xff]
        %v1042 = vld [vmem:[#allocation8 + $0xb8] sm:$0xff]
        %v1043 = vld [vmem:[#allocation8 + $0xc0] sm:$0xff]
        %v1044 = vld [vmem:[#allocation8 + $0xc8] sm:$0xff]
        %v1045 = vld [vmem:[#allocation8 + $0xd0] sm:$0xff]
        %v1046 = vld [vmem:[#allocation8 + $0xd8] sm:$0xff]
        %v1047 = vld [vmem:[#allocation8 + $0xe0] sm:$0xff]
        %v1048 = vld [vmem:[#allocation8 + $0xe8] sm:$0xff]
        %v1049 = vld [vmem:[#allocation8 + $0xf0] sm:$0xff]
        %v1050 = vld [vmem:[#allocation8 + $0xf8] sm:$0xff]
        %v1051 = vld [vmem:[#allocation8 + $0x100] sm:$0xff]
        %v1052 = vld [vmem:[#allocation8 + $0x108] sm:$0xff]
        %v1053 = vld [vmem:[#allocation8 + $0x110] sm:$0xff]
        %v1054 = vld [vmem:[#allocation8 + $0x118] sm:$0xff]
        %v1055 = vld [vmem:[#allocation8 + $0x120] sm:$0xff]
        %v1056 = vld [vmem:[#allocation8 + $0x128] sm:$0xff]
        %v1057 = vld [vmem:[#allocation8 + $0x130] sm:$0xff]
        %v1058 = vld [vmem:[#allocation8 + $0x138] sm:$0xff]
        %v1059 = vld [vmem:[#allocation8 + $0x140] sm:$0xff]
        %v1060 = vld [vmem:[#allocation8 + $0x148] sm:$0xff]
        %v1061 = vld [vmem:[#allocation8 + $0x150] sm:$0xff]
        %v1062 = vld [vmem:[#allocation8 + $0x158] sm:$0xff]
        %v1063 = vld [vmem:[#allocation8 + $0x160] sm:$0xff]
        %v1064 = vld [vmem:[#allocation8 + $0x168] sm:$0xff]
        %v1065 = vld [vmem:[#allocation8 + $0x170] sm:$0xff]
        %v1066 = vld [vmem:[#allocation8 + $0x178] sm:$0xff]
        %v1067 = vld [vmem:[#allocation8 + $0x180] sm:$0xff]
        %v1068 = vld [vmem:[#allocation8 + $0x188] sm:$0xff]
        %v1069 = vld [vmem:[#allocation8 + $0x190] sm:$0xff]
        %v1070 = vld [vmem:[#allocation8 + $0x198] sm:$0xff]
        %v1071 = vld [vmem:[#allocation8 + $0x1a0] sm:$0xff]
        %v1072 = vld [vmem:[#allocation8 + $0x1a8] sm:$0xff]
        %v1073 = vld [vmem:[#allocation8 + $0x1b0] sm:$0xff]
        %v1074 = vld [vmem:[#allocation8 + $0x1b8] sm:$0xff]
        %v1075 = vld [vmem:[#allocation8 + $0x1c0] sm:$0xff]
        %v1076 = vld [vmem:[#allocation8 + $0x1c8] sm:$0xff]
        %v1077 = vld [vmem:[#allocation8 + $0x1d0] sm:$0xff]
        %v1078 = vld [vmem:[#allocation8 + $0x1d8] sm:$0xff]
        %v1079 = vld [vmem:[#allocation8 + $0x1e0] sm:$0xff]
        %v1080 = vld [vmem:[#allocation8 + $0x1e8] sm:$0xff]
        %v1081 = vld [vmem:[#allocation8 + $0x1f0] sm:$0xff]
        %v1082 = vld [vmem:[#allocation8 + $0x1f8] sm:$0xff]
        %v1083 = vld [vmem:[#allocation8 + $0x200] sm:$0xff]
        %v1084 = vld [vmem:[#allocation8 + $0x208] sm:$0xff]
        %v1085 = vld [vmem:[#allocation8 + $0x210] sm:$0xff]
        %v1086 = vld [vmem:[#allocation8 + $0x218] sm:$0xff]
        %v1087 = vld [vmem:[#allocation8 + $0x220] sm:$0xff]
        %v1088 = vld [vmem:[#allocation8 + $0x228] sm:$0xff]
        %v1089 = vld [vmem:[#allocation8 + $0x230] sm:$0xff]
        %v1090 = vld [vmem:[#allocation8 + $0x238] sm:$0xff]
        %v1091 = vld [vmem:[#allocation8 + $0x240] sm:$0xff]
        %v1092 = vld [vmem:[#allocation8 + $0x248] sm:$0xff]
        %v1093 = vld [vmem:[#allocation8 + $0x250] sm:$0xff]
        %v1094 = vld [vmem:[#allocation8 + $0x258] sm:$0xff]
        %v1095 = vld [vmem:[#allocation8 + $0x260] sm:$0xff]
        %v1096 = vld [vmem:[#allocation8 + $0x268] sm:$0xff]
        %v1097 = vld [vmem:[#allocation8 + $0x270] sm:$0xff]
        %v1098 = vld [vmem:[#allocation8 + $0x278] sm:$0xff]
        %v1099 = vld [vmem:[#allocation8 + $0x280] sm:$0xff]
        %v1100 = vld [vmem:[#allocation8 + $0x288] sm:$0xff]
        %v1101 = vld [vmem:[#allocation8 + $0x290] sm:$0xff]
        %v1102 = vld [vmem:[#allocation8 + $0x298] sm:$0xff]
        %v1103 = vld [vmem:[#allocation8 + $0x2a0] sm:$0xff]
        %v1104 = vld [vmem:[#allocation8 + $0x2a8] sm:$0xff]
        %v1105 = vld [vmem:[#allocation8 + $0x2b0] sm:$0xff]
        %v1106 = vld [vmem:[#allocation8 + $0x2b8] sm:$0xff]
        %v1107 = vld [vmem:[#allocation8 + $0x2c0] sm:$0xff]
        %v1108 = vld [vmem:[#allocation8 + $0x2c8] sm:$0xff]
        %v1109 = vld [vmem:[#allocation8 + $0x2d0] sm:$0xff]
        %v1110 = vld [vmem:[#allocation8 + $0x2d8] sm:$0xff]
        %v1111 = vld [vmem:[#allocation8 + $0x2e0] sm:$0xff]
        %v1112 = vld [vmem:[#allocation8 + $0x2e8] sm:$0xff]
        %v1113 = vld [vmem:[#allocation8 + $0x2f0] sm:$0xff]
        %v1114 = vld [vmem:[#allocation8 + $0x2f8] sm:$0xff]
        %v1115 = vld [vmem:[#allocation8 + $0x300] sm:$0xff]
        %v1116 = vld [vmem:[#allocation8 + $0x308] sm:$0xff]
        %v1117 = vld [vmem:[#allocation8 + $0x310] sm:$0xff]
        %v1118 = vld [vmem:[#allocation8 + $0x318] sm:$0xff]
        %v1119 = vld [vmem:[#allocation8 + $0x320] sm:$0xff]
        %v1120 = vld [vmem:[#allocation8 + $0x328] sm:$0xff]
        %v1121 = vld [vmem:[#allocation8 + $0x330] sm:$0xff]
        %v1122 = vld [vmem:[#allocation8 + $0x338] sm:$0xff]
        %v1123 = vld [vmem:[#allocation8 + $0x340] sm:$0xff]
        %v1124 = vld [vmem:[#allocation8 + $0x348] sm:$0xff]
        %v1125 = vld [vmem:[#allocation8 + $0x350] sm:$0xff]
        %v1126 = vld [vmem:[#allocation8 + $0x358] sm:$0xff]
        %v1127 = vld [vmem:[#allocation8 + $0x360] sm:$0xff]
        %v1128 = vld [vmem:[#allocation8 + $0x368] sm:$0xff]
        %v1129 = vld [vmem:[#allocation8 + $0x370] sm:$0xff]
        %v1130 = vld [vmem:[#allocation8 + $0x378] sm:$0xff]
        %v1131 = vld [vmem:[#allocation8 + $0x380] sm:$0xff]
        %v1132 = vld [vmem:[#allocation8 + $0x388] sm:$0xff]
        %v1133 = vld [vmem:[#allocation8 + $0x390] sm:$0xff]
        %v1134 = vld [vmem:[#allocation8 + $0x398] sm:$0xff]
        %v1135 = vld [vmem:[#allocation8 + $0x3a0] sm:$0xff]
        %v1136 = vld [vmem:[#allocation8 + $0x3a8] sm:$0xff]
        %v1137 = vld [vmem:[#allocation8 + $0x3b0] sm:$0xff]
        %v1138 = vld [vmem:[#allocation8 + $0x3b8] sm:$0xff]
        %v1139 = vld [vmem:[#allocation8 + $0x3c0] sm:$0xff]
        %v1140 = vld [vmem:[#allocation8 + $0x3c8] sm:$0xff]
        %v1141 = vld [vmem:[#allocation8 + $0x3d0] sm:$0xff]
        %v1142 = vld [vmem:[#allocation8 + $0x3d8] sm:$0xff]
        %v1143 = vld [vmem:[#allocation8 + $0x3e0] sm:$0xff]
        %v1144 = vld [vmem:[#allocation8 + $0x3e8] sm:$0xff]
        %v1145 = vld [vmem:[#allocation8 + $0x3f0] sm:$0xff]
        %v1146 = vld [vmem:[#allocation8 + $0x3f8] sm:$0xff]
        %v1147 = vld [vmem:[#allocation8 + $0x400] sm:$0xff]
        %v1148 = vld [vmem:[#allocation8 + $0x408] sm:$0xff]
        %v1149 = vld [vmem:[#allocation8 + $0x410] sm:$0xff]
        %v1150 = vld [vmem:[#allocation8 + $0x418] sm:$0xff]
        %v1151 = vld [vmem:[#allocation8 + $0x420] sm:$0xff]
        %v1152 = vld [vmem:[#allocation8 + $0x428] sm:$0xff]
        %v1153 = vld [vmem:[#allocation8 + $0x430] sm:$0xff]
        %v1154 = vld [vmem:[#allocation8 + $0x438] sm:$0xff]
        %v1155 = vld [vmem:[#allocation8 + $0x440] sm:$0xff]
        %v1156 = vld [vmem:[#allocation8 + $0x448] sm:$0xff]
        %v1157 = vld [vmem:[#allocation8 + $0x450] sm:$0xff]
        %v1158 = vld [vmem:[#allocation8 + $0x458] sm:$0xff]
        %v1159 = vld [vmem:[#allocation8 + $0x460] sm:$0xff]
        %v1160 = vld [vmem:[#allocation8 + $0x468] sm:$0xff]
        %v1161 = vld [vmem:[#allocation8 + $0x470] sm:$0xff]
        %v1162 = vld [vmem:[#allocation8 + $0x478] sm:$0xff]
        %v1163 = vld [vmem:[#allocation8 + $0x480] sm:$0xff]
        %v1164 = vld [vmem:[#allocation8 + $0x488] sm:$0xff]
        %v1165 = vld [vmem:[#allocation8 + $0x490] sm:$0xff]
        %v1166 = vld [vmem:[#allocation8 + $0x498] sm:$0xff]
        %v1167 = vld [vmem:[#allocation8 + $0x4a0] sm:$0xff]
        %v1168 = vld [vmem:[#allocation8 + $0x4a8] sm:$0xff]
        %v1169 = vld [vmem:[#allocation8 + $0x4b0] sm:$0xff]
        %v1170 = vld [vmem:[#allocation8 + $0x4b8] sm:$0xff]
        %v1171 = vld [vmem:[#allocation8 + $0x4c0] sm:$0xff]
        %v1172 = vld [vmem:[#allocation8 + $0x4c8] sm:$0xff]
        %v1173 = vld [vmem:[#allocation8 + $0x4d0] sm:$0xff]
        %v1174 = vld [vmem:[#allocation8 + $0x4d8] sm:$0xff]
        %v1175 = vld [vmem:[#allocation8 + $0x4e0] sm:$0xff]
        %v1176 = vld [vmem:[#allocation8 + $0x4e8] sm:$0xff]
        %v1177 = vld [vmem:[#allocation8 + $0x4f0] sm:$0xff]
        %v1178 = vld [vmem:[#allocation8 + $0x4f8] sm:$0xff]
        %v1179 = vld [vmem:[#allocation8 + $0x500] sm:$0xff]
        %v1180 = vld [vmem:[#allocation8 + $0x508] sm:$0xff]
        %v1181 = vld [vmem:[#allocation8 + $0x510] sm:$0xff]
        %v1182 = vld [vmem:[#allocation8 + $0x518] sm:$0xff]
        %v1183 = vld [vmem:[#allocation8 + $0x520] sm:$0xff]
        %v1184 = vld [vmem:[#allocation8 + $0x528] sm:$0xff]
        %v1185 = vld [vmem:[#allocation8 + $0x530] sm:$0xff]
        %v1186 = vld [vmem:[#allocation8 + $0x538] sm:$0xff]
        %v1187 = vld [vmem:[#allocation8 + $0x540] sm:$0xff]
        %v1188 = vld [vmem:[#allocation8 + $0x548] sm:$0xff]
        %v1189 = vld [vmem:[#allocation8 + $0x550] sm:$0xff]
        %v1190 = vld [vmem:[#allocation8 + $0x558] sm:$0xff]
        %v1191 = vld [vmem:[#allocation8 + $0x560] sm:$0xff]
        %v1192 = vld [vmem:[#allocation8 + $0x568] sm:$0xff]
        %v1193 = vld [vmem:[#allocation8 + $0x570] sm:$0xff]
        %v1194 = vld [vmem:[#allocation8 + $0x578] sm:$0xff]
        %v1195 = vld [vmem:[#allocation8 + $0x580] sm:$0xff]
        %v1196 = vld [vmem:[#allocation8 + $0x588] sm:$0xff]
        %v1197 = vld [vmem:[#allocation8 + $0x590] sm:$0xff]
        %v1198 = vld [vmem:[#allocation8 + $0x598] sm:$0xff]
        %v1199 = vld [vmem:[#allocation8 + $0x5a0] sm:$0xff]
        %v1200 = vld [vmem:[#allocation8 + $0x5a8] sm:$0xff]
        %v1201 = vld [vmem:[#allocation8 + $0x5b0] sm:$0xff]
        %v1202 = vld [vmem:[#allocation8 + $0x5b8] sm:$0xff]
        %v1203 = vld [vmem:[#allocation8 + $0x5c0] sm:$0xff]
        %v1204 = vld [vmem:[#allocation8 + $0x5c8] sm:$0xff]
        %v1205 = vld [vmem:[#allocation8 + $0x5d0] sm:$0xff]
        %v1206 = vld [vmem:[#allocation8 + $0x5d8] sm:$0xff]
        %v1207 = vld [vmem:[#allocation8 + $0x5e0] sm:$0xff]
        %v1208 = vld [vmem:[#allocation8 + $0x5e8] sm:$0xff]
        %v1209 = vld [vmem:[#allocation8 + $0x5f0] sm:$0xff]
        %v1210 = vld [vmem:[#allocation8 + $0x5f8] sm:$0xff]
        %v1211 = vld [vmem:[#allocation8 + $0x600] sm:$0xff]
        %v1212 = vld [vmem:[#allocation8 + $0x608] sm:$0xff]
        %v1213 = vld [vmem:[#allocation8 + $0x610] sm:$0xff]
        %v1214 = vld [vmem:[#allocation8 + $0x618] sm:$0xff]
        %v1215 = vld [vmem:[#allocation8 + $0x620] sm:$0xff]
        %v1216 = vld [vmem:[#allocation8 + $0x628] sm:$0xff]
        %v1217 = vld [vmem:[#allocation8 + $0x630] sm:$0xff]
        %v1218 = vld [vmem:[#allocation8 + $0x638] sm:$0xff]
        %v1219 = vld [vmem:[#allocation8 + $0x640] sm:$0xff]
        %v1220 = vld [vmem:[#allocation8 + $0x648] sm:$0xff]
        %v1221 = vld [vmem:[#allocation8 + $0x650] sm:$0xff]
        %v1222 = vld [vmem:[#allocation8 + $0x658] sm:$0xff]
        %v1223 = vld [vmem:[#allocation8 + $0x660] sm:$0xff]
        %v1224 = vld [vmem:[#allocation8 + $0x668] sm:$0xff]
        %v1225 = vld [vmem:[#allocation8 + $0x670] sm:$0xff]
        %v1226 = vld [vmem:[#allocation8 + $0x678] sm:$0xff]
        %v1227 = vld [vmem:[#allocation8 + $0x680] sm:$0xff]
        %v1228 = vld [vmem:[#allocation8 + $0x688] sm:$0xff]
        %v1229 = vld [vmem:[#allocation8 + $0x690] sm:$0xff]
        %v1230 = vld [vmem:[#allocation8 + $0x698] sm:$0xff]
        %v1231 = vld [vmem:[#allocation8 + $0x6a0] sm:$0xff]
        %v1232 = vld [vmem:[#allocation8 + $0x6a8] sm:$0xff]
        %v1233 = vld [vmem:[#allocation8 + $0x6b0] sm:$0xff]
        %v1234 = vld [vmem:[#allocation8 + $0x6b8] sm:$0xff]
        %v1235 = vld [vmem:[#allocation8 + $0x6c0] sm:$0xff]
        %v1236 = vld [vmem:[#allocation8 + $0x6c8] sm:$0xff]
        %v1237 = vld [vmem:[#allocation8 + $0x6d0] sm:$0xff]
        %v1238 = vld [vmem:[#allocation8 + $0x6d8] sm:$0xff]
        %v1239 = vld [vmem:[#allocation8 + $0x6e0] sm:$0xff]
        %v1240 = vld [vmem:[#allocation8 + $0x6e8] sm:$0xff]
        %v1241 = vld [vmem:[#allocation8 + $0x6f0] sm:$0xff]
        %v1242 = vld [vmem:[#allocation8 + $0x6f8] sm:$0xff]
        %v1243 = vld [vmem:[#allocation8 + $0x700] sm:$0xff]
        %v1244 = vld [vmem:[#allocation8 + $0x708] sm:$0xff]
        %v1245 = vld [vmem:[#allocation8 + $0x710] sm:$0xff]
        %v1246 = vld [vmem:[#allocation8 + $0x718] sm:$0xff]
        %v1247 = vld [vmem:[#allocation8 + $0x720] sm:$0xff]
        %v1248 = vld [vmem:[#allocation8 + $0x728] sm:$0xff]
        %v1249 = vld [vmem:[#allocation8 + $0x730] sm:$0xff]
        %v1250 = vld [vmem:[#allocation8 + $0x738] sm:$0xff]
        %v1251 = vld [vmem:[#allocation8 + $0x740] sm:$0xff]
        %v1252 = vld [vmem:[#allocation8 + $0x748] sm:$0xff]
        %v1253 = vld [vmem:[#allocation8 + $0x750] sm:$0xff]
        %v1254 = vld [vmem:[#allocation8 + $0x758] sm:$0xff]
        %v1255 = vld [vmem:[#allocation8 + $0x760] sm:$0xff]
        %v1256 = vld [vmem:[#allocation8 + $0x768] sm:$0xff]
        %v1257 = vld [vmem:[#allocation8 + $0x770] sm:$0xff]
        %v1258 = vld [vmem:[#allocation8 + $0x778] sm:$0xff]
        %v1259 = vld [vmem:[#allocation8 + $0x780] sm:$0xff]
        %v1260 = vld [vmem:[#allocation8 + $0x788] sm:$0xff]
        %v1261 = vld [vmem:[#allocation8 + $0x790] sm:$0xff]
        %v1262 = vld [vmem:[#allocation8 + $0x798] sm:$0xff]
        %v1263 = vld [vmem:[#allocation8 + $0x7a0] sm:$0xff]
        %v1264 = vld [vmem:[#allocation8 + $0x7a8] sm:$0xff]
        %v1265 = vld [vmem:[#allocation8 + $0x7b0] sm:$0xff]
        %v1266 = vld [vmem:[#allocation8 + $0x7b8] sm:$0xff]
        %v1267 = vld [vmem:[#allocation8 + $0x7c0] sm:$0xff]
        %v1268 = vld [vmem:[#allocation8 + $0x7c8] sm:$0xff]
        %v1269 = vld [vmem:[#allocation8 + $0x7d0] sm:$0xff]
        %v1270 = vld [vmem:[#allocation8 + $0x7d8] sm:$0xff]
        %v1271 = vld [vmem:[#allocation8 + $0x7e0] sm:$0xff]
        %v1272 = vld [vmem:[#allocation8 + $0x7e8] sm:$0xff]
        %v1273 = vld [vmem:[#allocation8 + $0x7f0] sm:$0xff]
        %v1274 = vld [vmem:[#allocation8 + $0x7f8] sm:$0xff]
        %v1275 = vld [vmem:[%s4] sm:$0x1]
        %v1277 = vlaneseq
        %v1278 = vshrl.u32 %v1277, 7
        %v1279 = vsub.s32 0, %v1278
        %v1280 = vrot.slane %v1275, %v1279
        %1282 = vmatprep.subr.mxu0 0.0
        %1283 = vmatpush1.msra.mxu0 %v1019
        %1284 = vmatprep.subr.mxu0 0.0
        %1285 = vmatpush1.msra.mxu0 %v1020
        %1286 = vmatprep.subr.mxu0 0.0
        %1287 = vmatpush1.msra.mxu0 %v1021
        %1288 = vmatprep.subr.mxu0 0.0
        %1289 = vmatpush1.msra.mxu0 %v1022
        %1290 = vmatprep.subr.mxu0 0.0
        %1291 = vmatpush1.msra.mxu0 %v1023
        %1292 = vmatprep.subr.mxu0 0.0
        %1293 = vmatpush1.msra.mxu0 %v1024
        %1294 = vmatprep.subr.mxu0 0.0
        %1295 = vmatpush1.msra.mxu0 %v1025
        %1296 = vmatprep.subr.mxu0 0.0
        %1297 = vmatpush1.msra.mxu0 %v1026
        %1298 = vmatprep.subr.mxu0 0.0
        %1299 = vmatpush1.msra.mxu0 %v1027
        %1300 = vmatprep.subr.mxu0 0.0
        %1301 = vmatpush1.msra.mxu0 %v1028
        %1302 = vmatprep.subr.mxu0 0.0
        %1303 = vmatpush1.msra.mxu0 %v1029
        %1304 = vmatprep.subr.mxu0 0.0
        %1305 = vmatpush1.msra.mxu0 %v1030
        %1306 = vmatprep.subr.mxu0 0.0
        %1307 = vmatpush1.msra.mxu0 %v1031
        %1308 = vmatprep.subr.mxu0 0.0
        %1309 = vmatpush1.msra.mxu0 %v1032
        %1310 = vmatprep.subr.mxu0 0.0
        %1311 = vmatpush1.msra.mxu0 %v1033
        %1312 = vmatprep.subr.mxu0 0.0
        %1313 = vmatpush1.msra.mxu0 %v1034
        %1314 = vmatprep.subr.mxu0 0.0
        %1315 = vmatpush1.msra.mxu0 %v1035
        %1316 = vmatprep.subr.mxu0 0.0
        %1317 = vmatpush1.msra.mxu0 %v1036
        %1318 = vmatprep.subr.mxu0 0.0
        %1319 = vmatpush1.msra.mxu0 %v1037
        %1320 = vmatprep.subr.mxu0 0.0
        %1321 = vmatpush1.msra.mxu0 %v1038
        %1322 = vmatprep.subr.mxu0 0.0
        %1323 = vmatpush1.msra.mxu0 %v1039
        %1324 = vmatprep.subr.mxu0 0.0
        %1325 = vmatpush1.msra.mxu0 %v1040
        %1326 = vmatprep.subr.mxu0 0.0
        %1327 = vmatpush1.msra.mxu0 %v1041
        %1328 = vmatprep.subr.mxu0 0.0
        %1329 = vmatpush1.msra.mxu0 %v1042
        %1330 = vmatprep.subr.mxu0 0.0
        %1331 = vmatpush1.msra.mxu0 %v1043
        %1332 = vmatprep.subr.mxu0 0.0
        %1333 = vmatpush1.msra.mxu0 %v1044
        %1334 = vmatprep.subr.mxu0 0.0
        %1335 = vmatpush1.msra.mxu0 %v1045
        %1336 = vmatprep.subr.mxu0 0.0
        %1337 = vmatpush1.msra.mxu0 %v1046
        %1338 = vmatprep.subr.mxu0 0.0
        %1339 = vmatpush1.msra.mxu0 %v1047
        %1340 = vmatprep.subr.mxu0 0.0
        %1341 = vmatpush1.msra.mxu0 %v1048
        %1342 = vmatprep.subr.mxu0 0.0
        %1343 = vmatpush1.msra.mxu0 %v1049
        %1344 = vmatprep.subr.mxu0 0.0
        %1345 = vmatpush1.msra.mxu0 %v1050
        %1346 = vmatprep.mubr.f32.mxu0 %v1004
        %1347 = vmatmul.mubr.f32.gmra.mrb[0].mxu0 %v1003
        %v1348 = vpop.f32.mrb[0].mxu0
        %v1349 = vadd.f32 %v1280, %v1348
        %v1350 = vpop.f32.mrb[0].mxu0
        %1351 = vdwg.mxu0
        %1352 = vmatprep.subr.mxu0 0.0
        %1353 = vmatpush1.msra.mxu0 %v1051
        %1354 = vmatprep.subr.mxu0 0.0
        %1355 = vmatpush1.msra.mxu0 %v1052
        %1356 = vmatprep.subr.mxu0 0.0
        %1357 = vmatpush1.msra.mxu0 %v1053
        %1358 = vmatprep.subr.mxu0 0.0
        %1359 = vmatpush1.msra.mxu0 %v1054
        %1360 = vmatprep.subr.mxu0 0.0
        %1361 = vmatpush1.msra.mxu0 %v1055
        %1362 = vmatprep.subr.mxu0 0.0
        %1363 = vmatpush1.msra.mxu0 %v1056
        %1364 = vmatprep.subr.mxu0 0.0
        %1365 = vmatpush1.msra.mxu0 %v1057
        %1366 = vmatprep.subr.mxu0 0.0
        %1367 = vmatpush1.msra.mxu0 %v1058
        %1368 = vmatprep.subr.mxu0 0.0
        %1369 = vmatpush1.msra.mxu0 %v1059
        %1370 = vmatprep.subr.mxu0 0.0
        %1371 = vmatpush1.msra.mxu0 %v1060
        %1372 = vmatprep.subr.mxu0 0.0
        %1373 = vmatpush1.msra.mxu0 %v1061
        %1374 = vmatprep.subr.mxu0 0.0
        %1375 = vmatpush1.msra.mxu0 %v1062
        %1376 = vmatprep.subr.mxu0 0.0
        %1377 = vmatpush1.msra.mxu0 %v1063
        %1378 = vmatprep.subr.mxu0 0.0
        %1379 = vmatpush1.msra.mxu0 %v1064
        %1380 = vmatprep.subr.mxu0 0.0
        %1381 = vmatpush1.msra.mxu0 %v1065
        %1382 = vmatprep.subr.mxu0 0.0
        %1383 = vmatpush1.msra.mxu0 %v1066
        %1384 = vmatprep.subr.mxu0 0.0
        %1385 = vmatpush1.msra.mxu0 %v1067
        %1386 = vmatprep.subr.mxu0 0.0
        %1387 = vmatpush1.msra.mxu0 %v1068
        %1388 = vmatprep.subr.mxu0 0.0
        %1389 = vmatpush1.msra.mxu0 %v1069
        %1390 = vmatprep.subr.mxu0 0.0
        %1391 = vmatpush1.msra.mxu0 %v1070
        %1392 = vmatprep.subr.mxu0 0.0
        %1393 = vmatpush1.msra.mxu0 %v1071
        %1394 = vmatprep.subr.mxu0 0.0
        %1395 = vmatpush1.msra.mxu0 %v1072
        %1396 = vmatprep.subr.mxu0 0.0
        %1397 = vmatpush1.msra.mxu0 %v1073
        %1398 = vmatprep.subr.mxu0 0.0
        %1399 = vmatpush1.msra.mxu0 %v1074
        %1400 = vmatprep.subr.mxu0 0.0
        %1401 = vmatpush1.msra.mxu0 %v1075
        %1402 = vmatprep.subr.mxu0 0.0
        %1403 = vmatpush1.msra.mxu0 %v1076
        %1404 = vmatprep.subr.mxu0 0.0
        %1405 = vmatpush1.msra.mxu0 %v1077
        %1406 = vmatprep.subr.mxu0 0.0
        %1407 = vmatpush1.msra.mxu0 %v1078
        %1408 = vmatprep.subr.mxu0 0.0
        %1409 = vmatpush1.msra.mxu0 %v1079
        %1410 = vmatprep.subr.mxu0 0.0
        %1411 = vmatpush1.msra.mxu0 %v1080
        %1412 = vmatprep.subr.mxu0 0.0
        %1413 = vmatpush1.msra.mxu0 %v1081
        %1414 = vmatprep.subr.mxu0 0.0
        %1415 = vmatpush1.msra.mxu0 %v1082
        %1416 = vmatprep.mubr.f32.mxu0 %v1006
        %1417 = vmatmul.mubr.f32.gmra.mrb[0].mxu0 %v1005
        %v1418 = vpop.f32.mrb[0].mxu0
        %v1419 = vadd.f32 %v1349, %v1418
        %v1420 = vpop.f32.mrb[0].mxu0
        %1421 = vdwg.mxu0
        %1422 = vmatprep.subr.mxu0 0.0
        %1423 = vmatpush1.msra.mxu0 %v1083
        %1424 = vmatprep.subr.mxu0 0.0
        %1425 = vmatpush1.msra.mxu0 %v1084
        %1426 = vmatprep.subr.mxu0 0.0
        %1427 = vmatpush1.msra.mxu0 %v1085
        %1428 = vmatprep.subr.mxu0 0.0
        %1429 = vmatpush1.msra.mxu0 %v1086
        %1430 = vmatprep.subr.mxu0 0.0
        %1431 = vmatpush1.msra.mxu0 %v1087
        %1432 = vmatprep.subr.mxu0 0.0
        %1433 = vmatpush1.msra.mxu0 %v1088
        %1434 = vmatprep.subr.mxu0 0.0
        %1435 = vmatpush1.msra.mxu0 %v1089
        %1436 = vmatprep.subr.mxu0 0.0
        %1437 = vmatpush1.msra.mxu0 %v1090
        %1438 = vmatprep.subr.mxu0 0.0
        %1439 = vmatpush1.msra.mxu0 %v1091
        %1440 = vmatprep.subr.mxu0 0.0
        %1441 = vmatpush1.msra.mxu0 %v1092
        %1442 = vmatprep.subr.mxu0 0.0
        %1443 = vmatpush1.msra.mxu0 %v1093
        %1444 = vmatprep.subr.mxu0 0.0
        %1445 = vmatpush1.msra.mxu0 %v1094
        %1446 = vmatprep.subr.mxu0 0.0
        %1447 = vmatpush1.msra.mxu0 %v1095
        %1448 = vmatprep.subr.mxu0 0.0
        %1449 = vmatpush1.msra.mxu0 %v1096
        %1450 = vmatprep.subr.mxu0 0.0
        %1451 = vmatpush1.msra.mxu0 %v1097
        %1452 = vmatprep.subr.mxu0 0.0
        %1453 = vmatpush1.msra.mxu0 %v1098
        %1454 = vmatprep.subr.mxu0 0.0
        %1455 = vmatpush1.msra.mxu0 %v1099
        %1456 = vmatprep.subr.mxu0 0.0
        %1457 = vmatpush1.msra.mxu0 %v1100
        %1458 = vmatprep.subr.mxu0 0.0
        %1459 = vmatpush1.msra.mxu0 %v1101
        %1460 = vmatprep.subr.mxu0 0.0
        %1461 = vmatpush1.msra.mxu0 %v1102
        %1462 = vmatprep.subr.mxu0 0.0
        %1463 = vmatpush1.msra.mxu0 %v1103
        %1464 = vmatprep.subr.mxu0 0.0
        %1465 = vmatpush1.msra.mxu0 %v1104
        %1466 = vmatprep.subr.mxu0 0.0
        %1467 = vmatpush1.msra.mxu0 %v1105
        %1468 = vmatprep.subr.mxu0 0.0
        %1469 = vmatpush1.msra.mxu0 %v1106
        %1470 = vmatprep.subr.mxu0 0.0
        %1471 = vmatpush1.msra.mxu0 %v1107
        %1472 = vmatprep.subr.mxu0 0.0
        %1473 = vmatpush1.msra.mxu0 %v1108
        %1474 = vmatprep.subr.mxu0 0.0
        %1475 = vmatpush1.msra.mxu0 %v1109
        %1476 = vmatprep.subr.mxu0 0.0
        %1477 = vmatpush1.msra.mxu0 %v1110
        %1478 = vmatprep.subr.mxu0 0.0
        %1479 = vmatpush1.msra.mxu0 %v1111
        %1480 = vmatprep.subr.mxu0 0.0
        %1481 = vmatpush1.msra.mxu0 %v1112
        %1482 = vmatprep.subr.mxu0 0.0
        %1483 = vmatpush1.msra.mxu0 %v1113
        %1484 = vmatprep.subr.mxu0 0.0
        %1485 = vmatpush1.msra.mxu0 %v1114
        %1486 = vmatprep.mubr.f32.mxu0 %v1008
        %1487 = vmatmul.mubr.f32.gmra.mrb[0].mxu0 %v1007
        %v1488 = vpop.f32.mrb[0].mxu0
        %v1489 = vadd.f32 %v1419, %v1488
        %v1490 = vpop.f32.mrb[0].mxu0
        %1491 = vdwg.mxu0
        %1492 = vmatprep.subr.mxu0 0.0
        %1493 = vmatpush1.msra.mxu0 %v1115
        %1494 = vmatprep.subr.mxu0 0.0
        %1495 = vmatpush1.msra.mxu0 %v1116
        %1496 = vmatprep.subr.mxu0 0.0
        %1497 = vmatpush1.msra.mxu0 %v1117
        %1498 = vmatprep.subr.mxu0 0.0
        %1499 = vmatpush1.msra.mxu0 %v1118
        %1500 = vmatprep.subr.mxu0 0.0
        %1501 = vmatpush1.msra.mxu0 %v1119
        %1502 = vmatprep.subr.mxu0 0.0
        %1503 = vmatpush1.msra.mxu0 %v1120
        %1504 = vmatprep.subr.mxu0 0.0
        %1505 = vmatpush1.msra.mxu0 %v1121
        %1506 = vmatprep.subr.mxu0 0.0
        %1507 = vmatpush1.msra.mxu0 %v1122
        %1508 = vmatprep.subr.mxu0 0.0
        %1509 = vmatpush1.msra.mxu0 %v1123
        %1510 = vmatprep.subr.mxu0 0.0
        %1511 = vmatpush1.msra.mxu0 %v1124
        %1512 = vmatprep.subr.mxu0 0.0
        %1513 = vmatpush1.msra.mxu0 %v1125
        %1514 = vmatprep.subr.mxu0 0.0
        %1515 = vmatpush1.msra.mxu0 %v1126
        %1516 = vmatprep.subr.mxu0 0.0
        %1517 = vmatpush1.msra.mxu0 %v1127
        %1518 = vmatprep.subr.mxu0 0.0
        %1519 = vmatpush1.msra.mxu0 %v1128
        %1520 = vmatprep.subr.mxu0 0.0
        %1521 = vmatpush1.msra.mxu0 %v1129
        %1522 = vmatprep.subr.mxu0 0.0
        %1523 = vmatpush1.msra.mxu0 %v1130
        %1524 = vmatprep.subr.mxu0 0.0
        %1525 = vmatpush1.msra.mxu0 %v1131
        %1526 = vmatprep.subr.mxu0 0.0
        %1527 = vmatpush1.msra.mxu0 %v1132
        %1528 = vmatprep.subr.mxu0 0.0
        %1529 = vmatpush1.msra.mxu0 %v1133
        %1530 = vmatprep.subr.mxu0 0.0
        %1531 = vmatpush1.msra.mxu0 %v1134
        %1532 = vmatprep.subr.mxu0 0.0
        %1533 = vmatpush1.msra.mxu0 %v1135
        %1534 = vmatprep.subr.mxu0 0.0
        %1535 = vmatpush1.msra.mxu0 %v1136
        %1536 = vmatprep.subr.mxu0 0.0
        %1537 = vmatpush1.msra.mxu0 %v1137
        %1538 = vmatprep.subr.mxu0 0.0
        %1539 = vmatpush1.msra.mxu0 %v1138
        %1540 = vmatprep.subr.mxu0 0.0
        %1541 = vmatpush1.msra.mxu0 %v1139
        %1542 = vmatprep.subr.mxu0 0.0
        %1543 = vmatpush1.msra.mxu0 %v1140
        %1544 = vmatprep.subr.mxu0 0.0
        %1545 = vmatpush1.msra.mxu0 %v1141
        %1546 = vmatprep.subr.mxu0 0.0
        %1547 = vmatpush1.msra.mxu0 %v1142
        %1548 = vmatprep.subr.mxu0 0.0
        %1549 = vmatpush1.msra.mxu0 %v1143
        %1550 = vmatprep.subr.mxu0 0.0
        %1551 = vmatpush1.msra.mxu0 %v1144
        %1552 = vmatprep.subr.mxu0 0.0
        %1553 = vmatpush1.msra.mxu0 %v1145
        %1554 = vmatprep.subr.mxu0 0.0
        %1555 = vmatpush1.msra.mxu0 %v1146
        %1556 = vmatprep.mubr.f32.mxu0 %v1010
        %1557 = vmatmul.mubr.f32.gmra.mrb[0].mxu0 %v1009
        %v1558 = vpop.f32.mrb[0].mxu0
        %v1559 = vadd.f32 %v1489, %v1558
        %v1560 = vpop.f32.mrb[0].mxu0
        %1561 = vdwg.mxu0
        %1562 = vmatprep.subr.mxu0 0.0
        %1563 = vmatpush1.msra.mxu0 %v1147
        %1564 = vmatprep.subr.mxu0 0.0
        %1565 = vmatpush1.msra.mxu0 %v1148
        %1566 = vmatprep.subr.mxu0 0.0
        %1567 = vmatpush1.msra.mxu0 %v1149
        %1568 = vmatprep.subr.mxu0 0.0
        %1569 = vmatpush1.msra.mxu0 %v1150
        %1570 = vmatprep.subr.mxu0 0.0
        %1571 = vmatpush1.msra.mxu0 %v1151
        %1572 = vmatprep.subr.mxu0 0.0
        %1573 = vmatpush1.msra.mxu0 %v1152
        %1574 = vmatprep.subr.mxu0 0.0
        %1575 = vmatpush1.msra.mxu0 %v1153
        %1576 = vmatprep.subr.mxu0 0.0
        %1577 = vmatpush1.msra.mxu0 %v1154
        %1578 = vmatprep.subr.mxu0 0.0
        %1579 = vmatpush1.msra.mxu0 %v1155
        %1580 = vmatprep.subr.mxu0 0.0
        %1581 = vmatpush1.msra.mxu0 %v1156
        %1582 = vmatprep.subr.mxu0 0.0
        %1583 = vmatpush1.msra.mxu0 %v1157
        %1584 = vmatprep.subr.mxu0 0.0
        %1585 = vmatpush1.msra.mxu0 %v1158
        %1586 = vmatprep.subr.mxu0 0.0
        %1587 = vmatpush1.msra.mxu0 %v1159
        %1588 = vmatprep.subr.mxu0 0.0
        %1589 = vmatpush1.msra.mxu0 %v1160
        %1590 = vmatprep.subr.mxu0 0.0
        %1591 = vmatpush1.msra.mxu0 %v1161
        %1592 = vmatprep.subr.mxu0 0.0
        %1593 = vmatpush1.msra.mxu0 %v1162
        %1594 = vmatprep.subr.mxu0 0.0
        %1595 = vmatpush1.msra.mxu0 %v1163
        %1596 = vmatprep.subr.mxu0 0.0
        %1597 = vmatpush1.msra.mxu0 %v1164
        %1598 = vmatprep.subr.mxu0 0.0
        %1599 = vmatpush1.msra.mxu0 %v1165
        %1600 = vmatprep.subr.mxu0 0.0
        %1601 = vmatpush1.msra.mxu0 %v1166
        %1602 = vmatprep.subr.mxu0 0.0
        %1603 = vmatpush1.msra.mxu0 %v1167
        %1604 = vmatprep.subr.mxu0 0.0
        %1605 = vmatpush1.msra.mxu0 %v1168
        %1606 = vmatprep.subr.mxu0 0.0
        %1607 = vmatpush1.msra.mxu0 %v1169
        %1608 = vmatprep.subr.mxu0 0.0
        %1609 = vmatpush1.msra.mxu0 %v1170
        %1610 = vmatprep.subr.mxu0 0.0
        %1611 = vmatpush1.msra.mxu0 %v1171
        %1612 = vmatprep.subr.mxu0 0.0
        %1613 = vmatpush1.msra.mxu0 %v1172
        %1614 = vmatprep.subr.mxu0 0.0
        %1615 = vmatpush1.msra.mxu0 %v1173
        %1616 = vmatprep.subr.mxu0 0.0
        %1617 = vmatpush1.msra.mxu0 %v1174
        %1618 = vmatprep.subr.mxu0 0.0
        %1619 = vmatpush1.msra.mxu0 %v1175
        %1620 = vmatprep.subr.mxu0 0.0
        %1621 = vmatpush1.msra.mxu0 %v1176
        %1622 = vmatprep.subr.mxu0 0.0
        %1623 = vmatpush1.msra.mxu0 %v1177
        %1624 = vmatprep.subr.mxu0 0.0
        %1625 = vmatpush1.msra.mxu0 %v1178
        %1626 = vmatprep.mubr.f32.mxu0 %v1012
        %1627 = vmatmul.mubr.f32.gmra.mrb[0].mxu0 %v1011
        %v1628 = vpop.f32.mrb[0].mxu0
        %v1629 = vadd.f32 %v1559, %v1628
        %v1630 = vpop.f32.mrb[0].mxu0
        %1631 = vdwg.mxu0
        %1632 = vmatprep.subr.mxu0 0.0
        %1633 = vmatpush1.msra.mxu0 %v1179
        %1634 = vmatprep.subr.mxu0 0.0
        %1635 = vmatpush1.msra.mxu0 %v1180
        %1636 = vmatprep.subr.mxu0 0.0
        %1637 = vmatpush1.msra.mxu0 %v1181
        %1638 = vmatprep.subr.mxu0 0.0
        %1639 = vmatpush1.msra.mxu0 %v1182
        %1640 = vmatprep.subr.mxu0 0.0
        %1641 = vmatpush1.msra.mxu0 %v1183
        %1642 = vmatprep.subr.mxu0 0.0
        %1643 = vmatpush1.msra.mxu0 %v1184
        %1644 = vmatprep.subr.mxu0 0.0
        %1645 = vmatpush1.msra.mxu0 %v1185
        %1646 = vmatprep.subr.mxu0 0.0
        %1647 = vmatpush1.msra.mxu0 %v1186
        %1648 = vmatprep.subr.mxu0 0.0
        %1649 = vmatpush1.msra.mxu0 %v1187
        %1650 = vmatprep.subr.mxu0 0.0
        %1651 = vmatpush1.msra.mxu0 %v1188
        %1652 = vmatprep.subr.mxu0 0.0
        %1653 = vmatpush1.msra.mxu0 %v1189
        %1654 = vmatprep.subr.mxu0 0.0
        %1655 = vmatpush1.msra.mxu0 %v1190
        %1656 = vmatprep.subr.mxu0 0.0
        %1657 = vmatpush1.msra.mxu0 %v1191
        %1658 = vmatprep.subr.mxu0 0.0
        %1659 = vmatpush1.msra.mxu0 %v1192
        %1660 = vmatprep.subr.mxu0 0.0
        %1661 = vmatpush1.msra.mxu0 %v1193
        %1662 = vmatprep.subr.mxu0 0.0
        %1663 = vmatpush1.msra.mxu0 %v1194
        %1664 = vmatprep.subr.mxu0 0.0
        %1665 = vmatpush1.msra.mxu0 %v1195
        %1666 = vmatprep.subr.mxu0 0.0
        %1667 = vmatpush1.msra.mxu0 %v1196
        %1668 = vmatprep.subr.mxu0 0.0
        %1669 = vmatpush1.msra.mxu0 %v1197
        %1670 = vmatprep.subr.mxu0 0.0
        %1671 = vmatpush1.msra.mxu0 %v1198
        %1672 = vmatprep.subr.mxu0 0.0
        %1673 = vmatpush1.msra.mxu0 %v1199
        %1674 = vmatprep.subr.mxu0 0.0
        %1675 = vmatpush1.msra.mxu0 %v1200
        %1676 = vmatprep.subr.mxu0 0.0
        %1677 = vmatpush1.msra.mxu0 %v1201
        %1678 = vmatprep.subr.mxu0 0.0
        %1679 = vmatpush1.msra.mxu0 %v1202
        %1680 = vmatprep.subr.mxu0 0.0
        %1681 = vmatpush1.msra.mxu0 %v1203
        %1682 = vmatprep.subr.mxu0 0.0
        %1683 = vmatpush1.msra.mxu0 %v1204
        %1684 = vmatprep.subr.mxu0 0.0
        %1685 = vmatpush1.msra.mxu0 %v1205
        %1686 = vmatprep.subr.mxu0 0.0
        %1687 = vmatpush1.msra.mxu0 %v1206
        %1688 = vmatprep.subr.mxu0 0.0
        %1689 = vmatpush1.msra.mxu0 %v1207
        %1690 = vmatprep.subr.mxu0 0.0
        %1691 = vmatpush1.msra.mxu0 %v1208
        %1692 = vmatprep.subr.mxu0 0.0
        %1693 = vmatpush1.msra.mxu0 %v1209
        %1694 = vmatprep.subr.mxu0 0.0
        %1695 = vmatpush1.msra.mxu0 %v1210
        %1696 = vmatprep.mubr.f32.mxu0 %v1014
        %1697 = vmatmul.mubr.f32.gmra.mrb[0].mxu0 %v1013
        %v1698 = vpop.f32.mrb[0].mxu0
        %v1699 = vadd.f32 %v1629, %v1698
        %v1700 = vpop.f32.mrb[0].mxu0
        %1701 = vdwg.mxu0
        %1702 = vmatprep.subr.mxu0 0.0
        %1703 = vmatpush1.msra.mxu0 %v1211
        %1704 = vmatprep.subr.mxu0 0.0
        %1705 = vmatpush1.msra.mxu0 %v1212
        %1706 = vmatprep.subr.mxu0 0.0
        %1707 = vmatpush1.msra.mxu0 %v1213
        %1708 = vmatprep.subr.mxu0 0.0
        %1709 = vmatpush1.msra.mxu0 %v1214
        %1710 = vmatprep.subr.mxu0 0.0
        %1711 = vmatpush1.msra.mxu0 %v1215
        %1712 = vmatprep.subr.mxu0 0.0
        %1713 = vmatpush1.msra.mxu0 %v1216
        %1714 = vmatprep.subr.mxu0 0.0
        %1715 = vmatpush1.msra.mxu0 %v1217
        %1716 = vmatprep.subr.mxu0 0.0
        %1717 = vmatpush1.msra.mxu0 %v1218
        %1718 = vmatprep.subr.mxu0 0.0
        %1719 = vmatpush1.msra.mxu0 %v1219
        %1720 = vmatprep.subr.mxu0 0.0
        %1721 = vmatpush1.msra.mxu0 %v1220
        %1722 = vmatprep.subr.mxu0 0.0
        %1723 = vmatpush1.msra.mxu0 %v1221
        %1724 = vmatprep.subr.mxu0 0.0
        %1725 = vmatpush1.msra.mxu0 %v1222
        %1726 = vmatprep.subr.mxu0 0.0
        %1727 = vmatpush1.msra.mxu0 %v1223
        %1728 = vmatprep.subr.mxu0 0.0
        %1729 = vmatpush1.msra.mxu0 %v1224
        %1730 = vmatprep.subr.mxu0 0.0
        %1731 = vmatpush1.msra.mxu0 %v1225
        %1732 = vmatprep.subr.mxu0 0.0
        %1733 = vmatpush1.msra.mxu0 %v1226
        %1734 = vmatprep.subr.mxu0 0.0
        %1735 = vmatpush1.msra.mxu0 %v1227
        %1736 = vmatprep.subr.mxu0 0.0
        %1737 = vmatpush1.msra.mxu0 %v1228
        %1738 = vmatprep.subr.mxu0 0.0
        %1739 = vmatpush1.msra.mxu0 %v1229
        %1740 = vmatprep.subr.mxu0 0.0
        %1741 = vmatpush1.msra.mxu0 %v1230
        %1742 = vmatprep.subr.mxu0 0.0
        %1743 = vmatpush1.msra.mxu0 %v1231
        %1744 = vmatprep.subr.mxu0 0.0
        %1745 = vmatpush1.msra.mxu0 %v1232
        %1746 = vmatprep.subr.mxu0 0.0
        %1747 = vmatpush1.msra.mxu0 %v1233
        %1748 = vmatprep.subr.mxu0 0.0
        %1749 = vmatpush1.msra.mxu0 %v1234
        %1750 = vmatprep.subr.mxu0 0.0
        %1751 = vmatpush1.msra.mxu0 %v1235
        %1752 = vmatprep.subr.mxu0 0.0
        %1753 = vmatpush1.msra.mxu0 %v1236
        %1754 = vmatprep.subr.mxu0 0.0
        %1755 = vmatpush1.msra.mxu0 %v1237
        %1756 = vmatprep.subr.mxu0 0.0
        %1757 = vmatpush1.msra.mxu0 %v1238
        %1758 = vmatprep.subr.mxu0 0.0
        %1759 = vmatpush1.msra.mxu0 %v1239
        %1760 = vmatprep.subr.mxu0 0.0
        %1761 = vmatpush1.msra.mxu0 %v1240
        %1762 = vmatprep.subr.mxu0 0.0
        %1763 = vmatpush1.msra.mxu0 %v1241
        %1764 = vmatprep.subr.mxu0 0.0
        %1765 = vmatpush1.msra.mxu0 %v1242
        %1766 = vmatprep.mubr.f32.mxu0 %v1016
        %1767 = vmatmul.mubr.f32.gmra.mrb[0].mxu0 %v1015
        %v1768 = vpop.f32.mrb[0].mxu0
        %v1769 = vadd.f32 %v1699, %v1768
        %v1770 = vpop.f32.mrb[0].mxu0
        %1771 = vdwg.mxu0
        %1772 = vmatprep.subr.mxu0 0.0
        %1773 = vmatpush1.msra.mxu0 %v1243
        %1774 = vmatprep.subr.mxu0 0.0
        %1775 = vmatpush1.msra.mxu0 %v1244
        %1776 = vmatprep.subr.mxu0 0.0
        %1777 = vmatpush1.msra.mxu0 %v1245
        %1778 = vmatprep.subr.mxu0 0.0
        %1779 = vmatpush1.msra.mxu0 %v1246
        %1780 = vmatprep.subr.mxu0 0.0
        %1781 = vmatpush1.msra.mxu0 %v1247
        %1782 = vmatprep.subr.mxu0 0.0
        %1783 = vmatpush1.msra.mxu0 %v1248
        %1784 = vmatprep.subr.mxu0 0.0
        %1785 = vmatpush1.msra.mxu0 %v1249
        %1786 = vmatprep.subr.mxu0 0.0
        %1787 = vmatpush1.msra.mxu0 %v1250
        %1788 = vmatprep.subr.mxu0 0.0
        %1789 = vmatpush1.msra.mxu0 %v1251
        %1790 = vmatprep.subr.mxu0 0.0
        %1791 = vmatpush1.msra.mxu0 %v1252
        %1792 = vmatprep.subr.mxu0 0.0
        %1793 = vmatpush1.msra.mxu0 %v1253
        %1794 = vmatprep.subr.mxu0 0.0
        %1795 = vmatpush1.msra.mxu0 %v1254
        %1796 = vmatprep.subr.mxu0 0.0
        %1797 = vmatpush1.msra.mxu0 %v1255
        %1798 = vmatprep.subr.mxu0 0.0
        %1799 = vmatpush1.msra.mxu0 %v1256
        %1800 = vmatprep.subr.mxu0 0.0
        %1801 = vmatpush1.msra.mxu0 %v1257
        %1802 = vmatprep.subr.mxu0 0.0
        %1803 = vmatpush1.msra.mxu0 %v1258
        %1804 = vmatprep.subr.mxu0 0.0
        %1805 = vmatpush1.msra.mxu0 %v1259
        %1806 = vmatprep.subr.mxu0 0.0
        %1807 = vmatpush1.msra.mxu0 %v1260
        %1808 = vmatprep.subr.mxu0 0.0
        %1809 = vmatpush1.msra.mxu0 %v1261
        %1810 = vmatprep.subr.mxu0 0.0
        %1811 = vmatpush1.msra.mxu0 %v1262
        %1812 = vmatprep.subr.mxu0 0.0
        %1813 = vmatpush1.msra.mxu0 %v1263
        %1814 = vmatprep.subr.mxu0 0.0
        %1815 = vmatpush1.msra.mxu0 %v1264
        %1816 = vmatprep.subr.mxu0 0.0
        %1817 = vmatpush1.msra.mxu0 %v1265
        %1818 = vmatprep.subr.mxu0 0.0
        %1819 = vmatpush1.msra.mxu0 %v1266
        %1820 = vmatprep.subr.mxu0 0.0
        %1821 = vmatpush1.msra.mxu0 %v1267
        %1822 = vmatprep.subr.mxu0 0.0
        %1823 = vmatpush1.msra.mxu0 %v1268
        %1824 = vmatprep.subr.mxu0 0.0
        %1825 = vmatpush1.msra.mxu0 %v1269
        %1826 = vmatprep.subr.mxu0 0.0
        %1827 = vmatpush1.msra.mxu0 %v1270
        %1828 = vmatprep.subr.mxu0 0.0
        %1829 = vmatpush1.msra.mxu0 %v1271
        %1830 = vmatprep.subr.mxu0 0.0
        %1831 = vmatpush1.msra.mxu0 %v1272
        %1832 = vmatprep.subr.mxu0 0.0
        %1833 = vmatpush1.msra.mxu0 %v1273
        %1834 = vmatprep.subr.mxu0 0.0
        %1835 = vmatpush1.msra.mxu0 %v1274
        %1836 = vmatprep.mubr.f32.mxu0 %v1018
        %1837 = vmatmul.mubr.f32.gmra.mrb[0].mxu0 %v1017
        %v1838 = vpop.f32.mrb[0].mxu0
        %v1839 = vadd.f32 %v1769, %v1838
        %v1840 = vpop.f32.mrb[0].mxu0
        %1841 = vdwg.mxu0
        %1842 = vst [vmem:[%s281] sm:$0xff] %v1839
        %s1843 = sand.u32 %s142, 1
        %s1844 = scalar_lea.sflag [#allocation4], %s1843
        %s1845 = sand.u32 %s142, 1
        %s1846 = smul.addr %s1845, 8
        %s1847 = scalar_lea.vmem [#allocation10], %s1846
        // Predicated region
        $region57: #{tpu_custom_call.1} parent=39 // pred_check
          %p1848 = pneg %p152
        $region58: #{tpu_custom_call.1} parent=39 // pred_check_branch
          %1850 = sbr.rel (%p1848) target = $region60
        $region59: #{tpu_custom_call.1} parent=39 // pred_region
          %s1852 = ssub.s32 128, 128
          %1853 = vsyncadd %s1844, %s1852
          %s1854 = smul.addr %s24, 128
          %s1855 = scalar_lea.hbm %s5, %s1854
          %s1857 = sshll.u32 %s1847, 4
          %s1858 = int_to_ptr.vmem [resolvable:$true] %s1857
          %1860 = dma.vmem_to_hbm [thread:$0]  %s1858, 128, %s1855, %s1844
        $region60: #{tpu_custom_call.1} parent=39 // pred_fallthru
          _
      $region40: #{tpu_custom_call.1} parent=5 // pred_fallthru
        _
      %p1861 = scmp.le.s32.totalorder 2, %s19
      // Predicated region
      $region61: #{tpu_custom_call.1} parent=5 // pred_check
        %p1862 = pneg %p1861
      $region62: #{tpu_custom_call.1} parent=5 // pred_check_branch
        %1864 = sbr.rel (%p1862) target = $region64
      $region63: #{tpu_custom_call.1} parent=5 // pred_region
        %s1865 = ssub.s32 %s19, 2
        // Predicated region
        $region65: #{tpu_custom_call.1} parent=63 // pred_check
          %p1866 = pneg %p158
        $region66: #{tpu_custom_call.1} parent=63 // pred_check_branch
          %1868 = sbr.rel (%p1866) target = $region68
        $region67: #{tpu_custom_call.1} parent=63 // pred_region
          %s1869 = sand.u32 %s143, 1
          %s1870 = scalar_lea.sflag [#allocation4], %s1869
          %s1871 = sand.u32 %s143, 1
          %s1872 = smul.addr %s1871, 8
          %s1873 = scalar_lea.vmem [#allocation10], %s1872
          %1874 = dma.done %s1870, 128
        $region68: #{tpu_custom_call.1} parent=63 // pred_fallthru
          _
      $region64: #{tpu_custom_call.1} parent=5 // pred_fallthru
        _
    $region6: #{tpu_custom_call.1} parent=1 // loop_footer
      %s23 = sadd.s32 1, %s19
    $region7: #{tpu_custom_call.1} parent=1 // loop_footer_branch
      %18 = sbr.rel target = $region3
    $region8: #{tpu_custom_call.1} parent=1 // loop_exit
      _
    %1875 = vsyncpa [#allocation3], 1
    %s1876 = scalar_lea.sflag [#allocation3], 1
    %1877 = vsyncpa %s1876, 1
    %1878 = vsyncpa [#allocation6], 1
    %1879 = vsyncpa [#allocation9], 1
    %1880 = vsyncpa [#allocation4], 1
    %s1881 = scalar_lea.sflag [#allocation4], 1
    %1882 = vsyncpa %s1881, 1

</llo_original>
